<compile_context>
chip_gen: v6e
topology: v6e:2x2x1
jax: 0.10.0
libtpu: 0.0.40
codegen_flags: <defaults>
</compile_context>

<pallas_src>
import functools

import jax
import jax.numpy as jnp
from jax.experimental import pallas as pl
from jax.experimental.pallas import tpu as pltpu


# ----------------------------- Pallas kernel -------------------------------


def _residual_group_kernel(x_ref, w1_ref, b1_ref, w2_ref, b2_ref,
                           cw1_ref, cb1_ref, cw2_ref, cb2_ref,
                           o_ref, pad_ref, res_ref, *, H, W, C, n_blocks):
    """One grid step = one RCAB block (or, at blk == n_blocks, the trailing
    group conv + group skip) for one batch element.

    x_ref   : (1, H, W, C)   group input  (resident across the block axis)
    w1_ref  : (1, 9C, C)     conv1 weights of block `blk` (bf16); at blk == nb
                             this slot holds the trailing group-conv weights
    b1_ref  : (1, 1, C)      conv1 bias (f32); trailing conv bias at blk == nb
    w2_ref  : (1, 9C, C)     conv2 weights (bf16)
    b2_ref  : (1, 1, C)
    cw1_ref : (1, C, Cr)     CA squeeze weights (f32, tiny)
    cb1_ref : (1, 1, Cr)
    cw2_ref : (1, Cr, C)     CA excite weights (f32, tiny)
    cb2_ref : (1, 1, C)
    o_ref   : (1, H, W, C)   written only at blk == n_blocks
    pad_ref : (H+2, W+2, C)  f32 scratch: persistent zero-bordered halo buffer
    res_ref : (H*W, C)       f32 scratch: carried block residual
    """
    f32 = jnp.float32
    blk = pl.program_id(1)
    HW = H * W

    def conv3x3(flat, w, b, relu):
        # flat: (H*W, C) f32  ->  (H*W, C) f32   (3x3 'SAME' conv + bias)
        # Write the conv input into the interior of the persistent halo
        # scratch (border stays zero) -- no concat-based padding.
        pad_ref[1:H + 1, 1:W + 1, :] = flat.reshape(H, W, C)
        xp = pad_ref[...].astype(w.dtype)               # one cast -> MXU dtype
        # im2col: 9 shifted views -> a single wide-K MXU matmul (K = 9C).
        cols = [xp[dy:dy + H, dx:dx + W, :].reshape(HW, C)
                for dy in range(3) for dx in range(3)]
        patches = jnp.concatenate(cols, axis=-1)        # (H*W, 9C) bf16
        acc = jnp.dot(patches, w, preferred_element_type=f32) + b
        if relu:
            acc = jnp.maximum(acc, 0.0)
        return acc

    # ---- per-batch init: zero the halo scratch, load the group input ------
    @pl.when(blk == 0)
    def _():
        pad_ref[...] = jnp.zeros(pad_ref.shape, pad_ref.dtype)
        res_ref[...] = x_ref[0].reshape(HW, C).astype(f32)

    # ---- one RCAB block: conv -> ReLU -> conv -> CA -> + res --------------
    @pl.when(blk < n_blocks)
    def _():
        res = res_ref[...]
        h = conv3x3(res, w1_ref[0], b1_ref[0], relu=True)
        h = conv3x3(h, w2_ref[0], b2_ref[0], relu=False)
        # Channel attention (CALayer): global avg pool, 1x1 squeeze/excite,
        # sigmoid, rescale -- all in f32 on the accumulator.
        y = jnp.sum(h, axis=0, keepdims=True) * (1.0 / float(HW))     # (1, C)
        z = jnp.maximum(
            jnp.dot(y, cw1_ref[0], preferred_element_type=f32) + cb1_ref[0],
            0.0)
        s = jax.nn.sigmoid(
            jnp.dot(z, cw2_ref[0], preferred_element_type=f32) + cb2_ref[0])
        res_ref[...] = h * s + res

    # ---- trailing group conv + group skip (last grid step) ----------------
    @pl.when(blk == n_blocks)
    def _():
        x_in = x_ref[0].reshape(HW, C).astype(f32)
        out = conv3x3(res_ref[...], w1_ref[0], b1_ref[0], relu=False) + x_in
        o_ref[...] = out.reshape(1, H, W, C).astype(o_ref.dtype)


# ------------------------------ host wrapper --------------------------------


def _vmem_budget_bytes(H, W, C, Cr, w_itemsize):
    """Rough VMEM budget for the resident buffers + live intermediates."""
    io = 2 * 2 * H * W * C * 4                          # x + out, 2 buffers each
    wts = 2 * (2 * 9 * C * C * w_itemsize               # conv1/conv2 weights
               + 2 * C * Cr * 4 + 4 * C * 4 + 2 * Cr * 4)
    scratch = (H + 2) * (W + 2) * C * 4 + H * W * C * 4
    interm = 2 * H * W * 9 * C * w_itemsize + 2 * H * W * C * 4
    total = io + wts + scratch + interm
    return int(min(max(2 * total, 8 << 20), 64 << 20))


def residual_group_forward(x, params, *, conv_weight_dtype=jnp.bfloat16):
    """ResidualGroup: n_resblocks x RCAB -> conv3x3 -> + x  (one pallas_call)."""
    B, H, W, C = x.shape
    blocks = params["blocks"]
    nb = len(blocks)
    Cr = blocks[0]["cw1"].shape[1]
    wd = jnp.dtype(conv_weight_dtype)

    # Stack per-block params along a leading "block" axis; the trailing group
    # conv rides as block index `nb` of the W1/B1 stacks (dummy zeros for the
    # stacks that are unused at the last grid step).
    W1 = jnp.stack([p["w1"].reshape(9 * C, C) for p in blocks]
                   + [params["wt"].reshape(9 * C, C)]).astype(wd)   # (nb+1,9C,C)
    B1 = jnp.stack([p["b1"] for p in blocks] + [params["bt"]])      # (nb+1,1,C)
    W2 = jnp.stack([p["w2"].reshape(9 * C, C) for p in blocks]
                   + [jnp.zeros((9 * C, C), jnp.float32)]).astype(wd)
    B2 = jnp.stack([p["b2"] for p in blocks] + [jnp.zeros((1, C), jnp.float32)])
    CW1 = jnp.stack([p["cw1"] for p in blocks] + [jnp.zeros((C, Cr), jnp.float32)])
    CB1 = jnp.stack([p["cb1"] for p in blocks] + [jnp.zeros((1, Cr), jnp.float32)])
    CW2 = jnp.stack([p["cw2"] for p in blocks] + [jnp.zeros((Cr, C), jnp.float32)])
    CB2 = jnp.stack([p["cb2"] for p in blocks] + [jnp.zeros((1, C), jnp.float32)])

    kern = functools.partial(_residual_group_kernel, H=H, W=W, C=C, n_blocks=nb)

    def per_block(*dims):
        nd = len(dims)
        # One block's slice streams in per inner-grid step (auto-prefetched
        # behind the previous block's matmuls by the BlockSpec pipeline).
        return pl.BlockSpec((1,) + dims, lambda b, blk, _nd=nd: (blk,) + (0,) * _nd)

    in_specs = [
        pl.BlockSpec((1, H, W, C), lambda b, blk: (b, 0, 0, 0)),   # x (per-b)
        per_block(9 * C, C), per_block(1, C),                      # W1, B1
        per_block(9 * C, C), per_block(1, C),                      # W2, B2
        per_block(C, Cr), per_block(1, Cr),                        # CW1, CB1
        per_block(Cr, C), per_block(1, C),                         # CW2, CB2
    ]

    cost = pl.CostEstimate(
        flops=int(B * ((2 * nb + 1) * 2 * H * W * 9 * C * C + nb * 4 * C * Cr)),
        transcendentals=int(B * nb * C),
        bytes_accessed=int(2 * B * H * W * C * 4
                           + B * (nb + 1) * 2 * 9 * C * C * wd.itemsize),
    )

    return pl.pallas_call(
        kern,
        out_shape=jax.ShapeDtypeStruct((B, H, W, C), x.dtype),
        grid=(B, nb + 1),
        in_specs=in_specs,
        out_specs=pl.BlockSpec((1, H, W, C), lambda b, blk: (b, 0, 0, 0)),
        scratch_shapes=[
            pltpu.VMEM((H + 2, W + 2, C), jnp.float32),   # zero-bordered halo
            pltpu.VMEM((H * W, C), jnp.float32),          # carried residual
        ],
        compiler_params=pltpu.CompilerParams(
            dimension_semantics=("parallel", "arbitrary"),
            vmem_limit_bytes=_vmem_budget_bytes(H, W, C, Cr, wd.itemsize)),
        cost_estimate=cost,
    )(x, W1, B1, W2, B2, CW1, CB1, CW2, CB2)


# ------------------------------ params & ref --------------------------------


def init_params(key, n_feat, reduction, n_resblocks):
    cr = n_feat // reduction

    def conv_w(k, cin, cout, kk=9):
        return jax.random.normal(k, (kk, cin, cout), jnp.float32) * 0.05

    blocks = []
    for _ in range(n_resblocks):
        key, *ks = jax.random.split(key, 9)
        blocks.append(dict(
            w1=conv_w(ks[0], n_feat, n_feat),
            b1=jax.random.normal(ks[1], (1, n_feat), jnp.float32) * 0.05,
            w2=conv_w(ks[2], n_feat, n_feat),
            b2=jax.random.normal(ks[3], (1, n_feat), jnp.float32) * 0.05,
            cw1=jax.random.normal(ks[4], (n_feat, cr), jnp.float32) * 0.05,
            cb1=jax.random.normal(ks[5], (1, cr), jnp.float32) * 0.05,
            cw2=jax.random.normal(ks[6], (cr, n_feat), jnp.float32) * 0.05,
            cb2=jax.random.normal(ks[7], (1, n_feat), jnp.float32) * 0.05,
        ))
    key, k1, k2 = jax.random.split(key, 3)
    return dict(
        blocks=blocks,
        wt=conv_w(k1, n_feat, n_feat),
        bt=jax.random.normal(k2, (1, n_feat), jnp.float32) * 0.05,
    )


def residual_group_reference(x, params):
    """Pure-JAX f32 reference (same math as the PyTorch module)."""
    C = x.shape[-1]

    def conv_ref(v, w, b):
        w4 = w.reshape(3, 3, C, C)
        y = jax.lax.conv_general_dilated(
            v, w4, (1, 1), "SAME",
            dimension_numbers=("NHWC", "HWIO", "NHWC"),
            precision=jax.lax.Precision.HIGHEST)
        return y + b.reshape(1, 1, 1, C)

    res = x
    for p in params["blocks"]:
        h = jax.nn.relu(conv_ref(res, p["w1"], p["b1"]))
        h = conv_ref(h, p["w2"], p["b2"])
        y = jnp.mean(h, axis=(1, 2), keepdims=True)                # (B,1,1,C)
        z = jax.nn.relu(jnp.einsum("bijc,cd->bijd", y, p["cw1"])
                        + p["cb1"].reshape(1, 1, 1, -1))
        s = jax.nn.sigmoid(jnp.einsum("bijc,cd->bijd", z, p["cw2"])
                           + p["cb2"].reshape(1, 1, 1, -1))
        res = h * s + res
    return conv_ref(res, params["wt"], params["bt"]) + x


# ---------------------------------- main -------------------------------------

if __name__ == "__main__":
    B, H, W = 2, 16, 16
    n_feat, reduction, n_resblocks = 16, 4, 2

    key = jax.random.PRNGKey(0)
    kx, kp = jax.random.split(key)
    x = jax.random.normal(kx, (B, H, W, n_feat), jnp.float32)
    params = init_params(kp, n_feat, reduction, n_resblocks)

    out = residual_group_forward(x, params)
    out = jax.block_until_ready(out)

    ref = residual_group_reference(x, params)
    assert out.shape == (B, H, W, n_feat)
    # Tolerance accounts for bf16 MXU inputs (f32 accumulation & epilogue).
    assert jnp.allclose(out, ref, atol=2e-2, rtol=2e-2), "mismatch vs reference"

    print("KERNEL_OK")
</pallas_src>

<mosaic_0001>
module attributes {stable_mosaic.version = 11 : i64} {
  func.func @_residual_group_kernel(%arg0: i32, %arg1: i32, %arg2: memref<1x16x16x16xf32, #tpu.memory_space<vmem>>, %arg3: memref<1x144x16xbf16, #tpu.memory_space<vmem>>, %arg4: memref<1x1x16xf32, #tpu.memory_space<vmem>>, %arg5: memref<1x144x16xbf16, #tpu.memory_space<vmem>>, %arg6: memref<1x1x16xf32, #tpu.memory_space<vmem>>, %arg7: memref<1x16x4xf32, #tpu.memory_space<vmem>>, %arg8: memref<1x1x4xf32, #tpu.memory_space<vmem>>, %arg9: memref<1x4x16xf32, #tpu.memory_space<vmem>>, %arg10: memref<1x1x16xf32, #tpu.memory_space<vmem>>, %arg11: memref<1x16x16x16xf32, #tpu.memory_space<vmem>>, %arg12: memref<18x18x16xf32, #tpu.memory_space<vmem>>, %arg13: memref<256x16xf32, #tpu.memory_space<vmem>>) attributes {dimension_semantics = [#tpu.dimension_semantics<parallel>, #tpu.dimension_semantics<arbitrary>], iteration_bounds = array<i64: 2, 3>, scalar_prefetch = 0 : i64, scratch_operands = 2 : i64, tpu.core_type = #tpu.core_type<tc>, window_params = [{transform_indices = @transform_0, window_bounds = array<i64: 1, 16, 16, 16>}, {transform_indices = @transform_1, window_bounds = array<i64: 1, 144, 16>}, {transform_indices = @transform_2, window_bounds = array<i64: 1, 1, 16>}, {transform_indices = @transform_3, window_bounds = array<i64: 1, 144, 16>}, {transform_indices = @transform_4, window_bounds = array<i64: 1, 1, 16>}, {transform_indices = @transform_5, window_bounds = array<i64: 1, 16, 4>}, {transform_indices = @transform_6, window_bounds = array<i64: 1, 1, 4>}, {transform_indices = @transform_7, window_bounds = array<i64: 1, 4, 16>}, {transform_indices = @transform_8, window_bounds = array<i64: 1, 1, 16>}, {transform_indices = @transform_9, window_bounds = array<i64: 1, 16, 16, 16>}]} {
    %c0_i32 = arith.constant 0 : i32
    %0 = arith.cmpi eq, %arg1, %c0_i32 : i32
    %1 = arith.extui %0 : i1 to i32
    %c0_i32_0 = arith.constant 0 : i32
    %2 = arith.cmpi ne, %1, %c0_i32_0 : i32
    scf.if %2 {
      %cst = arith.constant 0.000000e+00 : f32
      %9 = vector.broadcast %cst : f32 to vector<18x18x16xf32>
      %c0 = arith.constant 0 : index
      %c0_4 = arith.constant 0 : index
      %c0_5 = arith.constant 0 : index
      %10 = vector.load %arg12[%c0, %c0_4, %c0_5] : memref<18x18x16xf32, #tpu.memory_space<vmem>>, vector<18x18x16xf32>
      tpu.vector_store %arg12[%c0, %c0_4, %c0_5], %9 {strides = array<i32>} : memref<18x18x16xf32, #tpu.memory_space<vmem>>, vector<18x18x16xf32>,
      %c0_6 = arith.constant 0 : index
      %c0_7 = arith.constant 0 : index
      %c0_8 = arith.constant 0 : index
      %c0_9 = arith.constant 0 : index
      %11 = vector.load %arg2[%c0_6, %c0_7, %c0_8, %c0_9] : memref<1x16x16x16xf32, #tpu.memory_space<vmem>>, vector<1x16x16x16xf32>
      %12 = vector.shape_cast %11 : vector<1x16x16x16xf32> to vector<16x16x16xf32>
      %13 = vector.shape_cast %12 : vector<16x16x16xf32> to vector<256x16xf32>
      %c0_10 = arith.constant 0 : index
      %c0_11 = arith.constant 0 : index
      %14 = vector.load %arg13[%c0_10, %c0_11] : memref<256x16xf32, #tpu.memory_space<vmem>>, vector<256x16xf32>
      tpu.vector_store %arg13[%c0_10, %c0_11], %13 {strides = array<i32>} : memref<256x16xf32, #tpu.memory_space<vmem>>, vector<256x16xf32>,
    } else {
    }
    %c2_i32 = arith.constant 2 : i32
    %3 = arith.cmpi slt, %arg1, %c2_i32 : i32
    %4 = arith.extui %3 : i1 to i32
    %c0_i32_1 = arith.constant 0 : i32
    %5 = arith.cmpi ne, %4, %c0_i32_1 : i32
    scf.if %5 {
      %c0 = arith.constant 0 : index
      %c0_4 = arith.constant 0 : index
      %9 = vector.load %arg13[%c0, %c0_4] : memref<256x16xf32, #tpu.memory_space<vmem>>, vector<256x16xf32>
      %c0_5 = arith.constant 0 : index
      %c0_6 = arith.constant 0 : index
      %c0_7 = arith.constant 0 : index
      %10 = vector.load %arg3[%c0_5, %c0_6, %c0_7] : memref<1x144x16xbf16, #tpu.memory_space<vmem>>, vector<1x144x16xbf16>
      %11 = vector.shape_cast %10 : vector<1x144x16xbf16> to vector<144x16xbf16>
      %c0_8 = arith.constant 0 : index
      %c0_9 = arith.constant 0 : index
      %c0_10 = arith.constant 0 : index
      %12 = vector.load %arg4[%c0_8, %c0_9, %c0_10] : memref<1x1x16xf32, #tpu.memory_space<vmem>>, vector<1x1x16xf32>
      %13 = vector.shape_cast %12 : vector<1x1x16xf32> to vector<1x16xf32>
      %14 = vector.shape_cast %9 : vector<256x16xf32> to vector<16x16x16xf32>
      %c1 = arith.constant 1 : index
      %c1_11 = arith.constant 1 : index
      %c0_12 = arith.constant 0 : index
      %15 = vector.load %arg12[%c1, %c1_11, %c0_12] : memref<18x18x16xf32, #tpu.memory_space<vmem>>, vector<16x16x16xf32>
      tpu.vector_store %arg12[%c1, %c1_11, %c0_12], %14 {strides = array<i32>} : memref<18x18x16xf32, #tpu.memory_space<vmem>>, vector<16x16x16xf32>,
      %c0_13 = arith.constant 0 : index
      %c0_14 = arith.constant 0 : index
      %c0_15 = arith.constant 0 : index
      %16 = vector.load %arg12[%c0_13, %c0_14, %c0_15] : memref<18x18x16xf32, #tpu.memory_space<vmem>>, vector<18x18x16xf32>
      %17 = arith.truncf %16 : vector<18x18x16xf32> to vector<18x18x16xbf16>
      %18 = vector.extract_strided_slice %17 {offsets = [0, 0, 0], sizes = [16, 16, 16], strides = [1, 1, 1]} : vector<18x18x16xbf16> to vector<16x16x16xbf16>
      %19 = vector.shape_cast %18 : vector<16x16x16xbf16> to vector<256x16xbf16>
      %20 = vector.extract_strided_slice %17 {offsets = [0, 1, 0], sizes = [16, 16, 16], strides = [1, 1, 1]} : vector<18x18x16xbf16> to vector<16x16x16xbf16>
      %21 = vector.shape_cast %20 : vector<16x16x16xbf16> to vector<256x16xbf16>
      %22 = vector.extract_strided_slice %17 {offsets = [0, 2, 0], sizes = [16, 16, 16], strides = [1, 1, 1]} : vector<18x18x16xbf16> to vector<16x16x16xbf16>
      %23 = vector.shape_cast %22 : vector<16x16x16xbf16> to vector<256x16xbf16>
      %24 = vector.extract_strided_slice %17 {offsets = [1, 0, 0], sizes = [16, 16, 16], strides = [1, 1, 1]} : vector<18x18x16xbf16> to vector<16x16x16xbf16>
      %25 = vector.shape_cast %24 : vector<16x16x16xbf16> to vector<256x16xbf16>
      %26 = vector.extract_strided_slice %17 {offsets = [1, 1, 0], sizes = [16, 16, 16], strides = [1, 1, 1]} : vector<18x18x16xbf16> to vector<16x16x16xbf16>
      %27 = vector.shape_cast %26 : vector<16x16x16xbf16> to vector<256x16xbf16>
      %28 = vector.extract_strided_slice %17 {offsets = [1, 2, 0], sizes = [16, 16, 16], strides = [1, 1, 1]} : vector<18x18x16xbf16> to vector<16x16x16xbf16>
      %29 = vector.shape_cast %28 : vector<16x16x16xbf16> to vector<256x16xbf16>
      %30 = vector.extract_strided_slice %17 {offsets = [2, 0, 0], sizes = [16, 16, 16], strides = [1, 1, 1]} : vector<18x18x16xbf16> to vector<16x16x16xbf16>
      %31 = vector.shape_cast %30 : vector<16x16x16xbf16> to vector<256x16xbf16>
      %32 = vector.extract_strided_slice %17 {offsets = [2, 1, 0], sizes = [16, 16, 16], strides = [1, 1, 1]} : vector<18x18x16xbf16> to vector<16x16x16xbf16>
      %33 = vector.shape_cast %32 : vector<16x16x16xbf16> to vector<256x16xbf16>
      %34 = vector.extract_strided_slice %17 {offsets = [2, 2, 0], sizes = [16, 16, 16], strides = [1, 1, 1]} : vector<18x18x16xbf16> to vector<16x16x16xbf16>
      %35 = vector.shape_cast %34 : vector<16x16x16xbf16> to vector<256x16xbf16>
      %36 = tpu.concatenate %19, %21, %23, %25, %27, %29, %31, %33, %35 in 1 : vector<256x16xbf16>, vector<256x16xbf16>, vector<256x16xbf16>, vector<256x16xbf16>, vector<256x16xbf16>, vector<256x16xbf16>, vector<256x16xbf16>, vector<256x16xbf16>, vector<256x16xbf16> -> vector<256x144xbf16>
      %cst = arith.constant dense<0.000000e+00> : vector<256x16xf32>
      %37 = tpu.matmul %36, %11, %cst {dimension_numbers = #tpu.dot_dimension_numbers<[1], [0], [0], [1], [0, 0, 1, 1], [], []>} : vector<256x144xbf16>, vector<144x16xbf16>, vector<256x16xf32> -> vector<256x16xf32>
      %38 = vector.broadcast %13 : vector<1x16xf32> to vector<256x16xf32>
      %39 = arith.addf %37, %38 : vector<256x16xf32>
      %cst_16 = arith.constant 0.000000e+00 : f32
      %40 = vector.broadcast %cst_16 : f32 to vector<256x16xf32>
      %41 = arith.maximumf %39, %40 : vector<256x16xf32>
      %c0_17 = arith.constant 0 : index
      %c0_18 = arith.constant 0 : index
      %c0_19 = arith.constant 0 : index
      %42 = vector.load %arg5[%c0_17, %c0_18, %c0_19] : memref<1x144x16xbf16, #tpu.memory_space<vmem>>, vector<1x144x16xbf16>
      %43 = vector.shape_cast %42 : vector<1x144x16xbf16> to vector<144x16xbf16>
      %c0_20 = arith.constant 0 : index
      %c0_21 = arith.constant 0 : index
      %c0_22 = arith.constant 0 : index
      %44 = vector.load %arg6[%c0_20, %c0_21, %c0_22] : memref<1x1x16xf32, #tpu.memory_space<vmem>>, vector<1x1x16xf32>
      %45 = vector.shape_cast %44 : vector<1x1x16xf32> to vector<1x16xf32>
      %46 = vector.shape_cast %41 : vector<256x16xf32> to vector<16x16x16xf32>
      %c1_23 = arith.constant 1 : index
      %c1_24 = arith.constant 1 : index
      %c0_25 = arith.constant 0 : index
      %47 = vector.load %arg12[%c1_23, %c1_24, %c0_25] : memref<18x18x16xf32, #tpu.memory_space<vmem>>, vector<16x16x16xf32>
      tpu.vector_store %arg12[%c1_23, %c1_24, %c0_25], %46 {strides = array<i32>} : memref<18x18x16xf32, #tpu.memory_space<vmem>>, vector<16x16x16xf32>,
      %c0_26 = arith.constant 0 : index
      %c0_27 = arith.constant 0 : index
      %c0_28 = arith.constant 0 : index
      %48 = vector.load %arg12[%c0_26, %c0_27, %c0_28] : memref<18x18x16xf32, #tpu.memory_space<vmem>>, vector<18x18x16xf32>
      %49 = arith.truncf %48 : vector<18x18x16xf32> to vector<18x18x16xbf16>
      %50 = vector.extract_strided_slice %49 {offsets = [0, 0, 0], sizes = [16, 16, 16], strides = [1, 1, 1]} : vector<18x18x16xbf16> to vector<16x16x16xbf16>
      %51 = vector.shape_cast %50 : vector<16x16x16xbf16> to vector<256x16xbf16>
      %52 = vector.extract_strided_slice %49 {offsets = [0, 1, 0], sizes = [16, 16, 16], strides = [1, 1, 1]} : vector<18x18x16xbf16> to vector<16x16x16xbf16>
      %53 = vector.shape_cast %52 : vector<16x16x16xbf16> to vector<256x16xbf16>
      %54 = vector.extract_strided_slice %49 {offsets = [0, 2, 0], sizes = [16, 16, 16], strides = [1, 1, 1]} : vector<18x18x16xbf16> to vector<16x16x16xbf16>
      %55 = vector.shape_cast %54 : vector<16x16x16xbf16> to vector<256x16xbf16>
      %56 = vector.extract_strided_slice %49 {offsets = [1, 0, 0], sizes = [16, 16, 16], strides = [1, 1, 1]} : vector<18x18x16xbf16> to vector<16x16x16xbf16>
      %57 = vector.shape_cast %56 : vector<16x16x16xbf16> to vector<256x16xbf16>
      %58 = vector.extract_strided_slice %49 {offsets = [1, 1, 0], sizes = [16, 16, 16], strides = [1, 1, 1]} : vector<18x18x16xbf16> to vector<16x16x16xbf16>
      %59 = vector.shape_cast %58 : vector<16x16x16xbf16> to vector<256x16xbf16>
      %60 = vector.extract_strided_slice %49 {offsets = [1, 2, 0], sizes = [16, 16, 16], strides = [1, 1, 1]} : vector<18x18x16xbf16> to vector<16x16x16xbf16>
      %61 = vector.shape_cast %60 : vector<16x16x16xbf16> to vector<256x16xbf16>
      %62 = vector.extract_strided_slice %49 {offsets = [2, 0, 0], sizes = [16, 16, 16], strides = [1, 1, 1]} : vector<18x18x16xbf16> to vector<16x16x16xbf16>
      %63 = vector.shape_cast %62 : vector<16x16x16xbf16> to vector<256x16xbf16>
      %64 = vector.extract_strided_slice %49 {offsets = [2, 1, 0], sizes = [16, 16, 16], strides = [1, 1, 1]} : vector<18x18x16xbf16> to vector<16x16x16xbf16>
      %65 = vector.shape_cast %64 : vector<16x16x16xbf16> to vector<256x16xbf16>
      %66 = vector.extract_strided_slice %49 {offsets = [2, 2, 0], sizes = [16, 16, 16], strides = [1, 1, 1]} : vector<18x18x16xbf16> to vector<16x16x16xbf16>
      %67 = vector.shape_cast %66 : vector<16x16x16xbf16> to vector<256x16xbf16>
      %68 = tpu.concatenate %51, %53, %55, %57, %59, %61, %63, %65, %67 in 1 : vector<256x16xbf16>, vector<256x16xbf16>, vector<256x16xbf16>, vector<256x16xbf16>, vector<256x16xbf16>, vector<256x16xbf16>, vector<256x16xbf16>, vector<256x16xbf16>, vector<256x16xbf16> -> vector<256x144xbf16>
      %cst_29 = arith.constant dense<0.000000e+00> : vector<256x16xf32>
      %69 = tpu.matmul %68, %43, %cst_29 {dimension_numbers = #tpu.dot_dimension_numbers<[1], [0], [0], [1], [0, 0, 1, 1], [], []>} : vector<256x144xbf16>, vector<144x16xbf16>, vector<256x16xf32> -> vector<256x16xf32>
      %70 = vector.broadcast %45 : vector<1x16xf32> to vector<256x16xf32>
      %71 = arith.addf %69, %70 : vector<256x16xf32>
      %cst_30 = arith.constant dense<0.000000e+00> : vector<16xf32>
      %72 = vector.multi_reduction <add>, %71, %cst_30 [0] : vector<256x16xf32> to vector<16xf32>
      %73 = vector.shape_cast %72 : vector<16xf32> to vector<1x16xf32>
      %cst_31 = arith.constant 3.906250e-03 : f32
      %74 = vector.broadcast %cst_31 : f32 to vector<1x16xf32>
      %75 = arith.mulf %73, %74 : vector<1x16xf32>
      %c0_32 = arith.constant 0 : index
      %c0_33 = arith.constant 0 : index
      %c0_34 = arith.constant 0 : index
      %76 = vector.load %arg7[%c0_32, %c0_33, %c0_34] : memref<1x16x4xf32, #tpu.memory_space<vmem>>, vector<1x16x4xf32>
      %77 = vector.shape_cast %76 : vector<1x16x4xf32> to vector<16x4xf32>
      %cst_35 = arith.constant dense<0.000000e+00> : vector<1x4xf32>
      %78 = tpu.matmul %75, %77, %cst_35 {dimension_numbers = #tpu.dot_dimension_numbers<[1], [0], [0], [1], [0, 0, 1, 1], [], []>} : vector<1x16xf32>, vector<16x4xf32>, vector<1x4xf32> -> vector<1x4xf32>
      %c0_36 = arith.constant 0 : index
      %c0_37 = arith.constant 0 : index
      %c0_38 = arith.constant 0 : index
      %79 = vector.load %arg8[%c0_36, %c0_37, %c0_38] : memref<1x1x4xf32, #tpu.memory_space<vmem>>, vector<1x1x4xf32>
      %80 = vector.shape_cast %79 : vector<1x1x4xf32> to vector<1x4xf32>
      %81 = arith.addf %78, %80 : vector<1x4xf32>
      %cst_39 = arith.constant 0.000000e+00 : f32
      %82 = vector.broadcast %cst_39 : f32 to vector<1x4xf32>
      %83 = arith.maximumf %81, %82 : vector<1x4xf32>
      %c0_40 = arith.constant 0 : index
      %c0_41 = arith.constant 0 : index
      %c0_42 = arith.constant 0 : index
      %84 = vector.load %arg9[%c0_40, %c0_41, %c0_42] : memref<1x4x16xf32, #tpu.memory_space<vmem>>, vector<1x4x16xf32>
      %85 = vector.shape_cast %84 : vector<1x4x16xf32> to vector<4x16xf32>
      %cst_43 = arith.constant dense<0.000000e+00> : vector<1x16xf32>
      %86 = tpu.matmul %83, %85, %cst_43 {dimension_numbers = #tpu.dot_dimension_numbers<[1], [0], [0], [1], [0, 0, 1, 1], [], []>} : vector<1x4xf32>, vector<4x16xf32>, vector<1x16xf32> -> vector<1x16xf32>
      %c0_44 = arith.constant 0 : index
      %c0_45 = arith.constant 0 : index
      %c0_46 = arith.constant 0 : index
      %87 = vector.load %arg10[%c0_44, %c0_45, %c0_46] : memref<1x1x16xf32, #tpu.memory_space<vmem>>, vector<1x1x16xf32>
      %88 = vector.shape_cast %87 : vector<1x1x16xf32> to vector<1x16xf32>
      %89 = arith.addf %86, %88 : vector<1x16xf32>
      %90 = arith.negf %89 : vector<1x16xf32>
      %91 = math.exp %90 : vector<1x16xf32>
      %cst_47 = arith.constant 1.000000e+00 : f32
      %92 = vector.broadcast %cst_47 : f32 to vector<1x16xf32>
      %93 = arith.addf %92, %91 : vector<1x16xf32>
      %94 = arith.divf %92, %93 : vector<1x16xf32>
      %95 = vector.broadcast %94 : vector<1x16xf32> to vector<256x16xf32>
      %96 = arith.mulf %71, %95 : vector<256x16xf32>
      %97 = arith.addf %96, %9 : vector<256x16xf32>
      %c0_48 = arith.constant 0 : index
      %c0_49 = arith.constant 0 : index
      %98 = vector.load %arg13[%c0_48, %c0_49] : memref<256x16xf32, #tpu.memory_space<vmem>>, vector<256x16xf32>
      tpu.vector_store %arg13[%c0_48, %c0_49], %97 {strides = array<i32>} : memref<256x16xf32, #tpu.memory_space<vmem>>, vector<256x16xf32>,
    } else {
    }
    %c2_i32_2 = arith.constant 2 : i32
    %6 = arith.cmpi eq, %arg1, %c2_i32_2 : i32
    %7 = arith.extui %6 : i1 to i32
    %c0_i32_3 = arith.constant 0 : i32
    %8 = arith.cmpi ne, %7, %c0_i32_3 : i32
    scf.if %8 {
      %c0 = arith.constant 0 : index
      %c0_4 = arith.constant 0 : index
      %c0_5 = arith.constant 0 : index
      %c0_6 = arith.constant 0 : index
      %9 = vector.load %arg2[%c0, %c0_4, %c0_5, %c0_6] : memref<1x16x16x16xf32, #tpu.memory_space<vmem>>, vector<1x16x16x16xf32>
      %10 = vector.shape_cast %9 : vector<1x16x16x16xf32> to vector<16x16x16xf32>
      %11 = vector.shape_cast %10 : vector<16x16x16xf32> to vector<256x16xf32>
      %c0_7 = arith.constant 0 : index
      %c0_8 = arith.constant 0 : index
      %12 = vector.load %arg13[%c0_7, %c0_8] : memref<256x16xf32, #tpu.memory_space<vmem>>, vector<256x16xf32>
      %c0_9 = arith.constant 0 : index
      %c0_10 = arith.constant 0 : index
      %c0_11 = arith.constant 0 : index
      %13 = vector.load %arg3[%c0_9, %c0_10, %c0_11] : memref<1x144x16xbf16, #tpu.memory_space<vmem>>, vector<1x144x16xbf16>
      %14 = vector.shape_cast %13 : vector<1x144x16xbf16> to vector<144x16xbf16>
      %c0_12 = arith.constant 0 : index
      %c0_13 = arith.constant 0 : index
      %c0_14 = arith.constant 0 : index
      %15 = vector.load %arg4[%c0_12, %c0_13, %c0_14] : memref<1x1x16xf32, #tpu.memory_space<vmem>>, vector<1x1x16xf32>
      %16 = vector.shape_cast %15 : vector<1x1x16xf32> to vector<1x16xf32>
      %17 = vector.shape_cast %12 : vector<256x16xf32> to vector<16x16x16xf32>
      %c1 = arith.constant 1 : index
      %c1_15 = arith.constant 1 : index
      %c0_16 = arith.constant 0 : index
      %18 = vector.load %arg12[%c1, %c1_15, %c0_16] : memref<18x18x16xf32, #tpu.memory_space<vmem>>, vector<16x16x16xf32>
      tpu.vector_store %arg12[%c1, %c1_15, %c0_16], %17 {strides = array<i32>} : memref<18x18x16xf32, #tpu.memory_space<vmem>>, vector<16x16x16xf32>,
      %c0_17 = arith.constant 0 : index
      %c0_18 = arith.constant 0 : index
      %c0_19 = arith.constant 0 : index
      %19 = vector.load %arg12[%c0_17, %c0_18, %c0_19] : memref<18x18x16xf32, #tpu.memory_space<vmem>>, vector<18x18x16xf32>
      %20 = arith.truncf %19 : vector<18x18x16xf32> to vector<18x18x16xbf16>
      %21 = vector.extract_strided_slice %20 {offsets = [0, 0, 0], sizes = [16, 16, 16], strides = [1, 1, 1]} : vector<18x18x16xbf16> to vector<16x16x16xbf16>
      %22 = vector.shape_cast %21 : vector<16x16x16xbf16> to vector<256x16xbf16>
      %23 = vector.extract_strided_slice %20 {offsets = [0, 1, 0], sizes = [16, 16, 16], strides = [1, 1, 1]} : vector<18x18x16xbf16> to vector<16x16x16xbf16>
      %24 = vector.shape_cast %23 : vector<16x16x16xbf16> to vector<256x16xbf16>
      %25 = vector.extract_strided_slice %20 {offsets = [0, 2, 0], sizes = [16, 16, 16], strides = [1, 1, 1]} : vector<18x18x16xbf16> to vector<16x16x16xbf16>
      %26 = vector.shape_cast %25 : vector<16x16x16xbf16> to vector<256x16xbf16>
      %27 = vector.extract_strided_slice %20 {offsets = [1, 0, 0], sizes = [16, 16, 16], strides = [1, 1, 1]} : vector<18x18x16xbf16> to vector<16x16x16xbf16>
      %28 = vector.shape_cast %27 : vector<16x16x16xbf16> to vector<256x16xbf16>
      %29 = vector.extract_strided_slice %20 {offsets = [1, 1, 0], sizes = [16, 16, 16], strides = [1, 1, 1]} : vector<18x18x16xbf16> to vector<16x16x16xbf16>
      %30 = vector.shape_cast %29 : vector<16x16x16xbf16> to vector<256x16xbf16>
      %31 = vector.extract_strided_slice %20 {offsets = [1, 2, 0], sizes = [16, 16, 16], strides = [1, 1, 1]} : vector<18x18x16xbf16> to vector<16x16x16xbf16>
      %32 = vector.shape_cast %31 : vector<16x16x16xbf16> to vector<256x16xbf16>
      %33 = vector.extract_strided_slice %20 {offsets = [2, 0, 0], sizes = [16, 16, 16], strides = [1, 1, 1]} : vector<18x18x16xbf16> to vector<16x16x16xbf16>
      %34 = vector.shape_cast %33 : vector<16x16x16xbf16> to vector<256x16xbf16>
      %35 = vector.extract_strided_slice %20 {offsets = [2, 1, 0], sizes = [16, 16, 16], strides = [1, 1, 1]} : vector<18x18x16xbf16> to vector<16x16x16xbf16>
      %36 = vector.shape_cast %35 : vector<16x16x16xbf16> to vector<256x16xbf16>
      %37 = vector.extract_strided_slice %20 {offsets = [2, 2, 0], sizes = [16, 16, 16], strides = [1, 1, 1]} : vector<18x18x16xbf16> to vector<16x16x16xbf16>
      %38 = vector.shape_cast %37 : vector<16x16x16xbf16> to vector<256x16xbf16>
      %39 = tpu.concatenate %22, %24, %26, %28, %30, %32, %34, %36, %38 in 1 : vector<256x16xbf16>, vector<256x16xbf16>, vector<256x16xbf16>, vector<256x16xbf16>, vector<256x16xbf16>, vector<256x16xbf16>, vector<256x16xbf16>, vector<256x16xbf16>, vector<256x16xbf16> -> vector<256x144xbf16>
      %cst = arith.constant dense<0.000000e+00> : vector<256x16xf32>
      %40 = tpu.matmul %39, %14, %cst {dimension_numbers = #tpu.dot_dimension_numbers<[1], [0], [0], [1], [0, 0, 1, 1], [], []>} : vector<256x144xbf16>, vector<144x16xbf16>, vector<256x16xf32> -> vector<256x16xf32>
      %41 = vector.broadcast %16 : vector<1x16xf32> to vector<256x16xf32>
      %42 = arith.addf %40, %41 : vector<256x16xf32>
      %43 = arith.addf %42, %11 : vector<256x16xf32>
      %44 = vector.shape_cast %43 : vector<256x16xf32> to vector<1x16x16x16xf32>
      %c0_20 = arith.constant 0 : index
      %c0_21 = arith.constant 0 : index
      %c0_22 = arith.constant 0 : index
      %c0_23 = arith.constant 0 : index
      %45 = vector.load %arg11[%c0_20, %c0_21, %c0_22, %c0_23] : memref<1x16x16x16xf32, #tpu.memory_space<vmem>>, vector<1x16x16x16xf32>
      tpu.vector_store %arg11[%c0_20, %c0_21, %c0_22, %c0_23], %44 {strides = array<i32>} : memref<1x16x16x16xf32, #tpu.memory_space<vmem>>, vector<1x16x16x16xf32>,
    } else {
    }
    return
  }
  func.func @transform_0(%arg0: i32, %arg1: i32) -> (i32, i32, i32, i32) {
    %c0_i32 = arith.constant 0 : i32
    %c0_i32_0 = arith.constant 0 : i32
    %c0_i32_1 = arith.constant 0 : i32
    %c0_i32_2 = arith.constant 0 : i32
    return %arg0, %c0_i32, %c0_i32_0, %c0_i32_1 : i32, i32, i32, i32
  }
  func.func @transform_1(%arg0: i32, %arg1: i32) -> (i32, i32, i32) {
    %c0_i32 = arith.constant 0 : i32
    %c0_i32_0 = arith.constant 0 : i32
    %c0_i32_1 = arith.constant 0 : i32
    return %arg1, %c0_i32, %c0_i32_0 : i32, i32, i32
  }
  func.func @transform_2(%arg0: i32, %arg1: i32) -> (i32, i32, i32) {
    %c0_i32 = arith.constant 0 : i32
    %c0_i32_0 = arith.constant 0 : i32
    %c0_i32_1 = arith.constant 0 : i32
    return %arg1, %c0_i32, %c0_i32_0 : i32, i32, i32
  }
  func.func @transform_3(%arg0: i32, %arg1: i32) -> (i32, i32, i32) {
    %c0_i32 = arith.constant 0 : i32
    %c0_i32_0 = arith.constant 0 : i32
    %c0_i32_1 = arith.constant 0 : i32
    return %arg1, %c0_i32, %c0_i32_0 : i32, i32, i32
  }
  func.func @transform_4(%arg0: i32, %arg1: i32) -> (i32, i32, i32) {
    %c0_i32 = arith.constant 0 : i32
    %c0_i32_0 = arith.constant 0 : i32
    %c0_i32_1 = arith.constant 0 : i32
    return %arg1, %c0_i32, %c0_i32_0 : i32, i32, i32
  }
  func.func @transform_5(%arg0: i32, %arg1: i32) -> (i32, i32, i32) {
    %c0_i32 = arith.constant 0 : i32
    %c0_i32_0 = arith.constant 0 : i32
    %c0_i32_1 = arith.constant 0 : i32
    return %arg1, %c0_i32, %c0_i32_0 : i32, i32, i32
  }
  func.func @transform_6(%arg0: i32, %arg1: i32) -> (i32, i32, i32) {
    %c0_i32 = arith.constant 0 : i32
    %c0_i32_0 = arith.constant 0 : i32
    %c0_i32_1 = arith.constant 0 : i32
    return %arg1, %c0_i32, %c0_i32_0 : i32, i32, i32
  }
  func.func @transform_7(%arg0: i32, %arg1: i32) -> (i32, i32, i32) {
    %c0_i32 = arith.constant 0 : i32
    %c0_i32_0 = arith.constant 0 : i32
    %c0_i32_1 = arith.constant 0 : i32
    return %arg1, %c0_i32, %c0_i32_0 : i32, i32, i32
  }
  func.func @transform_8(%arg0: i32, %arg1: i32) -> (i32, i32, i32) {
    %c0_i32 = arith.constant 0 : i32
    %c0_i32_0 = arith.constant 0 : i32
    %c0_i32_1 = arith.constant 0 : i32
    return %arg1, %c0_i32, %c0_i32_0 : i32, i32, i32
  }
  func.func @transform_9(%arg0: i32, %arg1: i32) -> (i32, i32, i32, i32) {
    %c0_i32 = arith.constant 0 : i32
    %c0_i32_0 = arith.constant 0 : i32
    %c0_i32_1 = arith.constant 0 : i32
    %c0_i32_2 = arith.constant 0 : i32
    return %arg0, %c0_i32, %c0_i32_0, %c0_i32_1 : i32, i32, i32, i32
  }
}

</mosaic_0001>

<llo_original>
// kernel: tpu_custom_call.1
$region0: #{tpu_custom_call.1}
  #allocation0 [shape = 'u32[]', space=smem, size = 0x4, offset = 0x4, fixed_abs, tag = 'smem constant byte address 0x4 - core index']
  #allocation1 [shape = 'u32[144,128]{1,0:T(1,128)}', space=vmem, size = 0x12000, scoped, tag = 'internal scratch']
  #allocation2 [shape = 'f32[18,18,16]{2,1,0:T(8,128)}', space=vmem, size = 0x36000, scoped, tag = 'scratch operand']
  #allocation3 [shape = 'f32[256,16]{1,0:T(8,128)}', space=vmem, size = 0x20000, scoped, tag = 'scratch operand']
  %s0 = inlined_call_operand.vmem [shape: f32[2,16,16,16], index: 0, kind: input, shape index: {}]
  %s1 = inlined_call_operand.vmem [shape: bf16[3,144,16], index: 1, kind: input, shape index: {}]
  %s2 = inlined_call_operand.vmem [shape: f32[3,1,16], index: 2, kind: input, shape index: {}]
  %s3 = inlined_call_operand.vmem [shape: bf16[3,144,16], index: 3, kind: input, shape index: {}]
  %s4 = inlined_call_operand.vmem [shape: f32[3,1,16], index: 4, kind: input, shape index: {}]
  %s5 = inlined_call_operand.vmem [shape: f32[3,16,4], index: 5, kind: input, shape index: {}]
  %s6 = inlined_call_operand.vmem [shape: f32[3,1,4], index: 6, kind: input, shape index: {}]
  %s7 = inlined_call_operand.vmem [shape: f32[3,4,16], index: 7, kind: input, shape index: {}]
  %s8 = inlined_call_operand.vmem [shape: f32[3,1,16], index: 8, kind: input, shape index: {}]
  %s9 = inlined_call_operand.hbm [shape: f32[2,16,16,16], index: 9, kind: output, shape index: {}]
  %s10 = sld [smem:[#allocation0]]
  $region81: #{tpu_custom_call.1} parent=0
    _
  %s12 = ssub.s32 1, %s10
  %s13 = scalar_select 0, %s12, %s10
  $region1: #{tpu_custom_call.1} parent=0
    #allocation4 [shape = 'u8[262144]{0}', space=vmem, size = 0x40000, scoped, tag = 'output window, operand 0']
    #allocation5 [shape = 's32[2]{0}', space=sflag, size = 0x8, scoped, tag = 'scoped memory for tpu_custom_call.1']
    %14 = vsyncpa [#allocation5], 0
    %s15 = scalar_lea.sflag [#allocation5], 1
    %16 = vsyncpa %s15, 0
    loop: start=0, step=1, limit=8
    $region2: #{tpu_custom_call.1} parent=1 // loop_pre_header
      _
    $region3: #{tpu_custom_call.1} parent=1 // loop_header
      %s18 = sphi 0, %s22
      %p19 = scmp.ge.s32.totalorder %s18, 8
      %s25 = sphi 0, %s37
      %s26 = sphi 0, %s33
      %s27 = sphi 0, %s25
      %s28 = sphi 0, %s26
      %s29 = sphi 0, %s27
      %s30 = sphi 0, %s28
      %s40 = sphi 0, %s42
      %s43 = sphi 0, %s40
      %s44 = sphi 0, %s43
      %s60 = sphi 0, %s44
      %s66 = sphi 0, %s68
      %s69 = sphi 0, %s66
      %s70 = sphi 0, %s69
      %s86 = sphi 0, %s70
      %s92 = sphi 0, %s94
      %s95 = sphi 0, %s92
      %s96 = sphi 0, %s95
      %s112 = sphi 0, %s96
      %s118 = sphi 0, %s120
      %s121 = sphi 0, %s118
      %s122 = sphi 0, %s121
      %s138 = sphi 0, %s122
      %s144 = sphi 0, %s146
      %s147 = sphi 0, %s144
      %s148 = sphi 0, %s147
      %s164 = sphi 0, %s148
      %s170 = sphi 0, %s172
      %s173 = sphi 0, %s170
      %s174 = sphi 0, %s173
      %s190 = sphi 0, %s174
      %s196 = sphi 0, %s198
      %s199 = sphi 0, %s196
      %s200 = sphi 0, %s199
      %s216 = sphi 0, %s200
      %s222 = sphi 0, %s224
      %s225 = sphi 0, %s222
      %s226 = sphi 0, %s225
      %s242 = sphi 0, %s226
      %s248 = sphi 0, %s250
      %s251 = sphi 0, %s248
      %s252 = sphi 0, %s251
      %s268 = sphi 0, %s252
      %s274 = sphi 0, %s276
      %s277 = sphi 0, %s274
      %s278 = sphi 0, %s277
      %s294 = sphi 0, %s278
    $region4: #{tpu_custom_call.1} parent=1 // loop_header_branch
      %21 = sbr.rel (%p19) target = $region8
    $region5: #{tpu_custom_call.1} parent=1 // loop_body
      %s23 = ssub.s32 %s18, 1
      %s24 = ssub.s32 %s18, 2
      %s31 = sadd.s32 1, %s26
      %p32 = scmp.ge.s32.totalorder %s31, 3
      %s33 = scalar_select %p32, 0, %s31
      %s34 = sadd.s32 1, %s25
      %s35 = scalar_select %p32, %s34, %s25
      %p36 = scmp.ge.s32.totalorder %s35, 2
      %s37 = scalar_select %p36, 0, %s35
      %s38 = ssub.s32 %s25, %s37
      %p39 = scmp.eq.s32.totalorder %s38, 0
      %s41 = sadd.s32 %s40, 1
      %s42 = scalar_select %p39, %s40, %s41
      %p45 = pneg %p39
      %p46 = scmp.eq.s32.totalorder %s18, 5
      %p47 = por %p45, %p46
      %p48 = scmp.ne.s32.totalorder %s40, %s43
      %p49 = scmp.eq.s32.totalorder %s18, 0
      %p50 = por %p48, %p49
      %p51 = scmp.ne.s32.totalorder %s40, %s43
      %p52 = scmp.eq.s32.totalorder %s23, 5
      %p53 = por %p51, %p52
      %p54 = scmp.ne.s32.totalorder %s43, %s44
      %p55 = scmp.eq.s32.totalorder %s23, 0
      %p56 = por %p54, %p55
      %p57 = scmp.ne.s32.totalorder %s43, %s44
      %p58 = scmp.eq.s32.totalorder %s24, 5
      %p59 = por %p57, %p58
      %p61 = scmp.ne.s32.totalorder %s44, %s60
      %p62 = scmp.eq.s32.totalorder %s24, 0
      %p63 = por %p61, %p62
      %s64 = ssub.s32 %s26, %s33
      %p65 = scmp.eq.s32.totalorder %s64, 0
      %s67 = sadd.s32 %s66, 1
      %s68 = scalar_select %p65, %s66, %s67
      %p71 = pneg %p65
      %p72 = scmp.eq.s32.totalorder %s18, 5
      %p73 = por %p71, %p72
      %p74 = scmp.ne.s32.totalorder %s66, %s69
      %p75 = scmp.eq.s32.totalorder %s18, 0
      %p76 = por %p74, %p75
      %p77 = scmp.ne.s32.totalorder %s66, %s69
      %p78 = scmp.eq.s32.totalorder %s23, 5
      %p79 = por %p77, %p78
      %p80 = scmp.ne.s32.totalorder %s69, %s70
      %p81 = scmp.eq.s32.totalorder %s23, 0
      %p82 = por %p80, %p81
      %p83 = scmp.ne.s32.totalorder %s69, %s70
      %p84 = scmp.eq.s32.totalorder %s24, 5
      %p85 = por %p83, %p84
      %p87 = scmp.ne.s32.totalorder %s70, %s86
      %p88 = scmp.eq.s32.totalorder %s24, 0
      %p89 = por %p87, %p88
      %s90 = ssub.s32 %s26, %s33
      %p91 = scmp.eq.s32.totalorder %s90, 0
      %s93 = sadd.s32 %s92, 1
      %s94 = scalar_select %p91, %s92, %s93
      %p97 = pneg %p91
      %p98 = scmp.eq.s32.totalorder %s18, 5
      %p99 = por %p97, %p98
      %p100 = scmp.ne.s32.totalorder %s92, %s95
      %p101 = scmp.eq.s32.totalorder %s18, 0
      %p102 = por %p100, %p101
      %p103 = scmp.ne.s32.totalorder %s92, %s95
      %p104 = scmp.eq.s32.totalorder %s23, 5
      %p105 = por %p103, %p104
      %p106 = scmp.ne.s32.totalorder %s95, %s96
      %p107 = scmp.eq.s32.totalorder %s23, 0
      %p108 = por %p106, %p107
      %p109 = scmp.ne.s32.totalorder %s95, %s96
      %p110 = scmp.eq.s32.totalorder %s24, 5
      %p111 = por %p109, %p110
      %p113 = scmp.ne.s32.totalorder %s96, %s112
      %p114 = scmp.eq.s32.totalorder %s24, 0
      %p115 = por %p113, %p114
      %s116 = ssub.s32 %s26, %s33
      %p117 = scmp.eq.s32.totalorder %s116, 0
      %s119 = sadd.s32 %s118, 1
      %s120 = scalar_select %p117, %s118, %s119
      %p123 = pneg %p117
      %p124 = scmp.eq.s32.totalorder %s18, 5
      %p125 = por %p123, %p124
      %p126 = scmp.ne.s32.totalorder %s118, %s121
      %p127 = scmp.eq.s32.totalorder %s18, 0
      %p128 = por %p126, %p127
      %p129 = scmp.ne.s32.totalorder %s118, %s121
      %p130 = scmp.eq.s32.totalorder %s23, 5
      %p131 = por %p129, %p130
      %p132 = scmp.ne.s32.totalorder %s121, %s122
      %p133 = scmp.eq.s32.totalorder %s23, 0
      %p134 = por %p132, %p133
      %p135 = scmp.ne.s32.totalorder %s121, %s122
      %p136 = scmp.eq.s32.totalorder %s24, 5
      %p137 = por %p135, %p136
      %p139 = scmp.ne.s32.totalorder %s122, %s138
      %p140 = scmp.eq.s32.totalorder %s24, 0
      %p141 = por %p139, %p140
      %s142 = ssub.s32 %s26, %s33
      %p143 = scmp.eq.s32.totalorder %s142, 0
      %s145 = sadd.s32 %s144, 1
      %s146 = scalar_select %p143, %s144, %s145
      %p149 = pneg %p143
      %p150 = scmp.eq.s32.totalorder %s18, 5
      %p151 = por %p149, %p150
      %p152 = scmp.ne.s32.totalorder %s144, %s147
      %p153 = scmp.eq.s32.totalorder %s18, 0
      %p154 = por %p152, %p153
      %p155 = scmp.ne.s32.totalorder %s144, %s147
      %p156 = scmp.eq.s32.totalorder %s23, 5
      %p157 = por %p155, %p156
      %p158 = scmp.ne.s32.totalorder %s147, %s148
      %p159 = scmp.eq.s32.totalorder %s23, 0
      %p160 = por %p158, %p159
      %p161 = scmp.ne.s32.totalorder %s147, %s148
      %p162 = scmp.eq.s32.totalorder %s24, 5
      %p163 = por %p161, %p162
      %p165 = scmp.ne.s32.totalorder %s148, %s164
      %p166 = scmp.eq.s32.totalorder %s24, 0
      %p167 = por %p165, %p166
      %s168 = ssub.s32 %s26, %s33
      %p169 = scmp.eq.s32.totalorder %s168, 0
      %s171 = sadd.s32 %s170, 1
      %s172 = scalar_select %p169, %s170, %s171
      %p175 = pneg %p169
      %p176 = scmp.eq.s32.totalorder %s18, 5
      %p177 = por %p175, %p176
      %p178 = scmp.ne.s32.totalorder %s170, %s173
      %p179 = scmp.eq.s32.totalorder %s18, 0
      %p180 = por %p178, %p179
      %p181 = scmp.ne.s32.totalorder %s170, %s173
      %p182 = scmp.eq.s32.totalorder %s23, 5
      %p183 = por %p181, %p182
      %p184 = scmp.ne.s32.totalorder %s173, %s174
      %p185 = scmp.eq.s32.totalorder %s23, 0
      %p186 = por %p184, %p185
      %p187 = scmp.ne.s32.totalorder %s173, %s174
      %p188 = scmp.eq.s32.totalorder %s24, 5
      %p189 = por %p187, %p188
      %p191 = scmp.ne.s32.totalorder %s174, %s190
      %p192 = scmp.eq.s32.totalorder %s24, 0
      %p193 = por %p191, %p192
      %s194 = ssub.s32 %s26, %s33
      %p195 = scmp.eq.s32.totalorder %s194, 0
      %s197 = sadd.s32 %s196, 1
      %s198 = scalar_select %p195, %s196, %s197
      %p201 = pneg %p195
      %p202 = scmp.eq.s32.totalorder %s18, 5
      %p203 = por %p201, %p202
      %p204 = scmp.ne.s32.totalorder %s196, %s199
      %p205 = scmp.eq.s32.totalorder %s18, 0
      %p206 = por %p204, %p205
      %p207 = scmp.ne.s32.totalorder %s196, %s199
      %p208 = scmp.eq.s32.totalorder %s23, 5
      %p209 = por %p207, %p208
      %p210 = scmp.ne.s32.totalorder %s199, %s200
      %p211 = scmp.eq.s32.totalorder %s23, 0
      %p212 = por %p210, %p211
      %p213 = scmp.ne.s32.totalorder %s199, %s200
      %p214 = scmp.eq.s32.totalorder %s24, 5
      %p215 = por %p213, %p214
      %p217 = scmp.ne.s32.totalorder %s200, %s216
      %p218 = scmp.eq.s32.totalorder %s24, 0
      %p219 = por %p217, %p218
      %s220 = ssub.s32 %s26, %s33
      %p221 = scmp.eq.s32.totalorder %s220, 0
      %s223 = sadd.s32 %s222, 1
      %s224 = scalar_select %p221, %s222, %s223
      %p227 = pneg %p221
      %p228 = scmp.eq.s32.totalorder %s18, 5
      %p229 = por %p227, %p228
      %p230 = scmp.ne.s32.totalorder %s222, %s225
      %p231 = scmp.eq.s32.totalorder %s18, 0
      %p232 = por %p230, %p231
      %p233 = scmp.ne.s32.totalorder %s222, %s225
      %p234 = scmp.eq.s32.totalorder %s23, 5
      %p235 = por %p233, %p234
      %p236 = scmp.ne.s32.totalorder %s225, %s226
      %p237 = scmp.eq.s32.totalorder %s23, 0
      %p238 = por %p236, %p237
      %p239 = scmp.ne.s32.totalorder %s225, %s226
      %p240 = scmp.eq.s32.totalorder %s24, 5
      %p241 = por %p239, %p240
      %p243 = scmp.ne.s32.totalorder %s226, %s242
      %p244 = scmp.eq.s32.totalorder %s24, 0
      %p245 = por %p243, %p244
      %s246 = ssub.s32 %s26, %s33
      %p247 = scmp.eq.s32.totalorder %s246, 0
      %s249 = sadd.s32 %s248, 1
      %s250 = scalar_select %p247, %s248, %s249
      %p253 = pneg %p247
      %p254 = scmp.eq.s32.totalorder %s18, 5
      %p255 = por %p253, %p254
      %p256 = scmp.ne.s32.totalorder %s248, %s251
      %p257 = scmp.eq.s32.totalorder %s18, 0
      %p258 = por %p256, %p257
      %p259 = scmp.ne.s32.totalorder %s248, %s251
      %p260 = scmp.eq.s32.totalorder %s23, 5
      %p261 = por %p259, %p260
      %p262 = scmp.ne.s32.totalorder %s251, %s252
      %p263 = scmp.eq.s32.totalorder %s23, 0
      %p264 = por %p262, %p263
      %p265 = scmp.ne.s32.totalorder %s251, %s252
      %p266 = scmp.eq.s32.totalorder %s24, 5
      %p267 = por %p265, %p266
      %p269 = scmp.ne.s32.totalorder %s252, %s268
      %p270 = scmp.eq.s32.totalorder %s24, 0
      %p271 = por %p269, %p270
      %s272 = ssub.s32 %s25, %s37
      %p273 = scmp.eq.s32.totalorder %s272, 0
      %s275 = sadd.s32 %s274, 1
      %s276 = scalar_select %p273, %s274, %s275
      %p279 = pneg %p273
      %p280 = scmp.eq.s32.totalorder %s18, 5
      %p281 = por %p279, %p280
      %p282 = scmp.ne.s32.totalorder %s274, %s277
      %p283 = scmp.eq.s32.totalorder %s18, 0
      %p284 = por %p282, %p283
      %p285 = scmp.ne.s32.totalorder %s274, %s277
      %p286 = scmp.eq.s32.totalorder %s23, 5
      %p287 = por %p285, %p286
      %p288 = scmp.ne.s32.totalorder %s277, %s278
      %p289 = scmp.eq.s32.totalorder %s23, 0
      %p290 = por %p288, %p289
      %p291 = scmp.ne.s32.totalorder %s277, %s278
      %p292 = scmp.eq.s32.totalorder %s24, 5
      %p293 = por %p291, %p292
      %p295 = scmp.ne.s32.totalorder %s278, %s294
      %p296 = scmp.eq.s32.totalorder %s24, 0
      %p297 = por %p295, %p296
      %p298 = scmp.le.s32.totalorder 1, %s18
      %p299 = scmp.lt.s32.totalorder %s18, 7
      %p300 = pnand %p298, %p299
      %p301 = pneg %p300
      // Predicated region
      $region9: #{tpu_custom_call.1} parent=5 // pred_check
        _
      $region10: #{tpu_custom_call.1} parent=5 // pred_check_branch
        %303 = sbr.rel (%p300) target = $region12
      $region11: #{tpu_custom_call.1} parent=5 // pred_region
        %s304 = ssub.s32 %s18, 1
      $region12: #{tpu_custom_call.1} parent=5 // pred_fallthru
        _
      %p305 = scmp.lt.s32.totalorder %s18, 6
      // Predicated region
      $region13: #{tpu_custom_call.1} parent=5 // pred_check
        %p306 = pneg %p305
      $region14: #{tpu_custom_call.1} parent=5 // pred_check_branch
        %308 = sbr.rel (%p306) target = $region16
      $region15: #{tpu_custom_call.1} parent=5 // pred_region
        // Predicated region
        $region17: #{tpu_custom_call.1} parent=15 // pred_check
          %p309 = pneg %p50
        $region18: #{tpu_custom_call.1} parent=15 // pred_check_branch
          %311 = sbr.rel (%p309) target = $region20
        $region19: #{tpu_custom_call.1} parent=15 // pred_region
          %p312 = scmp.lt.s32.totalorder %s25, 1
          %s313 = scalar_select %p312, %s25, 1
          %s314 = smul.addr %s313, 32
          %s315 = smul.addr %s314, 8
          %s316 = scalar_lea.vmem %s0, %s315
        $region20: #{tpu_custom_call.1} parent=15 // pred_fallthru
          _
        // Predicated region
        $region21: #{tpu_custom_call.1} parent=15 // pred_check
          %p317 = pneg %p76
        $region22: #{tpu_custom_call.1} parent=15 // pred_check_branch
          %319 = sbr.rel (%p317) target = $region24
        $region23: #{tpu_custom_call.1} parent=15 // pred_region
          %p320 = scmp.lt.s32.totalorder %s26, 2
          %s321 = scalar_select %p320, %s26, 2
          %s322 = smul.addr %s321, 18
          %s323 = smul.addr %s322, 4
          %s324 = scalar_lea.vmem %s1, %s323
        $region24: #{tpu_custom_call.1} parent=15 // pred_fallthru
          _
        // Predicated region
        $region25: #{tpu_custom_call.1} parent=15 // pred_check
          %p325 = pneg %p102
        $region26: #{tpu_custom_call.1} parent=15 // pred_check_branch
          %327 = sbr.rel (%p325) target = $region28
        $region27: #{tpu_custom_call.1} parent=15 // pred_region
          %p328 = scmp.lt.s32.totalorder %s26, 2
          %s329 = scalar_select %p328, %s26, 2
          %s330 = scalar_lea.vmem %s2, %s329
        $region28: #{tpu_custom_call.1} parent=15 // pred_fallthru
          _
        // Predicated region
        $region29: #{tpu_custom_call.1} parent=15 // pred_check
          %p331 = pneg %p128
        $region30: #{tpu_custom_call.1} parent=15 // pred_check_branch
          %333 = sbr.rel (%p331) target = $region32
        $region31: #{tpu_custom_call.1} parent=15 // pred_region
          %p334 = scmp.lt.s32.totalorder %s26, 2
          %s335 = scalar_select %p334, %s26, 2
          %s336 = smul.addr %s335, 18
          %s337 = smul.addr %s336, 4
          %s338 = scalar_lea.vmem %s3, %s337
        $region32: #{tpu_custom_call.1} parent=15 // pred_fallthru
          _
        // Predicated region
        $region33: #{tpu_custom_call.1} parent=15 // pred_check
          %p339 = pneg %p154
        $region34: #{tpu_custom_call.1} parent=15 // pred_check_branch
          %341 = sbr.rel (%p339) target = $region36
        $region35: #{tpu_custom_call.1} parent=15 // pred_region
          %p342 = scmp.lt.s32.totalorder %s26, 2
          %s343 = scalar_select %p342, %s26, 2
          %s344 = scalar_lea.vmem %s4, %s343
        $region36: #{tpu_custom_call.1} parent=15 // pred_fallthru
          _
        // Predicated region
        $region37: #{tpu_custom_call.1} parent=15 // pred_check
          %p345 = pneg %p180
        $region38: #{tpu_custom_call.1} parent=15 // pred_check_branch
          %347 = sbr.rel (%p345) target = $region40
        $region39: #{tpu_custom_call.1} parent=15 // pred_region
          %p348 = scmp.lt.s32.totalorder %s26, 2
          %s349 = scalar_select %p348, %s26, 2
          %s350 = smul.addr %s349, 2
          %s351 = smul.addr %s350, 8
          %s352 = scalar_lea.vmem %s5, %s351
        $region40: #{tpu_custom_call.1} parent=15 // pred_fallthru
          _
        // Predicated region
        $region41: #{tpu_custom_call.1} parent=15 // pred_check
          %p353 = pneg %p206
        $region42: #{tpu_custom_call.1} parent=15 // pred_check_branch
          %355 = sbr.rel (%p353) target = $region44
        $region43: #{tpu_custom_call.1} parent=15 // pred_region
          %p356 = scmp.lt.s32.totalorder %s26, 2
          %s357 = scalar_select %p356, %s26, 2
          %s358 = scalar_lea.vmem %s6, %s357
        $region44: #{tpu_custom_call.1} parent=15 // pred_fallthru
          _
        // Predicated region
        $region45: #{tpu_custom_call.1} parent=15 // pred_check
          %p359 = pneg %p232
        $region46: #{tpu_custom_call.1} parent=15 // pred_check_branch
          %361 = sbr.rel (%p359) target = $region48
        $region47: #{tpu_custom_call.1} parent=15 // pred_region
          %p362 = scmp.lt.s32.totalorder %s26, 2
          %s363 = scalar_select %p362, %s26, 2
          %s364 = smul.addr %s363, 4
          %s365 = scalar_lea.vmem %s7, %s364
        $region48: #{tpu_custom_call.1} parent=15 // pred_fallthru
          _
        // Predicated region
        $region49: #{tpu_custom_call.1} parent=15 // pred_check
          %p366 = pneg %p258
        $region50: #{tpu_custom_call.1} parent=15 // pred_check_branch
          %368 = sbr.rel (%p366) target = $region52
        $region51: #{tpu_custom_call.1} parent=15 // pred_region
          %p369 = scmp.lt.s32.totalorder %s26, 2
          %s370 = scalar_select %p369, %s26, 2
          %s371 = scalar_lea.vmem %s8, %s370
        $region52: #{tpu_custom_call.1} parent=15 // pred_fallthru
          _
      $region16: #{tpu_custom_call.1} parent=5 // pred_fallthru
        _
      %p372 = scmp.le.s32.totalorder 1, %s18
      %p373 = scmp.lt.s32.totalorder %s18, 7
      %p374 = pnand %p372, %p373
      %p375 = pneg %p374
      // Predicated region
      $region53: #{tpu_custom_call.1} parent=5 // pred_check
        _
      $region54: #{tpu_custom_call.1} parent=5 // pred_check_branch
        %377 = sbr.rel (%p374) target = $region56
      $region55: #{tpu_custom_call.1} parent=5 // pred_region
        %s378 = ssub.s32 %s18, 1
        %p379 = scmp.lt.s32.totalorder %s27, 1
        %s380 = scalar_select %p379, %s27, 1
        %s381 = smul.addr %s380, 32
        %s382 = smul.addr %s381, 8
        %s383 = scalar_lea.vmem %s0, %s382
        %p384 = pneg %p56
        %p385 = pneg %p53
        %p386 = scmp.lt.s32.totalorder %s28, 2
        %s387 = scalar_select %p386, %s28, 2
        %s388 = smul.addr %s387, 18
        %s389 = smul.addr %s388, 4
        %s390 = scalar_lea.vmem %s1, %s389
        %p391 = pneg %p82
        %p392 = pneg %p79
        %p393 = scmp.lt.s32.totalorder %s28, 2
        %s394 = scalar_select %p393, %s28, 2
        %s395 = scalar_lea.vmem %s2, %s394
        %p396 = pneg %p108
        %p397 = pneg %p105
        %p398 = scmp.lt.s32.totalorder %s28, 2
        %s399 = scalar_select %p398, %s28, 2
        %s400 = smul.addr %s399, 18
        %s401 = smul.addr %s400, 4
        %s402 = scalar_lea.vmem %s3, %s401
        %p403 = pneg %p134
        %p404 = pneg %p131
        %p405 = scmp.lt.s32.totalorder %s28, 2
        %s406 = scalar_select %p405, %s28, 2
        %s407 = scalar_lea.vmem %s4, %s406
        %p408 = pneg %p160
        %p409 = pneg %p157
        %p410 = scmp.lt.s32.totalorder %s28, 2
        %s411 = scalar_select %p410, %s28, 2
        %s412 = smul.addr %s411, 2
        %s413 = smul.addr %s412, 8
        %s414 = scalar_lea.vmem %s5, %s413
        %p415 = pneg %p186
        %p416 = pneg %p183
        %p417 = scmp.lt.s32.totalorder %s28, 2
        %s418 = scalar_select %p417, %s28, 2
        %s419 = scalar_lea.vmem %s6, %s418
        %p420 = pneg %p212
        %p421 = pneg %p209
        %p422 = scmp.lt.s32.totalorder %s28, 2
        %s423 = scalar_select %p422, %s28, 2
        %s424 = smul.addr %s423, 4
        %s425 = scalar_lea.vmem %s7, %s424
        %p426 = pneg %p238
        %p427 = pneg %p235
        %p428 = scmp.lt.s32.totalorder %s28, 2
        %s429 = scalar_select %p428, %s28, 2
        %s430 = scalar_lea.vmem %s8, %s429
        %p431 = pneg %p264
        %p432 = pneg %p261
        %p433 = pneg %p290
        %p434 = pneg %p287
        %s435 = sand.u32 %s277, 1
        %s436 = scalar_lea.sflag [#allocation5], %s435
        %s437 = sand.u32 %s277, 1
        %s438 = smul.addr %s437, 256
        %s439 = scalar_lea.vmem [#allocation4], %s438
        %p440 = scmp.lt.s32.totalorder %s27, 1
        %s441 = scalar_select %p440, %s27, 1
        %s442 = smul.addr %s441, 32
        %s443 = smul.addr %s442, 8
        %s444 = scalar_lea.vmem %s0, %s443
        %p445 = scmp.lt.s32.totalorder %s28, 2
        %s446 = scalar_select %p445, %s28, 2
        %s447 = smul.addr %s446, 18
        %s448 = smul.addr %s447, 4
        %s449 = scalar_lea.vmem %s1, %s448
        %p450 = scmp.lt.s32.totalorder %s28, 2
        %s451 = scalar_select %p450, %s28, 2
        %s452 = scalar_lea.vmem %s2, %s451
        %p453 = scmp.lt.s32.totalorder %s28, 2
        %s454 = scalar_select %p453, %s28, 2
        %s455 = smul.addr %s454, 18
        %s456 = smul.addr %s455, 4
        %s457 = scalar_lea.vmem %s3, %s456
        %p458 = scmp.lt.s32.totalorder %s28, 2
        %s459 = scalar_select %p458, %s28, 2
        %s460 = scalar_lea.vmem %s4, %s459
        %p461 = scmp.lt.s32.totalorder %s28, 2
        %s462 = scalar_select %p461, %s28, 2
        %s463 = smul.addr %s462, 2
        %s464 = smul.addr %s463, 8
        %s465 = scalar_lea.vmem %s5, %s464
        %p466 = scmp.lt.s32.totalorder %s28, 2
        %s467 = scalar_select %p466, %s28, 2
        %s468 = scalar_lea.vmem %s6, %s467
        %p469 = scmp.lt.s32.totalorder %s28, 2
        %s470 = scalar_select %p469, %s28, 2
        %s471 = smul.addr %s470, 4
        %s472 = scalar_lea.vmem %s7, %s471
        %p473 = scmp.lt.s32.totalorder %s28, 2
        %s474 = scalar_select %p473, %s28, 2
        %s475 = scalar_lea.vmem %s8, %s474
        %p477 = scmp.eq.s32.totalorder %s28, 0
        // Predicated region
        $region57: #{tpu_custom_call.1} parent=55 // pred_check
          %p478 = pneg %p477
        $region58: #{tpu_custom_call.1} parent=55 // pred_check_branch
          %480 = sbr.rel (%p478) target = $region60
        $region59: #{tpu_custom_call.1} parent=55 // pred_region
          %vm481 = vcmask 130048
          %482 = vst.msk [vmem:[#allocation2] sm:$0xff] %vm481, 0.0
          %483 = vst.msk [vmem:[#allocation2 + $0x8] sm:$0xff] %vm481, 0.0
          %vm484 = vcmask 123904
          %485 = vst.msk [vmem:[#allocation2 + $0x10] sm:$0x3] %vm484, 0.0
          %486 = vst.msk [vmem:[#allocation2 + $0x18] sm:$0xff] %vm481, 0.0
          %487 = vst.msk [vmem:[#allocation2 + $0x20] sm:$0xff] %vm481, 0.0
          %488 = vst.msk [vmem:[#allocation2 + $0x28] sm:$0x3] %vm484, 0.0
          %489 = vst.msk [vmem:[#allocation2 + $0x30] sm:$0xff] %vm481, 0.0
          %490 = vst.msk [vmem:[#allocation2 + $0x38] sm:$0xff] %vm481, 0.0
          %491 = vst.msk [vmem:[#allocation2 + $0x40] sm:$0x3] %vm484, 0.0
          %492 = vst.msk [vmem:[#allocation2 + $0x48] sm:$0xff] %vm481, 0.0
          %493 = vst.msk [vmem:[#allocation2 + $0x50] sm:$0xff] %vm481, 0.0
          %494 = vst.msk [vmem:[#allocation2 + $0x58] sm:$0x3] %vm484, 0.0
          %495 = vst.msk [vmem:[#allocation2 + $0x60] sm:$0xff] %vm481, 0.0
          %496 = vst.msk [vmem:[#allocation2 + $0x68] sm:$0xff] %vm481, 0.0
          %497 = vst.msk [vmem:[#allocation2 + $0x70] sm:$0x3] %vm484, 0.0
          %498 = vst.msk [vmem:[#allocation2 + $0x78] sm:$0xff] %vm481, 0.0
          %499 = vst.msk [vmem:[#allocation2 + $0x80] sm:$0xff] %vm481, 0.0
          %500 = vst.msk [vmem:[#allocation2 + $0x88] sm:$0x3] %vm484, 0.0
          %501 = vst.msk [vmem:[#allocation2 + $0x90] sm:$0xff] %vm481, 0.0
          %502 = vst.msk [vmem:[#allocation2 + $0x98] sm:$0xff] %vm481, 0.0
          %503 = vst.msk [vmem:[#allocation2 + $0xa0] sm:$0x3] %vm484, 0.0
          %504 = vst.msk [vmem:[#allocation2 + $0xa8] sm:$0xff] %vm481, 0.0
          %505 = vst.msk [vmem:[#allocation2 + $0xb0] sm:$0xff] %vm481, 0.0
          %506 = vst.msk [vmem:[#allocation2 + $0xb8] sm:$0x3] %vm484, 0.0
          %507 = vst.msk [vmem:[#allocation2 + $0xc0] sm:$0xff] %vm481, 0.0
          %508 = vst.msk [vmem:[#allocation2 + $0xc8] sm:$0xff] %vm481, 0.0
          %509 = vst.msk [vmem:[#allocation2 + $0xd0] sm:$0x3] %vm484, 0.0
          %510 = vst.msk [vmem:[#allocation2 + $0xd8] sm:$0xff] %vm481, 0.0
          %511 = vst.msk [vmem:[#allocation2 + $0xe0] sm:$0xff] %vm481, 0.0
          %512 = vst.msk [vmem:[#allocation2 + $0xe8] sm:$0x3] %vm484, 0.0
          %513 = vst.msk [vmem:[#allocation2 + $0xf0] sm:$0xff] %vm481, 0.0
          %514 = vst.msk [vmem:[#allocation2 + $0xf8] sm:$0xff] %vm481, 0.0
          %515 = vst.msk [vmem:[#allocation2 + $0x100] sm:$0x3] %vm484, 0.0
          %516 = vst.msk [vmem:[#allocation2 + $0x108] sm:$0xff] %vm481, 0.0
          %517 = vst.msk [vmem:[#allocation2 + $0x110] sm:$0xff] %vm481, 0.0
          %518 = vst.msk [vmem:[#allocation2 + $0x118] sm:$0x3] %vm484, 0.0
          %519 = vst.msk [vmem:[#allocation2 + $0x120] sm:$0xff] %vm481, 0.0
          %520 = vst.msk [vmem:[#allocation2 + $0x128] sm:$0xff] %vm481, 0.0
          %521 = vst.msk [vmem:[#allocation2 + $0x130] sm:$0x3] %vm484, 0.0
          %522 = vst.msk [vmem:[#allocation2 + $0x138] sm:$0xff] %vm481, 0.0
          %523 = vst.msk [vmem:[#allocation2 + $0x140] sm:$0xff] %vm481, 0.0
          %524 = vst.msk [vmem:[#allocation2 + $0x148] sm:$0x3] %vm484, 0.0
          %525 = vst.msk [vmem:[#allocation2 + $0x150] sm:$0xff] %vm481, 0.0
          %526 = vst.msk [vmem:[#allocation2 + $0x158] sm:$0xff] %vm481, 0.0
          %527 = vst.msk [vmem:[#allocation2 + $0x160] sm:$0x3] %vm484, 0.0
          %528 = vst.msk [vmem:[#allocation2 + $0x168] sm:$0xff] %vm481, 0.0
          %529 = vst.msk [vmem:[#allocation2 + $0x170] sm:$0xff] %vm481, 0.0
          %530 = vst.msk [vmem:[#allocation2 + $0x178] sm:$0x3] %vm484, 0.0
          %531 = vst.msk [vmem:[#allocation2 + $0x180] sm:$0xff] %vm481, 0.0
          %532 = vst.msk [vmem:[#allocation2 + $0x188] sm:$0xff] %vm481, 0.0
          %533 = vst.msk [vmem:[#allocation2 + $0x190] sm:$0x3] %vm484, 0.0
          %534 = vst.msk [vmem:[#allocation2 + $0x198] sm:$0xff] %vm481, 0.0
          %535 = vst.msk [vmem:[#allocation2 + $0x1a0] sm:$0xff] %vm481, 0.0
          %536 = vst.msk [vmem:[#allocation2 + $0x1a8] sm:$0x3] %vm484, 0.0
          %v537 = vld [vmem:[%s444] sm:$0xff]
          %v538 = vld [vmem:[%s444 + $0x8] sm:$0xff]
          %v539 = vld [vmem:[%s444 + $0x10] sm:$0xff]
          %v540 = vld [vmem:[%s444 + $0x18] sm:$0xff]
          %v541 = vld [vmem:[%s444 + $0x20] sm:$0xff]
          %v542 = vld [vmem:[%s444 + $0x28] sm:$0xff]
          %v543 = vld [vmem:[%s444 + $0x30] sm:$0xff]
          %v544 = vld [vmem:[%s444 + $0x38] sm:$0xff]
          %v545 = vld [vmem:[%s444 + $0x40] sm:$0xff]
          %v546 = vld [vmem:[%s444 + $0x48] sm:$0xff]
          %v547 = vld [vmem:[%s444 + $0x50] sm:$0xff]
          %v548 = vld [vmem:[%s444 + $0x58] sm:$0xff]
          %v549 = vld [vmem:[%s444 + $0x60] sm:$0xff]
          %v550 = vld [vmem:[%s444 + $0x68] sm:$0xff]
          %v551 = vld [vmem:[%s444 + $0x70] sm:$0xff]
          %v552 = vld [vmem:[%s444 + $0x78] sm:$0xff]
          %v553 = vld [vmem:[%s444 + $0x80] sm:$0xff]
          %v554 = vld [vmem:[%s444 + $0x88] sm:$0xff]
          %v555 = vld [vmem:[%s444 + $0x90] sm:$0xff]
          %v556 = vld [vmem:[%s444 + $0x98] sm:$0xff]
          %v557 = vld [vmem:[%s444 + $0xa0] sm:$0xff]
          %v558 = vld [vmem:[%s444 + $0xa8] sm:$0xff]
          %v559 = vld [vmem:[%s444 + $0xb0] sm:$0xff]
          %v560 = vld [vmem:[%s444 + $0xb8] sm:$0xff]
          %v561 = vld [vmem:[%s444 + $0xc0] sm:$0xff]
          %v562 = vld [vmem:[%s444 + $0xc8] sm:$0xff]
          %v563 = vld [vmem:[%s444 + $0xd0] sm:$0xff]
          %v564 = vld [vmem:[%s444 + $0xd8] sm:$0xff]
          %v565 = vld [vmem:[%s444 + $0xe0] sm:$0xff]
          %v566 = vld [vmem:[%s444 + $0xe8] sm:$0xff]
          %v567 = vld [vmem:[%s444 + $0xf0] sm:$0xff]
          %v568 = vld [vmem:[%s444 + $0xf8] sm:$0xff]
          %569 = vst.msk [vmem:[#allocation3] sm:$0xff] %vm481, %v537
          %570 = vst.msk [vmem:[#allocation3 + $0x8] sm:$0xff] %vm481, %v538
          %571 = vst.msk [vmem:[#allocation3 + $0x10] sm:$0xff] %vm481, %v539
          %572 = vst.msk [vmem:[#allocation3 + $0x18] sm:$0xff] %vm481, %v540
          %573 = vst.msk [vmem:[#allocation3 + $0x20] sm:$0xff] %vm481, %v541
          %574 = vst.msk [vmem:[#allocation3 + $0x28] sm:$0xff] %vm481, %v542
          %575 = vst.msk [vmem:[#allocation3 + $0x30] sm:$0xff] %vm481, %v543
          %576 = vst.msk [vmem:[#allocation3 + $0x38] sm:$0xff] %vm481, %v544
          %577 = vst.msk [vmem:[#allocation3 + $0x40] sm:$0xff] %vm481, %v545
          %578 = vst.msk [vmem:[#allocation3 + $0x48] sm:$0xff] %vm481, %v546
          %579 = vst.msk [vmem:[#allocation3 + $0x50] sm:$0xff] %vm481, %v547
          %580 = vst.msk [vmem:[#allocation3 + $0x58] sm:$0xff] %vm481, %v548
          %581 = vst.msk [vmem:[#allocation3 + $0x60] sm:$0xff] %vm481, %v549
          %582 = vst.msk [vmem:[#allocation3 + $0x68] sm:$0xff] %vm481, %v550
          %583 = vst.msk [vmem:[#allocation3 + $0x70] sm:$0xff] %vm481, %v551
          %584 = vst.msk [vmem:[#allocation3 + $0x78] sm:$0xff] %vm481, %v552
          %585 = vst.msk [vmem:[#allocation3 + $0x80] sm:$0xff] %vm481, %v553
          %586 = vst.msk [vmem:[#allocation3 + $0x88] sm:$0xff] %vm481, %v554
          %587 = vst.msk [vmem:[#allocation3 + $0x90] sm:$0xff] %vm481, %v555
          %588 = vst.msk [vmem:[#allocation3 + $0x98] sm:$0xff] %vm481, %v556
          %589 = vst.msk [vmem:[#allocation3 + $0xa0] sm:$0xff] %vm481, %v557
          %590 = vst.msk [vmem:[#allocation3 + $0xa8] sm:$0xff] %vm481, %v558
          %591 = vst.msk [vmem:[#allocation3 + $0xb0] sm:$0xff] %vm481, %v559
          %592 = vst.msk [vmem:[#allocation3 + $0xb8] sm:$0xff] %vm481, %v560
          %593 = vst.msk [vmem:[#allocation3 + $0xc0] sm:$0xff] %vm481, %v561
          %594 = vst.msk [vmem:[#allocation3 + $0xc8] sm:$0xff] %vm481, %v562
          %595 = vst.msk [vmem:[#allocation3 + $0xd0] sm:$0xff] %vm481, %v563
          %596 = vst.msk [vmem:[#allocation3 + $0xd8] sm:$0xff] %vm481, %v564
          %597 = vst.msk [vmem:[#allocation3 + $0xe0] sm:$0xff] %vm481, %v565
          %598 = vst.msk [vmem:[#allocation3 + $0xe8] sm:$0xff] %vm481, %v566
          %599 = vst.msk [vmem:[#allocation3 + $0xf0] sm:$0xff] %vm481, %v567
          %600 = vst.msk [vmem:[#allocation3 + $0xf8] sm:$0xff] %vm481, %v568
        $region60: #{tpu_custom_call.1} parent=55 // pred_fallthru
          _
        %p601 = scmp.lt.s32.totalorder %s28, 2
        // Predicated region
        $region61: #{tpu_custom_call.1} parent=55 // pred_check
          %p602 = pneg %p601
        $region62: #{tpu_custom_call.1} parent=55 // pred_check_branch
          %604 = sbr.rel (%p602) target = $region64
        $region63: #{tpu_custom_call.1} parent=55 // pred_region
          %v605 = vld [vmem:[#allocation3] sm:$0xff]
          %v606 = vld [vmem:[#allocation3 + $0x8] sm:$0xff]
          %v607 = vld [vmem:[#allocation3 + $0x10] sm:$0xff]
          %v608 = vld [vmem:[#allocation3 + $0x18] sm:$0xff]
          %v609 = vld [vmem:[#allocation3 + $0x20] sm:$0xff]
          %v610 = vld [vmem:[#allocation3 + $0x28] sm:$0xff]
          %v611 = vld [vmem:[#allocation3 + $0x30] sm:$0xff]
          %v612 = vld [vmem:[#allocation3 + $0x38] sm:$0xff]
          %v613 = vld [vmem:[#allocation3 + $0x40] sm:$0xff]
          %v614 = vld [vmem:[#allocation3 + $0x48] sm:$0xff]
          %v615 = vld [vmem:[#allocation3 + $0x50] sm:$0xff]
          %v616 = vld [vmem:[#allocation3 + $0x58] sm:$0xff]
          %v617 = vld [vmem:[#allocation3 + $0x60] sm:$0xff]
          %v618 = vld [vmem:[#allocation3 + $0x68] sm:$0xff]
          %v619 = vld [vmem:[#allocation3 + $0x70] sm:$0xff]
          %v620 = vld [vmem:[#allocation3 + $0x78] sm:$0xff]
          %v621 = vld [vmem:[#allocation3 + $0x80] sm:$0xff]
          %v622 = vld [vmem:[#allocation3 + $0x88] sm:$0xff]
          %v623 = vld [vmem:[#allocation3 + $0x90] sm:$0xff]
          %v624 = vld [vmem:[#allocation3 + $0x98] sm:$0xff]
          %v625 = vld [vmem:[#allocation3 + $0xa0] sm:$0xff]
          %v626 = vld [vmem:[#allocation3 + $0xa8] sm:$0xff]
          %v627 = vld [vmem:[#allocation3 + $0xb0] sm:$0xff]
          %v628 = vld [vmem:[#allocation3 + $0xb8] sm:$0xff]
          %v629 = vld [vmem:[#allocation3 + $0xc0] sm:$0xff]
          %v630 = vld [vmem:[#allocation3 + $0xc8] sm:$0xff]
          %v631 = vld [vmem:[#allocation3 + $0xd0] sm:$0xff]
          %v632 = vld [vmem:[#allocation3 + $0xd8] sm:$0xff]
          %v633 = vld [vmem:[#allocation3 + $0xe0] sm:$0xff]
          %v634 = vld [vmem:[#allocation3 + $0xe8] sm:$0xff]
          %v635 = vld [vmem:[#allocation3 + $0xf0] sm:$0xff]
          %v636 = vld [vmem:[#allocation3 + $0xf8] sm:$0xff]
          %v637 = vld [vmem:[%s449] sm:$0xf]
          %v638 = vld [vmem:[%s449 + $0x4] sm:$0xf]
          %v639 = vld [vmem:[%s449 + $0x8] sm:$0xf]
          %v640 = vld [vmem:[%s449 + $0xc] sm:$0xf]
          %v641 = vld [vmem:[%s449 + $0x10] sm:$0xf]
          %v642 = vld [vmem:[%s449 + $0x14] sm:$0xf]
          %v643 = vld [vmem:[%s449 + $0x18] sm:$0xf]
          %v644 = vld [vmem:[%s449 + $0x1c] sm:$0xf]
          %v645 = vld [vmem:[%s449 + $0x20] sm:$0xf]
          %v646 = vld [vmem:[%s449 + $0x24] sm:$0xf]
          %v647 = vld [vmem:[%s449 + $0x28] sm:$0xf]
          %v648 = vld [vmem:[%s449 + $0x2c] sm:$0xf]
          %v649 = vld [vmem:[%s449 + $0x30] sm:$0xf]
          %v650 = vld [vmem:[%s449 + $0x34] sm:$0xf]
          %v651 = vld [vmem:[%s449 + $0x38] sm:$0xf]
          %v652 = vld [vmem:[%s449 + $0x3c] sm:$0xf]
          %v653 = vld [vmem:[%s449 + $0x40] sm:$0xf]
          %v654 = vld [vmem:[%s449 + $0x44] sm:$0xf]
          %v655 = vld [vmem:[%s452] sm:$0x1]
          %s656 = scalar_lea.vmem [#allocation2], 24
          %vm657 = vcmask 130048
          %658 = vst.msk [vmem:[%s656 + $0x1] sm:$0xff] %vm657, %v605
          %659 = vst.msk [vmem:[%s656 + $0x9] sm:$0xff] %vm657, %v606
          %660 = vst.msk [vmem:[%s656 + $0x19] sm:$0xff] %vm657, %v607
          %661 = vst.msk [vmem:[%s656 + $0x21] sm:$0xff] %vm657, %v608
          %662 = vst.msk [vmem:[%s656 + $0x31] sm:$0xff] %vm657, %v609
          %663 = vst.msk [vmem:[%s656 + $0x39] sm:$0xff] %vm657, %v610
          %664 = vst.msk [vmem:[%s656 + $0x49] sm:$0xff] %vm657, %v611
          %665 = vst.msk [vmem:[%s656 + $0x51] sm:$0xff] %vm657, %v612
          %666 = vst.msk [vmem:[%s656 + $0x61] sm:$0xff] %vm657, %v613
          %667 = vst.msk [vmem:[%s656 + $0x69] sm:$0xff] %vm657, %v614
          %668 = vst.msk [vmem:[%s656 + $0x79] sm:$0xff] %vm657, %v615
          %669 = vst.msk [vmem:[%s656 + $0x81] sm:$0xff] %vm657, %v616
          %670 = vst.msk [vmem:[%s656 + $0x91] sm:$0xff] %vm657, %v617
          %671 = vst.msk [vmem:[%s656 + $0x99] sm:$0xff] %vm657, %v618
          %672 = vst.msk [vmem:[%s656 + $0xa9] sm:$0xff] %vm657, %v619
          %673 = vst.msk [vmem:[%s656 + $0xb1] sm:$0xff] %vm657, %v620
          %674 = vst.msk [vmem:[%s656 + $0xc1] sm:$0xff] %vm657, %v621
          %675 = vst.msk [vmem:[%s656 + $0xc9] sm:$0xff] %vm657, %v622
          %676 = vst.msk [vmem:[%s656 + $0xd9] sm:$0xff] %vm657, %v623
          %677 = vst.msk [vmem:[%s656 + $0xe1] sm:$0xff] %vm657, %v624
          %678 = vst.msk [vmem:[%s656 + $0xf1] sm:$0xff] %vm657, %v625
          %679 = vst.msk [vmem:[%s656 + $0xf9] sm:$0xff] %vm657, %v626
          %680 = vst.msk [vmem:[%s656 + $0x109] sm:$0xff] %vm657, %v627
          %681 = vst.msk [vmem:[%s656 + $0x111] sm:$0xff] %vm657, %v628
          %682 = vst.msk [vmem:[%s656 + $0x121] sm:$0xff] %vm657, %v629
          %683 = vst.msk [vmem:[%s656 + $0x129] sm:$0xff] %vm657, %v630
          %684 = vst.msk [vmem:[%s656 + $0x139] sm:$0xff] %vm657, %v631
          %685 = vst.msk [vmem:[%s656 + $0x141] sm:$0xff] %vm657, %v632
          %686 = vst.msk [vmem:[%s656 + $0x151] sm:$0xff] %vm657, %v633
          %687 = vst.msk [vmem:[%s656 + $0x159] sm:$0xff] %vm657, %v634
          %688 = vst.msk [vmem:[%s656 + $0x169] sm:$0xff] %vm657, %v635
          %689 = vst.msk [vmem:[%s656 + $0x171] sm:$0xff] %vm657, %v636
          %v690 = vld [vmem:[#allocation2] sm:$0xff]
          %v691 = vld [vmem:[#allocation2 + $0x8] sm:$0xff]
          %v692 = vld [vmem:[#allocation2 + $0x10] sm:$0x3]
          %v693 = vld [vmem:[#allocation2 + $0x18] sm:$0xff]
          %v694 = vld [vmem:[#allocation2 + $0x20] sm:$0xff]
          %v695 = vld [vmem:[#allocation2 + $0x28] sm:$0x3]
          %v696 = vld [vmem:[#allocation2 + $0x30] sm:$0xff]
          %v697 = vld [vmem:[#allocation2 + $0x38] sm:$0xff]
          %v698 = vld [vmem:[#allocation2 + $0x40] sm:$0x3]
          %v699 = vld [vmem:[#allocation2 + $0x48] sm:$0xff]
          %v700 = vld [vmem:[#allocation2 + $0x50] sm:$0xff]
          %v701 = vld [vmem:[#allocation2 + $0x58] sm:$0x3]
          %v702 = vld [vmem:[#allocation2 + $0x60] sm:$0xff]
          %v703 = vld [vmem:[#allocation2 + $0x68] sm:$0xff]
          %v704 = vld [vmem:[#allocation2 + $0x70] sm:$0x3]
          %v705 = vld [vmem:[#allocation2 + $0x78] sm:$0xff]
          %v706 = vld [vmem:[#allocation2 + $0x80] sm:$0xff]
          %v707 = vld [vmem:[#allocation2 + $0x88] sm:$0x3]
          %v708 = vld [vmem:[#allocation2 + $0x90] sm:$0xff]
          %v709 = vld [vmem:[#allocation2 + $0x98] sm:$0xff]
          %v710 = vld [vmem:[#allocation2 + $0xa0] sm:$0x3]
          %v711 = vld [vmem:[#allocation2 + $0xa8] sm:$0xff]
          %v712 = vld [vmem:[#allocation2 + $0xb0] sm:$0xff]
          %v713 = vld [vmem:[#allocation2 + $0xb8] sm:$0x3]
          %v714 = vld [vmem:[#allocation2 + $0xc0] sm:$0xff]
          %v715 = vld [vmem:[#allocation2 + $0xc8] sm:$0xff]
          %v716 = vld [vmem:[#allocation2 + $0xd0] sm:$0x3]
          %v717 = vld [vmem:[#allocation2 + $0xd8] sm:$0xff]
          %v718 = vld [vmem:[#allocation2 + $0xe0] sm:$0xff]
          %v719 = vld [vmem:[#allocation2 + $0xe8] sm:$0x3]
          %v720 = vld [vmem:[#allocation2 + $0xf0] sm:$0xff]
          %v721 = vld [vmem:[#allocation2 + $0xf8] sm:$0xff]
          %v722 = vld [vmem:[#allocation2 + $0x100] sm:$0x3]
          %v723 = vld [vmem:[#allocation2 + $0x108] sm:$0xff]
          %v724 = vld [vmem:[#allocation2 + $0x110] sm:$0xff]
          %v725 = vld [vmem:[#allocation2 + $0x118] sm:$0x3]
          %v726 = vld [vmem:[#allocation2 + $0x120] sm:$0xff]
          %v727 = vld [vmem:[#allocation2 + $0x128] sm:$0xff]
          %v728 = vld [vmem:[#allocation2 + $0x130] sm:$0x3]
          %v729 = vld [vmem:[#allocation2 + $0x138] sm:$0xff]
          %v730 = vld [vmem:[#allocation2 + $0x140] sm:$0xff]
          %v731 = vld [vmem:[#allocation2 + $0x148] sm:$0x3]
          %v732 = vld [vmem:[#allocation2 + $0x150] sm:$0xff]
          %v733 = vld [vmem:[#allocation2 + $0x158] sm:$0xff]
          %v734 = vld [vmem:[#allocation2 + $0x160] sm:$0x3]
          %v735 = vld [vmem:[#allocation2 + $0x168] sm:$0xff]
          %v736 = vld [vmem:[#allocation2 + $0x170] sm:$0xff]
          %v737 = vld [vmem:[#allocation2 + $0x178] sm:$0x3]
          %v738 = vld [vmem:[#allocation2 + $0x180] sm:$0xff]
          %v739 = vld [vmem:[#allocation2 + $0x188] sm:$0xff]
          %v740 = vld [vmem:[#allocation2 + $0x190] sm:$0x3]
          %v741 = vld [vmem:[#allocation2 + $0x198] sm:$0xff]
          %v742 = vld [vmem:[#allocation2 + $0x1a0] sm:$0xff]
          %v743 = vld [vmem:[#allocation2 + $0x1a8] sm:$0x3]
          %v744 = vpack.c.bf16 %v691, %v690
          %v745 = vpack.c.bf16 %v692, %v692
          %v746 = vpack.c.bf16 %v694, %v693
          %v747 = vpack.c.bf16 %v695, %v695
          %v748 = vpack.c.bf16 %v697, %v696
          %v749 = vpack.c.bf16 %v698, %v698
          %v750 = vpack.c.bf16 %v700, %v699
          %v751 = vpack.c.bf16 %v701, %v701
          %v752 = vpack.c.bf16 %v703, %v702
          %v753 = vpack.c.bf16 %v704, %v704
          %v754 = vpack.c.bf16 %v706, %v705
          %v755 = vpack.c.bf16 %v707, %v707
          %v756 = vpack.c.bf16 %v709, %v708
          %v757 = vpack.c.bf16 %v710, %v710
          %v758 = vpack.c.bf16 %v712, %v711
          %v759 = vpack.c.bf16 %v713, %v713
          %v760 = vpack.c.bf16 %v715, %v714
          %v761 = vpack.c.bf16 %v716, %v716
          %v762 = vpack.c.bf16 %v718, %v717
          %v763 = vpack.c.bf16 %v719, %v719
          %v764 = vpack.c.bf16 %v721, %v720
          %v765 = vpack.c.bf16 %v722, %v722
          %v766 = vpack.c.bf16 %v724, %v723
          %v767 = vpack.c.bf16 %v725, %v725
          %v768 = vpack.c.bf16 %v727, %v726
          %v769 = vpack.c.bf16 %v728, %v728
          %v770 = vpack.c.bf16 %v730, %v729
          %v771 = vpack.c.bf16 %v731, %v731
          %v772 = vpack.c.bf16 %v733, %v732
          %v773 = vpack.c.bf16 %v734, %v734
          %v774 = vpack.c.bf16 %v736, %v735
          %v775 = vpack.c.bf16 %v737, %v737
          %v776 = vpack.c.bf16 %v739, %v738
          %v777 = vpack.c.bf16 %v740, %v740
          %v778 = vpack.c.bf16 %v742, %v741
          %v779 = vpack.c.bf16 %v743, %v743
          %vm780 = vsmask.f32 7424
          %v782 = vshrl.u32 %v744, 16
          %v784 = vshll.u32 %v744, 16
          %v786 = vrot.slane %v784, 1
          %v787 = vor.u32 %v782, %v786
          %v789 = vshll.u32 %v745, 16
          %v791 = vrot.slane %v789, 1
          %v792 = vsel %vm780, %v787, %v791
          %v794 = vshrl.u32 %v746, 16
          %v796 = vshll.u32 %v746, 16
          %v798 = vrot.slane %v796, 1
          %v799 = vor.u32 %v794, %v798
          %v801 = vshll.u32 %v747, 16
          %v803 = vrot.slane %v801, 1
          %v804 = vsel %vm780, %v799, %v803
          %v806 = vshrl.u32 %v748, 16
          %v808 = vshll.u32 %v748, 16
          %v810 = vrot.slane %v808, 1
          %v811 = vor.u32 %v806, %v810
          %v813 = vshll.u32 %v749, 16
          %v815 = vrot.slane %v813, 1
          %v816 = vsel %vm780, %v811, %v815
          %v818 = vshrl.u32 %v750, 16
          %v820 = vshll.u32 %v750, 16
          %v822 = vrot.slane %v820, 1
          %v823 = vor.u32 %v818, %v822
          %v825 = vshll.u32 %v751, 16
          %v827 = vrot.slane %v825, 1
          %v828 = vsel %vm780, %v823, %v827
          %v830 = vshrl.u32 %v752, 16
          %v832 = vshll.u32 %v752, 16
          %v834 = vrot.slane %v832, 1
          %v835 = vor.u32 %v830, %v834
          %v837 = vshll.u32 %v753, 16
          %v839 = vrot.slane %v837, 1
          %v840 = vsel %vm780, %v835, %v839
          %v842 = vshrl.u32 %v754, 16
          %v844 = vshll.u32 %v754, 16
          %v846 = vrot.slane %v844, 1
          %v847 = vor.u32 %v842, %v846
          %v849 = vshll.u32 %v755, 16
          %v851 = vrot.slane %v849, 1
          %v852 = vsel %vm780, %v847, %v851
          %v854 = vshrl.u32 %v756, 16
          %v856 = vshll.u32 %v756, 16
          %v858 = vrot.slane %v856, 1
          %v859 = vor.u32 %v854, %v858
          %v861 = vshll.u32 %v757, 16
          %v863 = vrot.slane %v861, 1
          %v864 = vsel %vm780, %v859, %v863
          %v866 = vshrl.u32 %v758, 16
          %v868 = vshll.u32 %v758, 16
          %v870 = vrot.slane %v868, 1
          %v871 = vor.u32 %v866, %v870
          %v873 = vshll.u32 %v759, 16
          %v875 = vrot.slane %v873, 1
          %v876 = vsel %vm780, %v871, %v875
          %v878 = vshrl.u32 %v760, 16
          %v880 = vshll.u32 %v760, 16
          %v882 = vrot.slane %v880, 1
          %v883 = vor.u32 %v878, %v882
          %v885 = vshll.u32 %v761, 16
          %v887 = vrot.slane %v885, 1
          %v888 = vsel %vm780, %v883, %v887
          %v890 = vshrl.u32 %v762, 16
          %v892 = vshll.u32 %v762, 16
          %v894 = vrot.slane %v892, 1
          %v895 = vor.u32 %v890, %v894
          %v897 = vshll.u32 %v763, 16
          %v899 = vrot.slane %v897, 1
          %v900 = vsel %vm780, %v895, %v899
          %v902 = vshrl.u32 %v764, 16
          %v904 = vshll.u32 %v764, 16
          %v906 = vrot.slane %v904, 1
          %v907 = vor.u32 %v902, %v906
          %v909 = vshll.u32 %v765, 16
          %v911 = vrot.slane %v909, 1
          %v912 = vsel %vm780, %v907, %v911
          %v914 = vshrl.u32 %v766, 16
          %v916 = vshll.u32 %v766, 16
          %v918 = vrot.slane %v916, 1
          %v919 = vor.u32 %v914, %v918
          %v921 = vshll.u32 %v767, 16
          %v923 = vrot.slane %v921, 1
          %v924 = vsel %vm780, %v919, %v923
          %v926 = vshrl.u32 %v768, 16
          %v928 = vshll.u32 %v768, 16
          %v930 = vrot.slane %v928, 1
          %v931 = vor.u32 %v926, %v930
          %v933 = vshll.u32 %v769, 16
          %v935 = vrot.slane %v933, 1
          %v936 = vsel %vm780, %v931, %v935
          %v938 = vshrl.u32 %v770, 16
          %v940 = vshll.u32 %v770, 16
          %v942 = vrot.slane %v940, 1
          %v943 = vor.u32 %v938, %v942
          %v945 = vshll.u32 %v771, 16
          %v947 = vrot.slane %v945, 1
          %v948 = vsel %vm780, %v943, %v947
          %v950 = vshrl.u32 %v772, 16
          %v952 = vshll.u32 %v772, 16
          %v954 = vrot.slane %v952, 1
          %v955 = vor.u32 %v950, %v954
          %v957 = vshll.u32 %v773, 16
          %v959 = vrot.slane %v957, 1
          %v960 = vsel %vm780, %v955, %v959
          %v962 = vshrl.u32 %v774, 16
          %v964 = vshll.u32 %v774, 16
          %v966 = vrot.slane %v964, 1
          %v967 = vor.u32 %v962, %v966
          %v969 = vshll.u32 %v775, 16
          %v971 = vrot.slane %v969, 1
          %v972 = vsel %vm780, %v967, %v971
          %vm1005 = vcmask 1046528
          %v1006 = vrot.slane %v744, 1
          %v1007 = vrot.slane %v745, 1
          %v1008 = vsel %vm1005, %v1006, %v1007
          %v1009 = vrot.slane %v746, 1
          %v1010 = vrot.slane %v747, 1
          %v1011 = vsel %vm1005, %v1009, %v1010
          %v1012 = vrot.slane %v748, 1
          %v1013 = vrot.slane %v749, 1
          %v1014 = vsel %vm1005, %v1012, %v1013
          %v1015 = vrot.slane %v750, 1
          %v1016 = vrot.slane %v751, 1
          %v1017 = vsel %vm1005, %v1015, %v1016
          %v1018 = vrot.slane %v752, 1
          %v1019 = vrot.slane %v753, 1
          %v1020 = vsel %vm1005, %v1018, %v1019
          %v1021 = vrot.slane %v754, 1
          %v1022 = vrot.slane %v755, 1
          %v1023 = vsel %vm1005, %v1021, %v1022
          %v1024 = vrot.slane %v756, 1
          %v1025 = vrot.slane %v757, 1
          %v1026 = vsel %vm1005, %v1024, %v1025
          %v1027 = vrot.slane %v758, 1
          %v1028 = vrot.slane %v759, 1
          %v1029 = vsel %vm1005, %v1027, %v1028
          %v1030 = vrot.slane %v760, 1
          %v1031 = vrot.slane %v761, 1
          %v1032 = vsel %vm1005, %v1030, %v1031
          %v1033 = vrot.slane %v762, 1
          %v1034 = vrot.slane %v763, 1
          %v1035 = vsel %vm1005, %v1033, %v1034
          %v1036 = vrot.slane %v764, 1
          %v1037 = vrot.slane %v765, 1
          %v1038 = vsel %vm1005, %v1036, %v1037
          %v1039 = vrot.slane %v766, 1
          %v1040 = vrot.slane %v767, 1
          %v1041 = vsel %vm1005, %v1039, %v1040
          %v1042 = vrot.slane %v768, 1
          %v1043 = vrot.slane %v769, 1
          %v1044 = vsel %vm1005, %v1042, %v1043
          %v1045 = vrot.slane %v770, 1
          %v1046 = vrot.slane %v771, 1
          %v1047 = vsel %vm1005, %v1045, %v1046
          %v1048 = vrot.slane %v772, 1
          %v1049 = vrot.slane %v773, 1
          %v1050 = vsel %vm1005, %v1048, %v1049
          %v1051 = vrot.slane %v774, 1
          %v1052 = vrot.slane %v775, 1
          %v1053 = vsel %vm1005, %v1051, %v1052
          %v1055 = vshrl.u32 %v776, 16
          %v1057 = vshll.u32 %v776, 16
          %v1059 = vrot.slane %v1057, 1
          %v1060 = vor.u32 %v1055, %v1059
          %v1062 = vshll.u32 %v777, 16
          %v1064 = vrot.slane %v1062, 1
          %v1065 = vsel %vm780, %v1060, %v1064
          %v1068 = vrot.slane %v776, 1
          %v1069 = vrot.slane %v777, 1
          %v1070 = vsel %vm1005, %v1068, %v1069
          %v1072 = vshrl.u32 %v778, 16
          %v1074 = vshll.u32 %v778, 16
          %v1076 = vrot.slane %v1074, 1
          %v1077 = vor.u32 %v1072, %v1076
          %v1079 = vshll.u32 %v779, 16
          %v1081 = vrot.slane %v1079, 1
          %v1082 = vsel %vm780, %v1077, %v1081
          %v1085 = vrot.slane %v778, 1
          %v1086 = vrot.slane %v779, 1
          %v1087 = vsel %vm1005, %v1085, %v1086
          %1088 = vrot.lane.b32.xlu0 %v792, 16
          %v1089 = vpop.permute.xlu0 %1088
          %1090 = vrot.lane.b32.xlu0 %v804, 16
          %v1091 = vpop.permute.xlu0 %1090
          %1092 = vrot.lane.b32.xlu0 %v816, 16
          %v1093 = vpop.permute.xlu0 %1092
          %1094 = vrot.lane.b32.xlu0 %v828, 16
          %v1095 = vpop.permute.xlu0 %1094
          %1096 = vrot.lane.b32.xlu0 %v840, 16
          %v1097 = vpop.permute.xlu0 %1096
          %1098 = vrot.lane.b32.xlu0 %v852, 16
          %v1099 = vpop.permute.xlu0 %1098
          %1100 = vrot.lane.b32.xlu0 %v864, 16
          %v1101 = vpop.permute.xlu0 %1100
          %1102 = vrot.lane.b32.xlu0 %v876, 16
          %v1103 = vpop.permute.xlu0 %1102
          %1104 = vrot.lane.b32.xlu0 %v888, 16
          %v1105 = vpop.permute.xlu0 %1104
          %1106 = vrot.lane.b32.xlu0 %v900, 16
          %v1107 = vpop.permute.xlu0 %1106
          %1108 = vrot.lane.b32.xlu0 %v912, 16
          %v1109 = vpop.permute.xlu0 %1108
          %1110 = vrot.lane.b32.xlu0 %v924, 16
          %v1111 = vpop.permute.xlu0 %1110
          %1112 = vrot.lane.b32.xlu0 %v936, 16
          %v1113 = vpop.permute.xlu0 %1112
          %1114 = vrot.lane.b32.xlu0 %v948, 16
          %v1115 = vpop.permute.xlu0 %1114
          %1116 = vrot.lane.b32.xlu0 %v960, 16
          %v1117 = vpop.permute.xlu0 %1116
          %1118 = vrot.lane.b32.xlu0 %v972, 16
          %v1119 = vpop.permute.xlu0 %1118
          %1120 = vrot.lane.b32.xlu0 %v1008, 32
          %v1121 = vpop.permute.xlu0 %1120
          %1122 = vrot.lane.b32.xlu0 %v1011, 32
          %v1123 = vpop.permute.xlu0 %1122
          %1124 = vrot.lane.b32.xlu0 %v1014, 32
          %v1125 = vpop.permute.xlu0 %1124
          %1126 = vrot.lane.b32.xlu0 %v1017, 32
          %v1127 = vpop.permute.xlu0 %1126
          %1128 = vrot.lane.b32.xlu0 %v1020, 32
          %v1129 = vpop.permute.xlu0 %1128
          %1130 = vrot.lane.b32.xlu0 %v1023, 32
          %v1131 = vpop.permute.xlu0 %1130
          %1132 = vrot.lane.b32.xlu0 %v1026, 32
          %v1133 = vpop.permute.xlu0 %1132
          %1134 = vrot.lane.b32.xlu0 %v1029, 32
          %v1135 = vpop.permute.xlu0 %1134
          %1136 = vrot.lane.b32.xlu0 %v1032, 32
          %v1137 = vpop.permute.xlu0 %1136
          %1138 = vrot.lane.b32.xlu0 %v1035, 32
          %v1139 = vpop.permute.xlu0 %1138
          %1140 = vrot.lane.b32.xlu0 %v1038, 32
          %v1141 = vpop.permute.xlu0 %1140
          %1142 = vrot.lane.b32.xlu0 %v1041, 32
          %v1143 = vpop.permute.xlu0 %1142
          %1144 = vrot.lane.b32.xlu0 %v1044, 32
          %v1145 = vpop.permute.xlu0 %1144
          %1146 = vrot.lane.b32.xlu0 %v1047, 32
          %v1147 = vpop.permute.xlu0 %1146
          %1148 = vrot.lane.b32.xlu0 %v1050, 32
          %v1149 = vpop.permute.xlu0 %1148
          %1150 = vrot.lane.b32.xlu0 %v1053, 32
          %v1151 = vpop.permute.xlu0 %1150
          %1152 = vrot.lane.b32.xlu0 %v746, 48
          %v1153 = vpop.permute.xlu0 %1152
          %1154 = vrot.lane.b32.xlu0 %v748, 48
          %v1155 = vpop.permute.xlu0 %1154
          %1156 = vrot.lane.b32.xlu0 %v750, 48
          %v1157 = vpop.permute.xlu0 %1156
          %1158 = vrot.lane.b32.xlu0 %v752, 48
          %v1159 = vpop.permute.xlu0 %1158
          %1160 = vrot.lane.b32.xlu0 %v754, 48
          %v1161 = vpop.permute.xlu0 %1160
          %1162 = vrot.lane.b32.xlu0 %v756, 48
          %v1163 = vpop.permute.xlu0 %1162
          %1164 = vrot.lane.b32.xlu0 %v758, 48
          %v1165 = vpop.permute.xlu0 %1164
          %1166 = vrot.lane.b32.xlu0 %v760, 48
          %v1167 = vpop.permute.xlu0 %1166
          %1168 = vrot.lane.b32.xlu0 %v762, 48
          %v1169 = vpop.permute.xlu0 %1168
          %1170 = vrot.lane.b32.xlu0 %v764, 48
          %v1171 = vpop.permute.xlu0 %1170
          %1172 = vrot.lane.b32.xlu0 %v766, 48
          %v1173 = vpop.permute.xlu0 %1172
          %1174 = vrot.lane.b32.xlu0 %v768, 48
          %v1175 = vpop.permute.xlu0 %1174
          %1176 = vrot.lane.b32.xlu0 %v770, 48
          %v1177 = vpop.permute.xlu0 %1176
          %1178 = vrot.lane.b32.xlu0 %v772, 48
          %v1179 = vpop.permute.xlu0 %1178
          %1180 = vrot.lane.b32.xlu0 %v774, 48
          %v1181 = vpop.permute.xlu0 %1180
          %1182 = vrot.lane.b32.xlu0 %v776, 48
          %v1183 = vpop.permute.xlu0 %1182
          %1184 = vrot.lane.b32.xlu0 %v804, 64
          %v1185 = vpop.permute.xlu0 %1184
          %1186 = vrot.lane.b32.xlu0 %v816, 64
          %v1187 = vpop.permute.xlu0 %1186
          %1188 = vrot.lane.b32.xlu0 %v828, 64
          %v1189 = vpop.permute.xlu0 %1188
          %1190 = vrot.lane.b32.xlu0 %v840, 64
          %v1191 = vpop.permute.xlu0 %1190
          %1192 = vrot.lane.b32.xlu0 %v852, 64
          %v1193 = vpop.permute.xlu0 %1192
          %1194 = vrot.lane.b32.xlu0 %v864, 64
          %v1195 = vpop.permute.xlu0 %1194
          %1196 = vrot.lane.b32.xlu0 %v876, 64
          %v1197 = vpop.permute.xlu0 %1196
          %1198 = vrot.lane.b32.xlu0 %v888, 64
          %v1199 = vpop.permute.xlu0 %1198
          %1200 = vrot.lane.b32.xlu0 %v900, 64
          %v1201 = vpop.permute.xlu0 %1200
          %1202 = vrot.lane.b32.xlu0 %v912, 64
          %v1203 = vpop.permute.xlu0 %1202
          %1204 = vrot.lane.b32.xlu0 %v924, 64
          %v1205 = vpop.permute.xlu0 %1204
          %1206 = vrot.lane.b32.xlu0 %v936, 64
          %v1207 = vpop.permute.xlu0 %1206
          %1208 = vrot.lane.b32.xlu0 %v948, 64
          %v1209 = vpop.permute.xlu0 %1208
          %1210 = vrot.lane.b32.xlu0 %v960, 64
          %v1211 = vpop.permute.xlu0 %1210
          %1212 = vrot.lane.b32.xlu0 %v972, 64
          %v1213 = vpop.permute.xlu0 %1212
          %1214 = vrot.lane.b32.xlu0 %v1065, 64
          %v1215 = vpop.permute.xlu0 %1214
          %1216 = vrot.lane.b32.xlu0 %v1011, 80
          %v1217 = vpop.permute.xlu0 %1216
          %1218 = vrot.lane.b32.xlu0 %v1014, 80
          %v1219 = vpop.permute.xlu0 %1218
          %1220 = vrot.lane.b32.xlu0 %v1017, 80
          %v1221 = vpop.permute.xlu0 %1220
          %1222 = vrot.lane.b32.xlu0 %v1020, 80
          %v1223 = vpop.permute.xlu0 %1222
          %1224 = vrot.lane.b32.xlu0 %v1023, 80
          %v1225 = vpop.permute.xlu0 %1224
          %1226 = vrot.lane.b32.xlu0 %v1026, 80
          %v1227 = vpop.permute.xlu0 %1226
          %1228 = vrot.lane.b32.xlu0 %v1029, 80
          %v1229 = vpop.permute.xlu0 %1228
          %1230 = vrot.lane.b32.xlu0 %v1032, 80
          %v1231 = vpop.permute.xlu0 %1230
          %1232 = vrot.lane.b32.xlu0 %v1035, 80
          %v1233 = vpop.permute.xlu0 %1232
          %1234 = vrot.lane.b32.xlu0 %v1038, 80
          %v1235 = vpop.permute.xlu0 %1234
          %1236 = vrot.lane.b32.xlu0 %v1041, 80
          %v1237 = vpop.permute.xlu0 %1236
          %1238 = vrot.lane.b32.xlu0 %v1044, 80
          %v1239 = vpop.permute.xlu0 %1238
          %1240 = vrot.lane.b32.xlu0 %v1047, 80
          %v1241 = vpop.permute.xlu0 %1240
          %1242 = vrot.lane.b32.xlu0 %v1050, 80
          %v1243 = vpop.permute.xlu0 %1242
          %1244 = vrot.lane.b32.xlu0 %v1053, 80
          %v1245 = vpop.permute.xlu0 %1244
          %1246 = vrot.lane.b32.xlu0 %v1070, 80
          %v1247 = vpop.permute.xlu0 %1246
          %1248 = vrot.lane.b32.xlu0 %v748, 96
          %v1249 = vpop.permute.xlu0 %1248
          %1250 = vrot.lane.b32.xlu0 %v750, 96
          %v1251 = vpop.permute.xlu0 %1250
          %1252 = vrot.lane.b32.xlu0 %v752, 96
          %v1253 = vpop.permute.xlu0 %1252
          %1254 = vrot.lane.b32.xlu0 %v754, 96
          %v1255 = vpop.permute.xlu0 %1254
          %1256 = vrot.lane.b32.xlu0 %v756, 96
          %v1257 = vpop.permute.xlu0 %1256
          %1258 = vrot.lane.b32.xlu0 %v758, 96
          %v1259 = vpop.permute.xlu0 %1258
          %1260 = vrot.lane.b32.xlu0 %v760, 96
          %v1261 = vpop.permute.xlu0 %1260
          %1262 = vrot.lane.b32.xlu0 %v762, 96
          %v1263 = vpop.permute.xlu0 %1262
          %1264 = vrot.lane.b32.xlu0 %v764, 96
          %v1265 = vpop.permute.xlu0 %1264
          %1266 = vrot.lane.b32.xlu0 %v766, 96
          %v1267 = vpop.permute.xlu0 %1266
          %1268 = vrot.lane.b32.xlu0 %v768, 96
          %v1269 = vpop.permute.xlu0 %1268
          %1270 = vrot.lane.b32.xlu0 %v770, 96
          %v1271 = vpop.permute.xlu0 %1270
          %1272 = vrot.lane.b32.xlu0 %v772, 96
          %v1273 = vpop.permute.xlu0 %1272
          %1274 = vrot.lane.b32.xlu0 %v774, 96
          %v1275 = vpop.permute.xlu0 %1274
          %1276 = vrot.lane.b32.xlu0 %v776, 96
          %v1277 = vpop.permute.xlu0 %1276
          %1278 = vrot.lane.b32.xlu0 %v778, 96
          %v1279 = vpop.permute.xlu0 %1278
          %1280 = vrot.lane.b32.xlu0 %v816, 112
          %v1281 = vpop.permute.xlu0 %1280
          %1282 = vrot.lane.b32.xlu0 %v828, 112
          %v1283 = vpop.permute.xlu0 %1282
          %1284 = vrot.lane.b32.xlu0 %v840, 112
          %v1285 = vpop.permute.xlu0 %1284
          %1286 = vrot.lane.b32.xlu0 %v852, 112
          %v1287 = vpop.permute.xlu0 %1286
          %1288 = vrot.lane.b32.xlu0 %v864, 112
          %v1289 = vpop.permute.xlu0 %1288
          %1290 = vrot.lane.b32.xlu0 %v876, 112
          %v1291 = vpop.permute.xlu0 %1290
          %1292 = vrot.lane.b32.xlu0 %v888, 112
          %v1293 = vpop.permute.xlu0 %1292
          %1294 = vrot.lane.b32.xlu0 %v900, 112
          %v1295 = vpop.permute.xlu0 %1294
          %1296 = vrot.lane.b32.xlu0 %v912, 112
          %v1297 = vpop.permute.xlu0 %1296
          %1298 = vrot.lane.b32.xlu0 %v924, 112
          %v1299 = vpop.permute.xlu0 %1298
          %1300 = vrot.lane.b32.xlu0 %v936, 112
          %v1301 = vpop.permute.xlu0 %1300
          %1302 = vrot.lane.b32.xlu0 %v948, 112
          %v1303 = vpop.permute.xlu0 %1302
          %1304 = vrot.lane.b32.xlu0 %v960, 112
          %v1305 = vpop.permute.xlu0 %1304
          %1306 = vrot.lane.b32.xlu0 %v972, 112
          %v1307 = vpop.permute.xlu0 %1306
          %1308 = vrot.lane.b32.xlu0 %v1065, 112
          %v1309 = vpop.permute.xlu0 %1308
          %1310 = vrot.lane.b32.xlu0 %v1082, 112
          %v1311 = vpop.permute.xlu0 %1310
          %v1313 = vsel %vm657, %v744, %v1089
          %v1315 = vsel %vm657, %v746, %v1091
          %v1317 = vsel %vm657, %v748, %v1093
          %v1319 = vsel %vm657, %v750, %v1095
          %v1321 = vsel %vm657, %v752, %v1097
          %v1323 = vsel %vm657, %v754, %v1099
          %v1325 = vsel %vm657, %v756, %v1101
          %v1327 = vsel %vm657, %v758, %v1103
          %v1329 = vsel %vm657, %v760, %v1105
          %v1331 = vsel %vm657, %v762, %v1107
          %v1333 = vsel %vm657, %v764, %v1109
          %v1335 = vsel %vm657, %v766, %v1111
          %v1337 = vsel %vm657, %v768, %v1113
          %v1339 = vsel %vm657, %v770, %v1115
          %v1341 = vsel %vm657, %v772, %v1117
          %v1343 = vsel %vm657, %v774, %v1119
          %vm1344 = vcmask 261120
          %v1346 = vsel %vm1344, %v1313, %v1121
          %v1348 = vsel %vm1344, %v1315, %v1123
          %v1350 = vsel %vm1344, %v1317, %v1125
          %v1352 = vsel %vm1344, %v1319, %v1127
          %v1354 = vsel %vm1344, %v1321, %v1129
          %v1356 = vsel %vm1344, %v1323, %v1131
          %v1358 = vsel %vm1344, %v1325, %v1133
          %v1360 = vsel %vm1344, %v1327, %v1135
          %v1362 = vsel %vm1344, %v1329, %v1137
          %v1364 = vsel %vm1344, %v1331, %v1139
          %v1366 = vsel %vm1344, %v1333, %v1141
          %v1368 = vsel %vm1344, %v1335, %v1143
          %v1370 = vsel %vm1344, %v1337, %v1145
          %v1372 = vsel %vm1344, %v1339, %v1147
          %v1374 = vsel %vm1344, %v1341, %v1149
          %v1376 = vsel %vm1344, %v1343, %v1151
          %vm1377 = vcmask 392192
          %v1379 = vsel %vm1377, %v1346, %v1153
          %v1381 = vsel %vm1377, %v1348, %v1155
          %v1383 = vsel %vm1377, %v1350, %v1157
          %v1385 = vsel %vm1377, %v1352, %v1159
          %v1387 = vsel %vm1377, %v1354, %v1161
          %v1389 = vsel %vm1377, %v1356, %v1163
          %v1391 = vsel %vm1377, %v1358, %v1165
          %v1393 = vsel %vm1377, %v1360, %v1167
          %v1395 = vsel %vm1377, %v1362, %v1169
          %v1397 = vsel %vm1377, %v1364, %v1171
          %v1399 = vsel %vm1377, %v1366, %v1173
          %v1401 = vsel %vm1377, %v1368, %v1175
          %v1403 = vsel %vm1377, %v1370, %v1177
          %v1405 = vsel %vm1377, %v1372, %v1179
          %v1407 = vsel %vm1377, %v1374, %v1181
          %v1409 = vsel %vm1377, %v1376, %v1183
          %vm1410 = vcmask 523264
          %v1412 = vsel %vm1410, %v1379, %v1185
          %v1414 = vsel %vm1410, %v1381, %v1187
          %v1416 = vsel %vm1410, %v1383, %v1189
          %v1418 = vsel %vm1410, %v1385, %v1191
          %v1420 = vsel %vm1410, %v1387, %v1193
          %v1422 = vsel %vm1410, %v1389, %v1195
          %v1424 = vsel %vm1410, %v1391, %v1197
          %v1426 = vsel %vm1410, %v1393, %v1199
          %v1428 = vsel %vm1410, %v1395, %v1201
          %v1430 = vsel %vm1410, %v1397, %v1203
          %v1432 = vsel %vm1410, %v1399, %v1205
          %v1434 = vsel %vm1410, %v1401, %v1207
          %v1436 = vsel %vm1410, %v1403, %v1209
          %v1438 = vsel %vm1410, %v1405, %v1211
          %v1440 = vsel %vm1410, %v1407, %v1213
          %v1442 = vsel %vm1410, %v1409, %v1215
          %vm1443 = vcmask 654336
          %v1445 = vsel %vm1443, %v1412, %v1217
          %v1447 = vsel %vm1443, %v1414, %v1219
          %v1449 = vsel %vm1443, %v1416, %v1221
          %v1451 = vsel %vm1443, %v1418, %v1223
          %v1453 = vsel %vm1443, %v1420, %v1225
          %v1455 = vsel %vm1443, %v1422, %v1227
          %v1457 = vsel %vm1443, %v1424, %v1229
          %v1459 = vsel %vm1443, %v1426, %v1231
          %v1461 = vsel %vm1443, %v1428, %v1233
          %v1463 = vsel %vm1443, %v1430, %v1235
          %v1465 = vsel %vm1443, %v1432, %v1237
          %v1467 = vsel %vm1443, %v1434, %v1239
          %v1469 = vsel %vm1443, %v1436, %v1241
          %v1471 = vsel %vm1443, %v1438, %v1243
          %v1473 = vsel %vm1443, %v1440, %v1245
          %v1475 = vsel %vm1443, %v1442, %v1247
          %vm1476 = vcmask 785408
          %v1478 = vsel %vm1476, %v1445, %v1249
          %v1480 = vsel %vm1476, %v1447, %v1251
          %v1482 = vsel %vm1476, %v1449, %v1253
          %v1484 = vsel %vm1476, %v1451, %v1255
          %v1486 = vsel %vm1476, %v1453, %v1257
          %v1488 = vsel %vm1476, %v1455, %v1259
          %v1490 = vsel %vm1476, %v1457, %v1261
          %v1492 = vsel %vm1476, %v1459, %v1263
          %v1494 = vsel %vm1476, %v1461, %v1265
          %v1496 = vsel %vm1476, %v1463, %v1267
          %v1498 = vsel %vm1476, %v1465, %v1269
          %v1500 = vsel %vm1476, %v1467, %v1271
          %v1502 = vsel %vm1476, %v1469, %v1273
          %v1504 = vsel %vm1476, %v1471, %v1275
          %v1506 = vsel %vm1476, %v1473, %v1277
          %v1508 = vsel %vm1476, %v1475, %v1279
          %vm1509 = vcmask 916480
          %v1511 = vsel %vm1509, %v1478, %v1281
          %v1514 = vsel %vm1509, %v1480, %v1283
          %v1517 = vsel %vm1509, %v1482, %v1285
          %v1520 = vsel %vm1509, %v1484, %v1287
          %v1523 = vsel %vm1509, %v1486, %v1289
          %v1526 = vsel %vm1509, %v1488, %v1291
          %v1529 = vsel %vm1509, %v1490, %v1293
          %v1532 = vsel %vm1509, %v1492, %v1295
          %v1535 = vsel %vm1509, %v1494, %v1297
          %v1538 = vsel %vm1509, %v1496, %v1299
          %v1541 = vsel %vm1509, %v1498, %v1301
          %v1544 = vsel %vm1509, %v1500, %v1303
          %v1547 = vsel %vm1509, %v1502, %v1305
          %v1550 = vsel %vm1509, %v1504, %v1307
          %v1553 = vsel %vm1509, %v1506, %v1309
          %v1556 = vsel %vm1509, %v1508, %v1311
          %v1559 = vlaneseq
          %v1560 = vshrl.u32 %v1559, 7
          %v1561 = vsub.s32 0, %v1560
          %v1562 = vrot.slane %v655, %v1561
          %v1582 = vunpack.c.l.b16 %v637
          %v1583 = vunpack.c.l.b16 %v638
          %v1584 = vunpack.c.l.b16 %v639
          %v1585 = vunpack.c.l.b16 %v640
          %v1586 = vunpack.c.l.b16 %v641
          %v1587 = vunpack.c.l.b16 %v642
          %v1588 = vunpack.c.l.b16 %v643
          %v1589 = vunpack.c.l.b16 %v644
          %v1590 = vunpack.c.l.b16 %v645
          %v1591 = vunpack.c.l.b16 %v646
          %v1592 = vunpack.c.l.b16 %v647
          %v1593 = vunpack.c.l.b16 %v648
          %v1594 = vunpack.c.l.b16 %v649
          %v1595 = vunpack.c.l.b16 %v650
          %v1596 = vunpack.c.l.b16 %v651
          %v1597 = vunpack.c.l.b16 %v652
          %v1598 = vunpack.c.l.b16 %v653
          %v1599 = vunpack.c.l.b16 %v654
          %v1600 = vpack.c.b16 %v1583, %v1582
          %v1601 = vpack.c.b16 %v1585, %v1584
          %v1602 = vpack.c.b16 %v1587, %v1586
          %v1603 = vpack.c.b16 %v1589, %v1588
          %v1604 = vpack.c.b16 %v1591, %v1590
          %v1605 = vpack.c.b16 %v1593, %v1592
          %v1606 = vpack.c.b16 %v1595, %v1594
          %v1607 = vpack.c.b16 %v1597, %v1596
          %v1608 = vpack.c.b16 %v1599, %v1598
          %v1619 = vsel %vm657, %v1014, 0
          %v1622 = vsel %vm657, %v1017, 0
          %v1625 = vsel %vm657, %v1020, 0
          %v1628 = vsel %vm657, %v1023, 0
          %v1631 = vsel %vm657, %v1026, 0
          %v1634 = vsel %vm657, %v1029, 0
          %v1637 = vsel %vm657, %v1032, 0
          %v1640 = vsel %vm657, %v1035, 0
          %v1643 = vsel %vm657, %v1038, 0
          %v1646 = vsel %vm657, %v1041, 0
          %v1649 = vsel %vm657, %v1044, 0
          %v1652 = vsel %vm657, %v1047, 0
          %v1655 = vsel %vm657, %v1050, 0
          %v1658 = vsel %vm657, %v1053, 0
          %v1661 = vsel %vm657, %v1070, 0
          %v1664 = vsel %vm657, %v1087, 0
          %1666 = vmatprep.subr.bf16.mxu0 0
          %1667 = vmatpush1.bf16.msra.mxu0 %v1607
          %1668 = vmatprep.subr.bf16.mxu0 0
          %1669 = vmatpush1.bf16.msra.mxu0 %v1606
          %1670 = vmatprep.subr.bf16.mxu0 0
          %1671 = vmatpush1.bf16.msra.mxu0 %v1605
          %1672 = vmatprep.subr.bf16.mxu0 0
          %1673 = vmatpush1.bf16.msra.mxu0 %v1604
          %1674 = vmatprep.subr.bf16.mxu0 0
          %1675 = vmatpush1.bf16.msra.mxu0 %v1603
          %1676 = vmatprep.subr.bf16.mxu0 0
          %1677 = vmatpush1.bf16.msra.mxu0 %v1602
          %1678 = vmatprep.subr.bf16.mxu0 0
          %1679 = vmatpush1.bf16.msra.mxu0 %v1601
          %1680 = vmatprep.subr.bf16.mxu0 0
          %1681 = vmatpush1.bf16.msra.mxu0 %v1600
          %1682 = vmatprep.subr.bf16.mxu0 0
          %1683 = vmatpush2.bf16.msra.mxu0 0
          %1684 = vmatprep.subr.bf16.mxu0 0
          %1685 = vmatpush2.bf16.msra.mxu0 0
          %1686 = vmatprep.subr.bf16.mxu0 0
          %1687 = vmatpush2.bf16.msra.mxu0 0
          %1688 = vmatprep.subr.bf16.mxu0 0
          %1689 = vmatpush2.bf16.msra.mxu0 0
          %1690 = vmatprep.subr.bf16.mxu0 0
          %1691 = vmatpush2.bf16.msra.mxu0 0
          %1692 = vmatprep.subr.bf16.mxu0 0
          %1693 = vmatpush2.bf16.msra.mxu0 0
          %1694 = vmatprep.subr.bf16.mxu0 0
          %1695 = vmatpush2.bf16.msra.mxu0 0
          %1696 = vmatprep.subr.bf16.mxu0 0
          %1697 = vmatpush2.bf16.msra.mxu0 %v1608
          %1698 = vmatprep.mubr.bf16.mxu0 %v1619
          %1699 = vmatmul.mubr.bf16.gmra.mxu0 %v1511
          %v1700 = vpop.f32.mrf.mxu0
          %v1701 = vadd.f32 %v1562, %v1700
          %v1702 = vpop.f32.mrf.mxu0
          %v1703 = vpop.f32.mrf.mxu0
          %v1704 = vadd.f32 %v1562, %v1703
          %v1705 = vpop.f32.mrf.mxu0
          %1706 = vmatprep.mubr.bf16.mxu0 %v1622
          %1707 = vmatmul.mubr.bf16.gmra.mxu0 %v1514
          %v1708 = vpop.f32.mrf.mxu0
          %v1709 = vadd.f32 %v1562, %v1708
          %v1710 = vpop.f32.mrf.mxu0
          %v1711 = vpop.f32.mrf.mxu0
          %v1712 = vadd.f32 %v1562, %v1711
          %v1713 = vpop.f32.mrf.mxu0
          %1714 = vmatprep.mubr.bf16.mxu0 %v1625
          %1715 = vmatmul.mubr.bf16.gmra.mxu0 %v1517
          %v1716 = vpop.f32.mrf.mxu0
          %v1717 = vadd.f32 %v1562, %v1716
          %v1718 = vpop.f32.mrf.mxu0
          %v1719 = vpop.f32.mrf.mxu0
          %v1720 = vadd.f32 %v1562, %v1719
          %v1721 = vpop.f32.mrf.mxu0
          %1722 = vmatprep.mubr.bf16.mxu0 %v1628
          %1723 = vmatmul.mubr.bf16.gmra.mxu0 %v1520
          %v1724 = vpop.f32.mrf.mxu0
          %v1725 = vadd.f32 %v1562, %v1724
          %v1726 = vpop.f32.mrf.mxu0
          %v1727 = vpop.f32.mrf.mxu0
          %v1728 = vadd.f32 %v1562, %v1727
          %v1729 = vpop.f32.mrf.mxu0
          %1730 = vmatprep.mubr.bf16.mxu0 %v1631
          %1731 = vmatmul.mubr.bf16.gmra.mxu0 %v1523
          %v1732 = vpop.f32.mrf.mxu0
          %v1733 = vadd.f32 %v1562, %v1732
          %v1734 = vpop.f32.mrf.mxu0
          %v1735 = vpop.f32.mrf.mxu0
          %v1736 = vadd.f32 %v1562, %v1735
          %v1737 = vpop.f32.mrf.mxu0
          %1738 = vmatprep.mubr.bf16.mxu0 %v1634
          %1739 = vmatmul.mubr.bf16.gmra.mxu0 %v1526
          %v1740 = vpop.f32.mrf.mxu0
          %v1741 = vadd.f32 %v1562, %v1740
          %v1742 = vpop.f32.mrf.mxu0
          %v1743 = vpop.f32.mrf.mxu0
          %v1744 = vadd.f32 %v1562, %v1743
          %v1745 = vpop.f32.mrf.mxu0
          %1746 = vmatprep.mubr.bf16.mxu0 %v1637
          %1747 = vmatmul.mubr.bf16.gmra.mxu0 %v1529
          %v1748 = vpop.f32.mrf.mxu0
          %v1749 = vadd.f32 %v1562, %v1748
          %v1750 = vpop.f32.mrf.mxu0
          %v1751 = vpop.f32.mrf.mxu0
          %v1752 = vadd.f32 %v1562, %v1751
          %v1753 = vpop.f32.mrf.mxu0
          %1754 = vmatprep.mubr.bf16.mxu0 %v1640
          %1755 = vmatmul.mubr.bf16.gmra.mxu0 %v1532
          %v1756 = vpop.f32.mrf.mxu0
          %v1757 = vadd.f32 %v1562, %v1756
          %v1758 = vpop.f32.mrf.mxu0
          %v1759 = vpop.f32.mrf.mxu0
          %v1760 = vadd.f32 %v1562, %v1759
          %v1761 = vpop.f32.mrf.mxu0
          %1762 = vmatprep.mubr.bf16.mxu0 %v1643
          %1763 = vmatmul.mubr.bf16.gmra.mxu0 %v1535
          %v1764 = vpop.f32.mrf.mxu0
          %v1765 = vadd.f32 %v1562, %v1764
          %v1766 = vpop.f32.mrf.mxu0
          %v1767 = vpop.f32.mrf.mxu0
          %v1768 = vadd.f32 %v1562, %v1767
          %v1769 = vpop.f32.mrf.mxu0
          %1770 = vmatprep.mubr.bf16.mxu0 %v1646
          %1771 = vmatmul.mubr.bf16.gmra.mxu0 %v1538
          %v1772 = vpop.f32.mrf.mxu0
          %v1773 = vadd.f32 %v1562, %v1772
          %v1774 = vpop.f32.mrf.mxu0
          %v1775 = vpop.f32.mrf.mxu0
          %v1776 = vadd.f32 %v1562, %v1775
          %v1777 = vpop.f32.mrf.mxu0
          %1778 = vmatprep.mubr.bf16.mxu0 %v1649
          %1779 = vmatmul.mubr.bf16.gmra.mxu0 %v1541
          %v1780 = vpop.f32.mrf.mxu0
          %v1781 = vadd.f32 %v1562, %v1780
          %v1782 = vpop.f32.mrf.mxu0
          %v1783 = vpop.f32.mrf.mxu0
          %v1784 = vadd.f32 %v1562, %v1783
          %v1785 = vpop.f32.mrf.mxu0
          %1786 = vmatprep.mubr.bf16.mxu0 %v1652
          %1787 = vmatmul.mubr.bf16.gmra.mxu0 %v1544
          %v1788 = vpop.f32.mrf.mxu0
          %v1789 = vadd.f32 %v1562, %v1788
          %v1790 = vpop.f32.mrf.mxu0
          %v1791 = vpop.f32.mrf.mxu0
          %v1792 = vadd.f32 %v1562, %v1791
          %v1793 = vpop.f32.mrf.mxu0
          %1794 = vmatprep.mubr.bf16.mxu0 %v1655
          %1795 = vmatmul.mubr.bf16.gmra.mxu0 %v1547
          %v1796 = vpop.f32.mrf.mxu0
          %v1797 = vadd.f32 %v1562, %v1796
          %v1798 = vpop.f32.mrf.mxu0
          %v1799 = vpop.f32.mrf.mxu0
          %v1800 = vadd.f32 %v1562, %v1799
          %v1801 = vpop.f32.mrf.mxu0
          %1802 = vmatprep.mubr.bf16.mxu0 %v1658
          %1803 = vmatmul.mubr.bf16.gmra.mxu0 %v1550
          %v1804 = vpop.f32.mrf.mxu0
          %v1805 = vadd.f32 %v1562, %v1804
          %v1806 = vpop.f32.mrf.mxu0
          %v1807 = vpop.f32.mrf.mxu0
          %v1808 = vadd.f32 %v1562, %v1807
          %v1809 = vpop.f32.mrf.mxu0
          %1810 = vmatprep.mubr.bf16.mxu0 %v1661
          %1811 = vmatmul.mubr.bf16.gmra.mxu0 %v1553
          %v1812 = vpop.f32.mrf.mxu0
          %v1813 = vadd.f32 %v1562, %v1812
          %v1814 = vpop.f32.mrf.mxu0
          %v1815 = vpop.f32.mrf.mxu0
          %v1816 = vadd.f32 %v1562, %v1815
          %v1817 = vpop.f32.mrf.mxu0
          %1818 = vmatprep.mubr.bf16.mxu0 %v1664
          %1819 = vmatmul.mubr.bf16.gmra.mxu0 %v1556
          %v1820 = vpop.f32.mrf.mxu0
          %v1821 = vadd.f32 %v1562, %v1820
          %v1822 = vpop.f32.mrf.mxu0
          %v1823 = vpop.f32.mrf.mxu0
          %v1824 = vadd.f32 %v1562, %v1823
          %v1825 = vpop.f32.mrf.mxu0
          %1826 = vdwg.mxu0
          %v1827 = vmax.f32 %v1701, 0.0
          %v1828 = vmax.f32 %v1704, 0.0
          %v1829 = vmax.f32 %v1709, 0.0
          %v1830 = vmax.f32 %v1712, 0.0
          %v1831 = vmax.f32 %v1717, 0.0
          %v1832 = vmax.f32 %v1720, 0.0
          %v1833 = vmax.f32 %v1725, 0.0
          %v1834 = vmax.f32 %v1728, 0.0
          %v1835 = vmax.f32 %v1733, 0.0
          %v1836 = vmax.f32 %v1736, 0.0
          %v1837 = vmax.f32 %v1741, 0.0
          %v1838 = vmax.f32 %v1744, 0.0
          %v1839 = vmax.f32 %v1749, 0.0
          %v1840 = vmax.f32 %v1752, 0.0
          %v1841 = vmax.f32 %v1757, 0.0
          %v1842 = vmax.f32 %v1760, 0.0
          %v1843 = vmax.f32 %v1765, 0.0
          %v1844 = vmax.f32 %v1768, 0.0
          %v1845 = vmax.f32 %v1773, 0.0
          %v1846 = vmax.f32 %v1776, 0.0
          %v1847 = vmax.f32 %v1781, 0.0
          %v1848 = vmax.f32 %v1784, 0.0
          %v1849 = vmax.f32 %v1789, 0.0
          %v1850 = vmax.f32 %v1792, 0.0
          %v1851 = vmax.f32 %v1797, 0.0
          %v1852 = vmax.f32 %v1800, 0.0
          %v1853 = vmax.f32 %v1805, 0.0
          %v1854 = vmax.f32 %v1808, 0.0
          %v1855 = vmax.f32 %v1813, 0.0
          %v1856 = vmax.f32 %v1816, 0.0
          %v1857 = vmax.f32 %v1821, 0.0
          %v1858 = vmax.f32 %v1824, 0.0
          %v1859 = vld [vmem:[%s457] sm:$0xf]
          %v1860 = vld [vmem:[%s457 + $0x4] sm:$0xf]
          %v1861 = vld [vmem:[%s457 + $0x8] sm:$0xf]
          %v1862 = vld [vmem:[%s457 + $0xc] sm:$0xf]
          %v1863 = vld [vmem:[%s457 + $0x10] sm:$0xf]
          %v1864 = vld [vmem:[%s457 + $0x14] sm:$0xf]
          %v1865 = vld [vmem:[%s457 + $0x18] sm:$0xf]
          %v1866 = vld [vmem:[%s457 + $0x1c] sm:$0xf]
          %v1867 = vld [vmem:[%s457 + $0x20] sm:$0xf]
          %v1868 = vld [vmem:[%s457 + $0x24] sm:$0xf]
          %v1869 = vld [vmem:[%s457 + $0x28] sm:$0xf]
          %v1870 = vld [vmem:[%s457 + $0x2c] sm:$0xf]
          %v1871 = vld [vmem:[%s457 + $0x30] sm:$0xf]
          %v1872 = vld [vmem:[%s457 + $0x34] sm:$0xf]
          %v1873 = vld [vmem:[%s457 + $0x38] sm:$0xf]
          %v1874 = vld [vmem:[%s457 + $0x3c] sm:$0xf]
          %v1875 = vld [vmem:[%s457 + $0x40] sm:$0xf]
          %v1876 = vld [vmem:[%s457 + $0x44] sm:$0xf]
          %v1877 = vld [vmem:[%s460] sm:$0x1]
          %1878 = vst.msk [vmem:[%s656 + $0x1] sm:$0xff] %vm657, %v1827
          %1879 = vst.msk [vmem:[%s656 + $0x9] sm:$0xff] %vm657, %v1828
          %1880 = vst.msk [vmem:[%s656 + $0x19] sm:$0xff] %vm657, %v1829
          %1881 = vst.msk [vmem:[%s656 + $0x21] sm:$0xff] %vm657, %v1830
          %1882 = vst.msk [vmem:[%s656 + $0x31] sm:$0xff] %vm657, %v1831
          %1883 = vst.msk [vmem:[%s656 + $0x39] sm:$0xff] %vm657, %v1832
          %1884 = vst.msk [vmem:[%s656 + $0x49] sm:$0xff] %vm657, %v1833
          %1885 = vst.msk [vmem:[%s656 + $0x51] sm:$0xff] %vm657, %v1834
          %1886 = vst.msk [vmem:[%s656 + $0x61] sm:$0xff] %vm657, %v1835
          %1887 = vst.msk [vmem:[%s656 + $0x69] sm:$0xff] %vm657, %v1836
          %1888 = vst.msk [vmem:[%s656 + $0x79] sm:$0xff] %vm657, %v1837
          %1889 = vst.msk [vmem:[%s656 + $0x81] sm:$0xff] %vm657, %v1838
          %1890 = vst.msk [vmem:[%s656 + $0x91] sm:$0xff] %vm657, %v1839
          %1891 = vst.msk [vmem:[%s656 + $0x99] sm:$0xff] %vm657, %v1840
          %1892 = vst.msk [vmem:[%s656 + $0xa9] sm:$0xff] %vm657, %v1841
          %1893 = vst.msk [vmem:[%s656 + $0xb1] sm:$0xff] %vm657, %v1842
          %1894 = vst.msk [vmem:[%s656 + $0xc1] sm:$0xff] %vm657, %v1843
          %1895 = vst.msk [vmem:[%s656 + $0xc9] sm:$0xff] %vm657, %v1844
          %1896 = vst.msk [vmem:[%s656 + $0xd9] sm:$0xff] %vm657, %v1845
          %1897 = vst.msk [vmem:[%s656 + $0xe1] sm:$0xff] %vm657, %v1846
          %1898 = vst.msk [vmem:[%s656 + $0xf1] sm:$0xff] %vm657, %v1847
          %1899 = vst.msk [vmem:[%s656 + $0xf9] sm:$0xff] %vm657, %v1848
          %1900 = vst.msk [vmem:[%s656 + $0x109] sm:$0xff] %vm657, %v1849
          %1901 = vst.msk [vmem:[%s656 + $0x111] sm:$0xff] %vm657, %v1850
          %1902 = vst.msk [vmem:[%s656 + $0x121] sm:$0xff] %vm657, %v1851
          %1903 = vst.msk [vmem:[%s656 + $0x129] sm:$0xff] %vm657, %v1852
          %1904 = vst.msk [vmem:[%s656 + $0x139] sm:$0xff] %vm657, %v1853
          %1905 = vst.msk [vmem:[%s656 + $0x141] sm:$0xff] %vm657, %v1854
          %1906 = vst.msk [vmem:[%s656 + $0x151] sm:$0xff] %vm657, %v1855
          %1907 = vst.msk [vmem:[%s656 + $0x159] sm:$0xff] %vm657, %v1856
          %1908 = vst.msk [vmem:[%s656 + $0x169] sm:$0xff] %vm657, %v1857
          %1909 = vst.msk [vmem:[%s656 + $0x171] sm:$0xff] %vm657, %v1858
          %v1910 = vld [vmem:[#allocation2] sm:$0xff]
          %v1911 = vld [vmem:[#allocation2 + $0x8] sm:$0xff]
          %v1912 = vld [vmem:[#allocation2 + $0x10] sm:$0x3]
          %v1913 = vld [vmem:[#allocation2 + $0x18] sm:$0xff]
          %v1914 = vld [vmem:[#allocation2 + $0x20] sm:$0xff]
          %v1915 = vld [vmem:[#allocation2 + $0x28] sm:$0x3]
          %v1916 = vld [vmem:[#allocation2 + $0x30] sm:$0xff]
          %v1917 = vld [vmem:[#allocation2 + $0x38] sm:$0xff]
          %v1918 = vld [vmem:[#allocation2 + $0x40] sm:$0x3]
          %v1919 = vld [vmem:[#allocation2 + $0x48] sm:$0xff]
          %v1920 = vld [vmem:[#allocation2 + $0x50] sm:$0xff]
          %v1921 = vld [vmem:[#allocation2 + $0x58] sm:$0x3]
          %v1922 = vld [vmem:[#allocation2 + $0x60] sm:$0xff]
          %v1923 = vld [vmem:[#allocation2 + $0x68] sm:$0xff]
          %v1924 = vld [vmem:[#allocation2 + $0x70] sm:$0x3]
          %v1925 = vld [vmem:[#allocation2 + $0x78] sm:$0xff]
          %v1926 = vld [vmem:[#allocation2 + $0x80] sm:$0xff]
          %v1927 = vld [vmem:[#allocation2 + $0x88] sm:$0x3]
          %v1928 = vld [vmem:[#allocation2 + $0x90] sm:$0xff]
          %v1929 = vld [vmem:[#allocation2 + $0x98] sm:$0xff]
          %v1930 = vld [vmem:[#allocation2 + $0xa0] sm:$0x3]
          %v1931 = vld [vmem:[#allocation2 + $0xa8] sm:$0xff]
          %v1932 = vld [vmem:[#allocation2 + $0xb0] sm:$0xff]
          %v1933 = vld [vmem:[#allocation2 + $0xb8] sm:$0x3]
          %v1934 = vld [vmem:[#allocation2 + $0xc0] sm:$0xff]
          %v1935 = vld [vmem:[#allocation2 + $0xc8] sm:$0xff]
          %v1936 = vld [vmem:[#allocation2 + $0xd0] sm:$0x3]
          %v1937 = vld [vmem:[#allocation2 + $0xd8] sm:$0xff]
          %v1938 = vld [vmem:[#allocation2 + $0xe0] sm:$0xff]
          %v1939 = vld [vmem:[#allocation2 + $0xe8] sm:$0x3]
          %v1940 = vld [vmem:[#allocation2 + $0xf0] sm:$0xff]
          %v1941 = vld [vmem:[#allocation2 + $0xf8] sm:$0xff]
          %v1942 = vld [vmem:[#allocation2 + $0x100] sm:$0x3]
          %v1943 = vld [vmem:[#allocation2 + $0x108] sm:$0xff]
          %v1944 = vld [vmem:[#allocation2 + $0x110] sm:$0xff]
          %v1945 = vld [vmem:[#allocation2 + $0x118] sm:$0x3]
          %v1946 = vld [vmem:[#allocation2 + $0x120] sm:$0xff]
          %v1947 = vld [vmem:[#allocation2 + $0x128] sm:$0xff]
          %v1948 = vld [vmem:[#allocation2 + $0x130] sm:$0x3]
          %v1949 = vld [vmem:[#allocation2 + $0x138] sm:$0xff]
          %v1950 = vld [vmem:[#allocation2 + $0x140] sm:$0xff]
          %v1951 = vld [vmem:[#allocation2 + $0x148] sm:$0x3]
          %v1952 = vld [vmem:[#allocation2 + $0x150] sm:$0xff]
          %v1953 = vld [vmem:[#allocation2 + $0x158] sm:$0xff]
          %v1954 = vld [vmem:[#allocation2 + $0x160] sm:$0x3]
          %v1955 = vld [vmem:[#allocation2 + $0x168] sm:$0xff]
          %v1956 = vld [vmem:[#allocation2 + $0x170] sm:$0xff]
          %v1957 = vld [vmem:[#allocation2 + $0x178] sm:$0x3]
          %v1958 = vld [vmem:[#allocation2 + $0x180] sm:$0xff]
          %v1959 = vld [vmem:[#allocation2 + $0x188] sm:$0xff]
          %v1960 = vld [vmem:[#allocation2 + $0x190] sm:$0x3]
          %v1961 = vld [vmem:[#allocation2 + $0x198] sm:$0xff]
          %v1962 = vld [vmem:[#allocation2 + $0x1a0] sm:$0xff]
          %v1963 = vld [vmem:[#allocation2 + $0x1a8] sm:$0x3]
          %v1964 = vpack.c.bf16 %v1911, %v1910
          %v1965 = vpack.c.bf16 %v1912, %v1912
          %v1966 = vpack.c.bf16 %v1914, %v1913
          %v1967 = vpack.c.bf16 %v1915, %v1915
          %v1968 = vpack.c.bf16 %v1917, %v1916
          %v1969 = vpack.c.bf16 %v1918, %v1918
          %v1970 = vpack.c.bf16 %v1920, %v1919
          %v1971 = vpack.c.bf16 %v1921, %v1921
          %v1972 = vpack.c.bf16 %v1923, %v1922
          %v1973 = vpack.c.bf16 %v1924, %v1924
          %v1974 = vpack.c.bf16 %v1926, %v1925
          %v1975 = vpack.c.bf16 %v1927, %v1927
          %v1976 = vpack.c.bf16 %v1929, %v1928
          %v1977 = vpack.c.bf16 %v1930, %v1930
          %v1978 = vpack.c.bf16 %v1932, %v1931
          %v1979 = vpack.c.bf16 %v1933, %v1933
          %v1980 = vpack.c.bf16 %v1935, %v1934
          %v1981 = vpack.c.bf16 %v1936, %v1936
          %v1982 = vpack.c.bf16 %v1938, %v1937
          %v1983 = vpack.c.bf16 %v1939, %v1939
          %v1984 = vpack.c.bf16 %v1941, %v1940
          %v1985 = vpack.c.bf16 %v1942, %v1942
          %v1986 = vpack.c.bf16 %v1944, %v1943
          %v1987 = vpack.c.bf16 %v1945, %v1945
          %v1988 = vpack.c.bf16 %v1947, %v1946
          %v1989 = vpack.c.bf16 %v1948, %v1948
          %v1990 = vpack.c.bf16 %v1950, %v1949
          %v1991 = vpack.c.bf16 %v1951, %v1951
          %v1992 = vpack.c.bf16 %v1953, %v1952
          %v1993 = vpack.c.bf16 %v1954, %v1954
          %v1994 = vpack.c.bf16 %v1956, %v1955
          %v1995 = vpack.c.bf16 %v1957, %v1957
          %v1996 = vpack.c.bf16 %v1959, %v1958
          %v1997 = vpack.c.bf16 %v1960, %v1960
          %v1998 = vpack.c.bf16 %v1962, %v1961
          %v1999 = vpack.c.bf16 %v1963, %v1963
          %v2001 = vshrl.u32 %v1964, 16
          %v2003 = vshll.u32 %v1964, 16
          %v2005 = vrot.slane %v2003, 1
          %v2006 = vor.u32 %v2001, %v2005
          %v2008 = vshll.u32 %v1965, 16
          %v2010 = vrot.slane %v2008, 1
          %v2011 = vsel %vm780, %v2006, %v2010
          %v2013 = vshrl.u32 %v1966, 16
          %v2015 = vshll.u32 %v1966, 16
          %v2017 = vrot.slane %v2015, 1
          %v2018 = vor.u32 %v2013, %v2017
          %v2020 = vshll.u32 %v1967, 16
          %v2022 = vrot.slane %v2020, 1
          %v2023 = vsel %vm780, %v2018, %v2022
          %v2025 = vshrl.u32 %v1968, 16
          %v2027 = vshll.u32 %v1968, 16
          %v2029 = vrot.slane %v2027, 1
          %v2030 = vor.u32 %v2025, %v2029
          %v2032 = vshll.u32 %v1969, 16
          %v2034 = vrot.slane %v2032, 1
          %v2035 = vsel %vm780, %v2030, %v2034
          %v2037 = vshrl.u32 %v1970, 16
          %v2039 = vshll.u32 %v1970, 16
          %v2041 = vrot.slane %v2039, 1
          %v2042 = vor.u32 %v2037, %v2041
          %v2044 = vshll.u32 %v1971, 16
          %v2046 = vrot.slane %v2044, 1
          %v2047 = vsel %vm780, %v2042, %v2046
          %v2049 = vshrl.u32 %v1972, 16
          %v2051 = vshll.u32 %v1972, 16
          %v2053 = vrot.slane %v2051, 1
          %v2054 = vor.u32 %v2049, %v2053
          %v2056 = vshll.u32 %v1973, 16
          %v2058 = vrot.slane %v2056, 1
          %v2059 = vsel %vm780, %v2054, %v2058
          %v2061 = vshrl.u32 %v1974, 16
          %v2063 = vshll.u32 %v1974, 16
          %v2065 = vrot.slane %v2063, 1
          %v2066 = vor.u32 %v2061, %v2065
          %v2068 = vshll.u32 %v1975, 16
          %v2070 = vrot.slane %v2068, 1
          %v2071 = vsel %vm780, %v2066, %v2070
          %v2073 = vshrl.u32 %v1976, 16
          %v2075 = vshll.u32 %v1976, 16
          %v2077 = vrot.slane %v2075, 1
          %v2078 = vor.u32 %v2073, %v2077
          %v2080 = vshll.u32 %v1977, 16
          %v2082 = vrot.slane %v2080, 1
          %v2083 = vsel %vm780, %v2078, %v2082
          %v2085 = vshrl.u32 %v1978, 16
          %v2087 = vshll.u32 %v1978, 16
          %v2089 = vrot.slane %v2087, 1
          %v2090 = vor.u32 %v2085, %v2089
          %v2092 = vshll.u32 %v1979, 16
          %v2094 = vrot.slane %v2092, 1
          %v2095 = vsel %vm780, %v2090, %v2094
          %v2097 = vshrl.u32 %v1980, 16
          %v2099 = vshll.u32 %v1980, 16
          %v2101 = vrot.slane %v2099, 1
          %v2102 = vor.u32 %v2097, %v2101
          %v2104 = vshll.u32 %v1981, 16
          %v2106 = vrot.slane %v2104, 1
          %v2107 = vsel %vm780, %v2102, %v2106
          %v2109 = vshrl.u32 %v1982, 16
          %v2111 = vshll.u32 %v1982, 16
          %v2113 = vrot.slane %v2111, 1
          %v2114 = vor.u32 %v2109, %v2113
          %v2116 = vshll.u32 %v1983, 16
          %v2118 = vrot.slane %v2116, 1
          %v2119 = vsel %vm780, %v2114, %v2118
          %v2121 = vshrl.u32 %v1984, 16
          %v2123 = vshll.u32 %v1984, 16
          %v2125 = vrot.slane %v2123, 1
          %v2126 = vor.u32 %v2121, %v2125
          %v2128 = vshll.u32 %v1985, 16
          %v2130 = vrot.slane %v2128, 1
          %v2131 = vsel %vm780, %v2126, %v2130
          %v2133 = vshrl.u32 %v1986, 16
          %v2135 = vshll.u32 %v1986, 16
          %v2137 = vrot.slane %v2135, 1
          %v2138 = vor.u32 %v2133, %v2137
          %v2140 = vshll.u32 %v1987, 16
          %v2142 = vrot.slane %v2140, 1
          %v2143 = vsel %vm780, %v2138, %v2142
          %v2145 = vshrl.u32 %v1988, 16
          %v2147 = vshll.u32 %v1988, 16
          %v2149 = vrot.slane %v2147, 1
          %v2150 = vor.u32 %v2145, %v2149
          %v2152 = vshll.u32 %v1989, 16
          %v2154 = vrot.slane %v2152, 1
          %v2155 = vsel %vm780, %v2150, %v2154
          %v2157 = vshrl.u32 %v1990, 16
          %v2159 = vshll.u32 %v1990, 16
          %v2161 = vrot.slane %v2159, 1
          %v2162 = vor.u32 %v2157, %v2161
          %v2164 = vshll.u32 %v1991, 16
          %v2166 = vrot.slane %v2164, 1
          %v2167 = vsel %vm780, %v2162, %v2166
          %v2169 = vshrl.u32 %v1992, 16
          %v2171 = vshll.u32 %v1992, 16
          %v2173 = vrot.slane %v2171, 1
          %v2174 = vor.u32 %v2169, %v2173
          %v2176 = vshll.u32 %v1993, 16
          %v2178 = vrot.slane %v2176, 1
          %v2179 = vsel %vm780, %v2174, %v2178
          %v2181 = vshrl.u32 %v1994, 16
          %v2183 = vshll.u32 %v1994, 16
          %v2185 = vrot.slane %v2183, 1
          %v2186 = vor.u32 %v2181, %v2185
          %v2188 = vshll.u32 %v1995, 16
          %v2190 = vrot.slane %v2188, 1
          %v2191 = vsel %vm780, %v2186, %v2190
          %v2224 = vrot.slane %v1964, 1
          %v2225 = vrot.slane %v1965, 1
          %v2226 = vsel %vm1005, %v2224, %v2225
          %v2227 = vrot.slane %v1966, 1
          %v2228 = vrot.slane %v1967, 1
          %v2229 = vsel %vm1005, %v2227, %v2228
          %v2230 = vrot.slane %v1968, 1
          %v2231 = vrot.slane %v1969, 1
          %v2232 = vsel %vm1005, %v2230, %v2231
          %v2233 = vrot.slane %v1970, 1
          %v2234 = vrot.slane %v1971, 1
          %v2235 = vsel %vm1005, %v2233, %v2234
          %v2236 = vrot.slane %v1972, 1
          %v2237 = vrot.slane %v1973, 1
          %v2238 = vsel %vm1005, %v2236, %v2237
          %v2239 = vrot.slane %v1974, 1
          %v2240 = vrot.slane %v1975, 1
          %v2241 = vsel %vm1005, %v2239, %v2240
          %v2242 = vrot.slane %v1976, 1
          %v2243 = vrot.slane %v1977, 1
          %v2244 = vsel %vm1005, %v2242, %v2243
          %v2245 = vrot.slane %v1978, 1
          %v2246 = vrot.slane %v1979, 1
          %v2247 = vsel %vm1005, %v2245, %v2246
          %v2248 = vrot.slane %v1980, 1
          %v2249 = vrot.slane %v1981, 1
          %v2250 = vsel %vm1005, %v2248, %v2249
          %v2251 = vrot.slane %v1982, 1
          %v2252 = vrot.slane %v1983, 1
          %v2253 = vsel %vm1005, %v2251, %v2252
          %v2254 = vrot.slane %v1984, 1
          %v2255 = vrot.slane %v1985, 1
          %v2256 = vsel %vm1005, %v2254, %v2255
          %v2257 = vrot.slane %v1986, 1
          %v2258 = vrot.slane %v1987, 1
          %v2259 = vsel %vm1005, %v2257, %v2258
          %v2260 = vrot.slane %v1988, 1
          %v2261 = vrot.slane %v1989, 1
          %v2262 = vsel %vm1005, %v2260, %v2261
          %v2263 = vrot.slane %v1990, 1
          %v2264 = vrot.slane %v1991, 1
          %v2265 = vsel %vm1005, %v2263, %v2264
          %v2266 = vrot.slane %v1992, 1
          %v2267 = vrot.slane %v1993, 1
          %v2268 = vsel %vm1005, %v2266, %v2267
          %v2269 = vrot.slane %v1994, 1
          %v2270 = vrot.slane %v1995, 1
          %v2271 = vsel %vm1005, %v2269, %v2270
          %v2273 = vshrl.u32 %v1996, 16
          %v2275 = vshll.u32 %v1996, 16
          %v2277 = vrot.slane %v2275, 1
          %v2278 = vor.u32 %v2273, %v2277
          %v2280 = vshll.u32 %v1997, 16
          %v2282 = vrot.slane %v2280, 1
          %v2283 = vsel %vm780, %v2278, %v2282
          %v2286 = vrot.slane %v1996, 1
          %v2287 = vrot.slane %v1997, 1
          %v2288 = vsel %vm1005, %v2286, %v2287
          %v2290 = vshrl.u32 %v1998, 16
          %v2292 = vshll.u32 %v1998, 16
          %v2294 = vrot.slane %v2292, 1
          %v2295 = vor.u32 %v2290, %v2294
          %v2297 = vshll.u32 %v1999, 16
          %v2299 = vrot.slane %v2297, 1
          %v2300 = vsel %vm780, %v2295, %v2299
          %v2303 = vrot.slane %v1998, 1
          %v2304 = vrot.slane %v1999, 1
          %v2305 = vsel %vm1005, %v2303, %v2304
          %2306 = vrot.lane.b32.xlu0 %v2011, 16
          %v2307 = vpop.permute.xlu0 %2306
          %2308 = vrot.lane.b32.xlu0 %v2023, 16
          %v2309 = vpop.permute.xlu0 %2308
          %2310 = vrot.lane.b32.xlu0 %v2035, 16
          %v2311 = vpop.permute.xlu0 %2310
          %2312 = vrot.lane.b32.xlu0 %v2047, 16
          %v2313 = vpop.permute.xlu0 %2312
          %2314 = vrot.lane.b32.xlu0 %v2059, 16
          %v2315 = vpop.permute.xlu0 %2314
          %2316 = vrot.lane.b32.xlu0 %v2071, 16
          %v2317 = vpop.permute.xlu0 %2316
          %2318 = vrot.lane.b32.xlu0 %v2083, 16
          %v2319 = vpop.permute.xlu0 %2318
          %2320 = vrot.lane.b32.xlu0 %v2095, 16
          %v2321 = vpop.permute.xlu0 %2320
          %2322 = vrot.lane.b32.xlu0 %v2107, 16
          %v2323 = vpop.permute.xlu0 %2322
          %2324 = vrot.lane.b32.xlu0 %v2119, 16
          %v2325 = vpop.permute.xlu0 %2324
          %2326 = vrot.lane.b32.xlu0 %v2131, 16
          %v2327 = vpop.permute.xlu0 %2326
          %2328 = vrot.lane.b32.xlu0 %v2143, 16
          %v2329 = vpop.permute.xlu0 %2328
          %2330 = vrot.lane.b32.xlu0 %v2155, 16
          %v2331 = vpop.permute.xlu0 %2330
          %2332 = vrot.lane.b32.xlu0 %v2167, 16
          %v2333 = vpop.permute.xlu0 %2332
          %2334 = vrot.lane.b32.xlu0 %v2179, 16
          %v2335 = vpop.permute.xlu0 %2334
          %2336 = vrot.lane.b32.xlu0 %v2191, 16
          %v2337 = vpop.permute.xlu0 %2336
          %2338 = vrot.lane.b32.xlu0 %v2226, 32
          %v2339 = vpop.permute.xlu0 %2338
          %2340 = vrot.lane.b32.xlu0 %v2229, 32
          %v2341 = vpop.permute.xlu0 %2340
          %2342 = vrot.lane.b32.xlu0 %v2232, 32
          %v2343 = vpop.permute.xlu0 %2342
          %2344 = vrot.lane.b32.xlu0 %v2235, 32
          %v2345 = vpop.permute.xlu0 %2344
          %2346 = vrot.lane.b32.xlu0 %v2238, 32
          %v2347 = vpop.permute.xlu0 %2346
          %2348 = vrot.lane.b32.xlu0 %v2241, 32
          %v2349 = vpop.permute.xlu0 %2348
          %2350 = vrot.lane.b32.xlu0 %v2244, 32
          %v2351 = vpop.permute.xlu0 %2350
          %2352 = vrot.lane.b32.xlu0 %v2247, 32
          %v2353 = vpop.permute.xlu0 %2352
          %2354 = vrot.lane.b32.xlu0 %v2250, 32
          %v2355 = vpop.permute.xlu0 %2354
          %2356 = vrot.lane.b32.xlu0 %v2253, 32
          %v2357 = vpop.permute.xlu0 %2356
          %2358 = vrot.lane.b32.xlu0 %v2256, 32
          %v2359 = vpop.permute.xlu0 %2358
          %2360 = vrot.lane.b32.xlu0 %v2259, 32
          %v2361 = vpop.permute.xlu0 %2360
          %2362 = vrot.lane.b32.xlu0 %v2262, 32
          %v2363 = vpop.permute.xlu0 %2362
          %2364 = vrot.lane.b32.xlu0 %v2265, 32
          %v2365 = vpop.permute.xlu0 %2364
          %2366 = vrot.lane.b32.xlu0 %v2268, 32
          %v2367 = vpop.permute.xlu0 %2366
          %2368 = vrot.lane.b32.xlu0 %v2271, 32
          %v2369 = vpop.permute.xlu0 %2368
          %2370 = vrot.lane.b32.xlu0 %v1966, 48
          %v2371 = vpop.permute.xlu0 %2370
          %2372 = vrot.lane.b32.xlu0 %v1968, 48
          %v2373 = vpop.permute.xlu0 %2372
          %2374 = vrot.lane.b32.xlu0 %v1970, 48
          %v2375 = vpop.permute.xlu0 %2374
          %2376 = vrot.lane.b32.xlu0 %v1972, 48
          %v2377 = vpop.permute.xlu0 %2376
          %2378 = vrot.lane.b32.xlu0 %v1974, 48
          %v2379 = vpop.permute.xlu0 %2378
          %2380 = vrot.lane.b32.xlu0 %v1976, 48
          %v2381 = vpop.permute.xlu0 %2380
          %2382 = vrot.lane.b32.xlu0 %v1978, 48
          %v2383 = vpop.permute.xlu0 %2382
          %2384 = vrot.lane.b32.xlu0 %v1980, 48
          %v2385 = vpop.permute.xlu0 %2384
          %2386 = vrot.lane.b32.xlu0 %v1982, 48
          %v2387 = vpop.permute.xlu0 %2386
          %2388 = vrot.lane.b32.xlu0 %v1984, 48
          %v2389 = vpop.permute.xlu0 %2388
          %2390 = vrot.lane.b32.xlu0 %v1986, 48
          %v2391 = vpop.permute.xlu0 %2390
          %2392 = vrot.lane.b32.xlu0 %v1988, 48
          %v2393 = vpop.permute.xlu0 %2392
          %2394 = vrot.lane.b32.xlu0 %v1990, 48
          %v2395 = vpop.permute.xlu0 %2394
          %2396 = vrot.lane.b32.xlu0 %v1992, 48
          %v2397 = vpop.permute.xlu0 %2396
          %2398 = vrot.lane.b32.xlu0 %v1994, 48
          %v2399 = vpop.permute.xlu0 %2398
          %2400 = vrot.lane.b32.xlu0 %v1996, 48
          %v2401 = vpop.permute.xlu0 %2400
          %2402 = vrot.lane.b32.xlu0 %v2023, 64
          %v2403 = vpop.permute.xlu0 %2402
          %2404 = vrot.lane.b32.xlu0 %v2035, 64
          %v2405 = vpop.permute.xlu0 %2404
          %2406 = vrot.lane.b32.xlu0 %v2047, 64
          %v2407 = vpop.permute.xlu0 %2406
          %2408 = vrot.lane.b32.xlu0 %v2059, 64
          %v2409 = vpop.permute.xlu0 %2408
          %2410 = vrot.lane.b32.xlu0 %v2071, 64
          %v2411 = vpop.permute.xlu0 %2410
          %2412 = vrot.lane.b32.xlu0 %v2083, 64
          %v2413 = vpop.permute.xlu0 %2412
          %2414 = vrot.lane.b32.xlu0 %v2095, 64
          %v2415 = vpop.permute.xlu0 %2414
          %2416 = vrot.lane.b32.xlu0 %v2107, 64
          %v2417 = vpop.permute.xlu0 %2416
          %2418 = vrot.lane.b32.xlu0 %v2119, 64
          %v2419 = vpop.permute.xlu0 %2418
          %2420 = vrot.lane.b32.xlu0 %v2131, 64
          %v2421 = vpop.permute.xlu0 %2420
          %2422 = vrot.lane.b32.xlu0 %v2143, 64
          %v2423 = vpop.permute.xlu0 %2422
          %2424 = vrot.lane.b32.xlu0 %v2155, 64
          %v2425 = vpop.permute.xlu0 %2424
          %2426 = vrot.lane.b32.xlu0 %v2167, 64
          %v2427 = vpop.permute.xlu0 %2426
          %2428 = vrot.lane.b32.xlu0 %v2179, 64
          %v2429 = vpop.permute.xlu0 %2428
          %2430 = vrot.lane.b32.xlu0 %v2191, 64
          %v2431 = vpop.permute.xlu0 %2430
          %2432 = vrot.lane.b32.xlu0 %v2283, 64
          %v2433 = vpop.permute.xlu0 %2432
          %2434 = vrot.lane.b32.xlu0 %v2229, 80
          %v2435 = vpop.permute.xlu0 %2434
          %2436 = vrot.lane.b32.xlu0 %v2232, 80
          %v2437 = vpop.permute.xlu0 %2436
          %2438 = vrot.lane.b32.xlu0 %v2235, 80
          %v2439 = vpop.permute.xlu0 %2438
          %2440 = vrot.lane.b32.xlu0 %v2238, 80
          %v2441 = vpop.permute.xlu0 %2440
          %2442 = vrot.lane.b32.xlu0 %v2241, 80
          %v2443 = vpop.permute.xlu0 %2442
          %2444 = vrot.lane.b32.xlu0 %v2244, 80
          %v2445 = vpop.permute.xlu0 %2444
          %2446 = vrot.lane.b32.xlu0 %v2247, 80
          %v2447 = vpop.permute.xlu0 %2446
          %2448 = vrot.lane.b32.xlu0 %v2250, 80
          %v2449 = vpop.permute.xlu0 %2448
          %2450 = vrot.lane.b32.xlu0 %v2253, 80
          %v2451 = vpop.permute.xlu0 %2450
          %2452 = vrot.lane.b32.xlu0 %v2256, 80
          %v2453 = vpop.permute.xlu0 %2452
          %2454 = vrot.lane.b32.xlu0 %v2259, 80
          %v2455 = vpop.permute.xlu0 %2454
          %2456 = vrot.lane.b32.xlu0 %v2262, 80
          %v2457 = vpop.permute.xlu0 %2456
          %2458 = vrot.lane.b32.xlu0 %v2265, 80
          %v2459 = vpop.permute.xlu0 %2458
          %2460 = vrot.lane.b32.xlu0 %v2268, 80
          %v2461 = vpop.permute.xlu0 %2460
          %2462 = vrot.lane.b32.xlu0 %v2271, 80
          %v2463 = vpop.permute.xlu0 %2462
          %2464 = vrot.lane.b32.xlu0 %v2288, 80
          %v2465 = vpop.permute.xlu0 %2464
          %2466 = vrot.lane.b32.xlu0 %v1968, 96
          %v2467 = vpop.permute.xlu0 %2466
          %2468 = vrot.lane.b32.xlu0 %v1970, 96
          %v2469 = vpop.permute.xlu0 %2468
          %2470 = vrot.lane.b32.xlu0 %v1972, 96
          %v2471 = vpop.permute.xlu0 %2470
          %2472 = vrot.lane.b32.xlu0 %v1974, 96
          %v2473 = vpop.permute.xlu0 %2472
          %2474 = vrot.lane.b32.xlu0 %v1976, 96
          %v2475 = vpop.permute.xlu0 %2474
          %2476 = vrot.lane.b32.xlu0 %v1978, 96
          %v2477 = vpop.permute.xlu0 %2476
          %2478 = vrot.lane.b32.xlu0 %v1980, 96
          %v2479 = vpop.permute.xlu0 %2478
          %2480 = vrot.lane.b32.xlu0 %v1982, 96
          %v2481 = vpop.permute.xlu0 %2480
          %2482 = vrot.lane.b32.xlu0 %v1984, 96
          %v2483 = vpop.permute.xlu0 %2482
          %2484 = vrot.lane.b32.xlu0 %v1986, 96
          %v2485 = vpop.permute.xlu0 %2484
          %2486 = vrot.lane.b32.xlu0 %v1988, 96
          %v2487 = vpop.permute.xlu0 %2486
          %2488 = vrot.lane.b32.xlu0 %v1990, 96
          %v2489 = vpop.permute.xlu0 %2488
          %2490 = vrot.lane.b32.xlu0 %v1992, 96
          %v2491 = vpop.permute.xlu0 %2490
          %2492 = vrot.lane.b32.xlu0 %v1994, 96
          %v2493 = vpop.permute.xlu0 %2492
          %2494 = vrot.lane.b32.xlu0 %v1996, 96
          %v2495 = vpop.permute.xlu0 %2494
          %2496 = vrot.lane.b32.xlu0 %v1998, 96
          %v2497 = vpop.permute.xlu0 %2496
          %2498 = vrot.lane.b32.xlu0 %v2035, 112
          %v2499 = vpop.permute.xlu0 %2498
          %2500 = vrot.lane.b32.xlu0 %v2047, 112
          %v2501 = vpop.permute.xlu0 %2500
          %2502 = vrot.lane.b32.xlu0 %v2059, 112
          %v2503 = vpop.permute.xlu0 %2502
          %2504 = vrot.lane.b32.xlu0 %v2071, 112
          %v2505 = vpop.permute.xlu0 %2504
          %2506 = vrot.lane.b32.xlu0 %v2083, 112
          %v2507 = vpop.permute.xlu0 %2506
          %2508 = vrot.lane.b32.xlu0 %v2095, 112
          %v2509 = vpop.permute.xlu0 %2508
          %2510 = vrot.lane.b32.xlu0 %v2107, 112
          %v2511 = vpop.permute.xlu0 %2510
          %2512 = vrot.lane.b32.xlu0 %v2119, 112
          %v2513 = vpop.permute.xlu0 %2512
          %2514 = vrot.lane.b32.xlu0 %v2131, 112
          %v2515 = vpop.permute.xlu0 %2514
          %2516 = vrot.lane.b32.xlu0 %v2143, 112
          %v2517 = vpop.permute.xlu0 %2516
          %2518 = vrot.lane.b32.xlu0 %v2155, 112
          %v2519 = vpop.permute.xlu0 %2518
          %2520 = vrot.lane.b32.xlu0 %v2167, 112
          %v2521 = vpop.permute.xlu0 %2520
          %2522 = vrot.lane.b32.xlu0 %v2179, 112
          %v2523 = vpop.permute.xlu0 %2522
          %2524 = vrot.lane.b32.xlu0 %v2191, 112
          %v2525 = vpop.permute.xlu0 %2524
          %2526 = vrot.lane.b32.xlu0 %v2283, 112
          %v2527 = vpop.permute.xlu0 %2526
          %2528 = vrot.lane.b32.xlu0 %v2300, 112
          %v2529 = vpop.permute.xlu0 %2528
          %v2531 = vsel %vm657, %v1964, %v2307
          %v2533 = vsel %vm657, %v1966, %v2309
          %v2535 = vsel %vm657, %v1968, %v2311
          %v2537 = vsel %vm657, %v1970, %v2313
          %v2539 = vsel %vm657, %v1972, %v2315
          %v2541 = vsel %vm657, %v1974, %v2317
          %v2543 = vsel %vm657, %v1976, %v2319
          %v2545 = vsel %vm657, %v1978, %v2321
          %v2547 = vsel %vm657, %v1980, %v2323
          %v2549 = vsel %vm657, %v1982, %v2325
          %v2551 = vsel %vm657, %v1984, %v2327
          %v2553 = vsel %vm657, %v1986, %v2329
          %v2555 = vsel %vm657, %v1988, %v2331
          %v2557 = vsel %vm657, %v1990, %v2333
          %v2559 = vsel %vm657, %v1992, %v2335
          %v2561 = vsel %vm657, %v1994, %v2337
          %v2563 = vsel %vm1344, %v2531, %v2339
          %v2565 = vsel %vm1344, %v2533, %v2341
          %v2567 = vsel %vm1344, %v2535, %v2343
          %v2569 = vsel %vm1344, %v2537, %v2345
          %v2571 = vsel %vm1344, %v2539, %v2347
          %v2573 = vsel %vm1344, %v2541, %v2349
          %v2575 = vsel %vm1344, %v2543, %v2351
          %v2577 = vsel %vm1344, %v2545, %v2353
          %v2579 = vsel %vm1344, %v2547, %v2355
          %v2581 = vsel %vm1344, %v2549, %v2357
          %v2583 = vsel %vm1344, %v2551, %v2359
          %v2585 = vsel %vm1344, %v2553, %v2361
          %v2587 = vsel %vm1344, %v2555, %v2363
          %v2589 = vsel %vm1344, %v2557, %v2365
          %v2591 = vsel %vm1344, %v2559, %v2367
          %v2593 = vsel %vm1344, %v2561, %v2369
          %v2595 = vsel %vm1377, %v2563, %v2371
          %v2597 = vsel %vm1377, %v2565, %v2373
          %v2599 = vsel %vm1377, %v2567, %v2375
          %v2601 = vsel %vm1377, %v2569, %v2377
          %v2603 = vsel %vm1377, %v2571, %v2379
          %v2605 = vsel %vm1377, %v2573, %v2381
          %v2607 = vsel %vm1377, %v2575, %v2383
          %v2609 = vsel %vm1377, %v2577, %v2385
          %v2611 = vsel %vm1377, %v2579, %v2387
          %v2613 = vsel %vm1377, %v2581, %v2389
          %v2615 = vsel %vm1377, %v2583, %v2391
          %v2617 = vsel %vm1377, %v2585, %v2393
          %v2619 = vsel %vm1377, %v2587, %v2395
          %v2621 = vsel %vm1377, %v2589, %v2397
          %v2623 = vsel %vm1377, %v2591, %v2399
          %v2625 = vsel %vm1377, %v2593, %v2401
          %v2627 = vsel %vm1410, %v2595, %v2403
          %v2629 = vsel %vm1410, %v2597, %v2405
          %v2631 = vsel %vm1410, %v2599, %v2407
          %v2633 = vsel %vm1410, %v2601, %v2409
          %v2635 = vsel %vm1410, %v2603, %v2411
          %v2637 = vsel %vm1410, %v2605, %v2413
          %v2639 = vsel %vm1410, %v2607, %v2415
          %v2641 = vsel %vm1410, %v2609, %v2417
          %v2643 = vsel %vm1410, %v2611, %v2419
          %v2645 = vsel %vm1410, %v2613, %v2421
          %v2647 = vsel %vm1410, %v2615, %v2423
          %v2649 = vsel %vm1410, %v2617, %v2425
          %v2651 = vsel %vm1410, %v2619, %v2427
          %v2653 = vsel %vm1410, %v2621, %v2429
          %v2655 = vsel %vm1410, %v2623, %v2431
          %v2657 = vsel %vm1410, %v2625, %v2433
          %v2659 = vsel %vm1443, %v2627, %v2435
          %v2661 = vsel %vm1443, %v2629, %v2437
          %v2663 = vsel %vm1443, %v2631, %v2439
          %v2665 = vsel %vm1443, %v2633, %v2441
          %v2667 = vsel %vm1443, %v2635, %v2443
          %v2669 = vsel %vm1443, %v2637, %v2445
          %v2671 = vsel %vm1443, %v2639, %v2447
          %v2673 = vsel %vm1443, %v2641, %v2449
          %v2675 = vsel %vm1443, %v2643, %v2451
          %v2677 = vsel %vm1443, %v2645, %v2453
          %v2679 = vsel %vm1443, %v2647, %v2455
          %v2681 = vsel %vm1443, %v2649, %v2457
          %v2683 = vsel %vm1443, %v2651, %v2459
          %v2685 = vsel %vm1443, %v2653, %v2461
          %v2687 = vsel %vm1443, %v2655, %v2463
          %v2689 = vsel %vm1443, %v2657, %v2465
          %v2691 = vsel %vm1476, %v2659, %v2467
          %v2693 = vsel %vm1476, %v2661, %v2469
          %v2695 = vsel %vm1476, %v2663, %v2471
          %v2697 = vsel %vm1476, %v2665, %v2473
          %v2699 = vsel %vm1476, %v2667, %v2475
          %v2701 = vsel %vm1476, %v2669, %v2477
          %v2703 = vsel %vm1476, %v2671, %v2479
          %v2705 = vsel %vm1476, %v2673, %v2481
          %v2707 = vsel %vm1476, %v2675, %v2483
          %v2709 = vsel %vm1476, %v2677, %v2485
          %v2711 = vsel %vm1476, %v2679, %v2487
          %v2713 = vsel %vm1476, %v2681, %v2489
          %v2715 = vsel %vm1476, %v2683, %v2491
          %v2717 = vsel %vm1476, %v2685, %v2493
          %v2719 = vsel %vm1476, %v2687, %v2495
          %v2721 = vsel %vm1476, %v2689, %v2497
          %v2723 = vsel %vm1509, %v2691, %v2499
          %v2726 = vsel %vm1509, %v2693, %v2501
          %v2729 = vsel %vm1509, %v2695, %v2503
          %v2732 = vsel %vm1509, %v2697, %v2505
          %v2735 = vsel %vm1509, %v2699, %v2507
          %v2738 = vsel %vm1509, %v2701, %v2509
          %v2741 = vsel %vm1509, %v2703, %v2511
          %v2744 = vsel %vm1509, %v2705, %v2513
          %v2747 = vsel %vm1509, %v2707, %v2515
          %v2750 = vsel %vm1509, %v2709, %v2517
          %v2753 = vsel %vm1509, %v2711, %v2519
          %v2756 = vsel %vm1509, %v2713, %v2521
          %v2759 = vsel %vm1509, %v2715, %v2523
          %v2762 = vsel %vm1509, %v2717, %v2525
          %v2765 = vsel %vm1509, %v2719, %v2527
          %v2768 = vsel %vm1509, %v2721, %v2529
          %v2771 = vlaneseq
          %v2772 = vshrl.u32 %v2771, 7
          %v2773 = vsub.s32 0, %v2772
          %v2774 = vrot.slane %v1877, %v2773
          %v2794 = vunpack.c.l.b16 %v1859
          %v2795 = vunpack.c.l.b16 %v1860
          %v2796 = vunpack.c.l.b16 %v1861
          %v2797 = vunpack.c.l.b16 %v1862
          %v2798 = vunpack.c.l.b16 %v1863
          %v2799 = vunpack.c.l.b16 %v1864
          %v2800 = vunpack.c.l.b16 %v1865
          %v2801 = vunpack.c.l.b16 %v1866
          %v2802 = vunpack.c.l.b16 %v1867
          %v2803 = vunpack.c.l.b16 %v1868
          %v2804 = vunpack.c.l.b16 %v1869
          %v2805 = vunpack.c.l.b16 %v1870
          %v2806 = vunpack.c.l.b16 %v1871
          %v2807 = vunpack.c.l.b16 %v1872
          %v2808 = vunpack.c.l.b16 %v1873
          %v2809 = vunpack.c.l.b16 %v1874
          %v2810 = vunpack.c.l.b16 %v1875
          %v2811 = vunpack.c.l.b16 %v1876
          %v2812 = vpack.c.b16 %v2795, %v2794
          %v2813 = vpack.c.b16 %v2797, %v2796
          %v2814 = vpack.c.b16 %v2799, %v2798
          %v2815 = vpack.c.b16 %v2801, %v2800
          %v2816 = vpack.c.b16 %v2803, %v2802
          %v2817 = vpack.c.b16 %v2805, %v2804
          %v2818 = vpack.c.b16 %v2807, %v2806
          %v2819 = vpack.c.b16 %v2809, %v2808
          %v2820 = vpack.c.b16 %v2811, %v2810
          %v2831 = vsel %vm657, %v2232, 0
          %v2834 = vsel %vm657, %v2235, 0
          %v2837 = vsel %vm657, %v2238, 0
          %v2840 = vsel %vm657, %v2241, 0
          %v2843 = vsel %vm657, %v2244, 0
          %v2846 = vsel %vm657, %v2247, 0
          %v2849 = vsel %vm657, %v2250, 0
          %v2852 = vsel %vm657, %v2253, 0
          %v2855 = vsel %vm657, %v2256, 0
          %v2858 = vsel %vm657, %v2259, 0
          %v2861 = vsel %vm657, %v2262, 0
          %v2864 = vsel %vm657, %v2265, 0
          %v2867 = vsel %vm657, %v2268, 0
          %v2870 = vsel %vm657, %v2271, 0
          %v2873 = vsel %vm657, %v2288, 0
          %v2876 = vsel %vm657, %v2305, 0
          %2878 = vmatprep.subr.bf16.mxu0 0
          %2879 = vmatpush1.bf16.msra.mxu0 %v2819
          %2880 = vmatprep.subr.bf16.mxu0 0
          %2881 = vmatpush1.bf16.msra.mxu0 %v2818
          %2882 = vmatprep.subr.bf16.mxu0 0
          %2883 = vmatpush1.bf16.msra.mxu0 %v2817
          %2884 = vmatprep.subr.bf16.mxu0 0
          %2885 = vmatpush1.bf16.msra.mxu0 %v2816
          %2886 = vmatprep.subr.bf16.mxu0 0
          %2887 = vmatpush1.bf16.msra.mxu0 %v2815
          %2888 = vmatprep.subr.bf16.mxu0 0
          %2889 = vmatpush1.bf16.msra.mxu0 %v2814
          %2890 = vmatprep.subr.bf16.mxu0 0
          %2891 = vmatpush1.bf16.msra.mxu0 %v2813
          %2892 = vmatprep.subr.bf16.mxu0 0
          %2893 = vmatpush1.bf16.msra.mxu0 %v2812
          %2894 = vmatprep.subr.bf16.mxu0 0
          %2895 = vmatpush2.bf16.msra.mxu0 0
          %2896 = vmatprep.subr.bf16.mxu0 0
          %2897 = vmatpush2.bf16.msra.mxu0 0
          %2898 = vmatprep.subr.bf16.mxu0 0
          %2899 = vmatpush2.bf16.msra.mxu0 0
          %2900 = vmatprep.subr.bf16.mxu0 0
          %2901 = vmatpush2.bf16.msra.mxu0 0
          %2902 = vmatprep.subr.bf16.mxu0 0
          %2903 = vmatpush2.bf16.msra.mxu0 0
          %2904 = vmatprep.subr.bf16.mxu0 0
          %2905 = vmatpush2.bf16.msra.mxu0 0
          %2906 = vmatprep.subr.bf16.mxu0 0
          %2907 = vmatpush2.bf16.msra.mxu0 0
          %2908 = vmatprep.subr.bf16.mxu0 0
          %2909 = vmatpush2.bf16.msra.mxu0 %v2820
          %2910 = vmatprep.mubr.bf16.mxu0 %v2831
          %2911 = vmatmul.mubr.bf16.gmra.mxu0 %v2723
          %v2912 = vpop.f32.mrf.mxu0
          %v2913 = vadd.f32 %v2774, %v2912
          %v2914 = vpop.f32.mrf.mxu0
          %v2915 = vpop.f32.mrf.mxu0
          %v2916 = vadd.f32 %v2774, %v2915
          %v2917 = vpop.f32.mrf.mxu0
          %2918 = vmatprep.mubr.bf16.mxu0 %v2834
          %2919 = vmatmul.mubr.bf16.gmra.mxu0 %v2726
          %v2920 = vpop.f32.mrf.mxu0
          %v2921 = vadd.f32 %v2774, %v2920
          %v2922 = vpop.f32.mrf.mxu0
          %v2923 = vpop.f32.mrf.mxu0
          %v2924 = vadd.f32 %v2774, %v2923
          %v2925 = vpop.f32.mrf.mxu0
          %2926 = vmatprep.mubr.bf16.mxu0 %v2837
          %2927 = vmatmul.mubr.bf16.gmra.mxu0 %v2729
          %v2928 = vpop.f32.mrf.mxu0
          %v2929 = vadd.f32 %v2774, %v2928
          %v2930 = vpop.f32.mrf.mxu0
          %v2931 = vpop.f32.mrf.mxu0
          %v2932 = vadd.f32 %v2774, %v2931
          %v2933 = vpop.f32.mrf.mxu0
          %2934 = vmatprep.mubr.bf16.mxu0 %v2840
          %2935 = vmatmul.mubr.bf16.gmra.mxu0 %v2732
          %v2936 = vpop.f32.mrf.mxu0
          %v2937 = vadd.f32 %v2774, %v2936
          %v2938 = vpop.f32.mrf.mxu0
          %v2939 = vpop.f32.mrf.mxu0
          %v2940 = vadd.f32 %v2774, %v2939
          %v2941 = vpop.f32.mrf.mxu0
          %2942 = vmatprep.mubr.bf16.mxu0 %v2843
          %2943 = vmatmul.mubr.bf16.gmra.mxu0 %v2735
          %v2944 = vpop.f32.mrf.mxu0
          %v2945 = vadd.f32 %v2774, %v2944
          %v2946 = vpop.f32.mrf.mxu0
          %v2947 = vpop.f32.mrf.mxu0
          %v2948 = vadd.f32 %v2774, %v2947
          %v2949 = vpop.f32.mrf.mxu0
          %2950 = vmatprep.mubr.bf16.mxu0 %v2846
          %2951 = vmatmul.mubr.bf16.gmra.mxu0 %v2738
          %v2952 = vpop.f32.mrf.mxu0
          %v2953 = vadd.f32 %v2774, %v2952
          %v2954 = vpop.f32.mrf.mxu0
          %v2955 = vpop.f32.mrf.mxu0
          %v2956 = vadd.f32 %v2774, %v2955
          %v2957 = vpop.f32.mrf.mxu0
          %2958 = vmatprep.mubr.bf16.mxu0 %v2849
          %2959 = vmatmul.mubr.bf16.gmra.mxu0 %v2741
          %v2960 = vpop.f32.mrf.mxu0
          %v2961 = vadd.f32 %v2774, %v2960
          %v2962 = vpop.f32.mrf.mxu0
          %v2963 = vpop.f32.mrf.mxu0
          %v2964 = vadd.f32 %v2774, %v2963
          %v2965 = vpop.f32.mrf.mxu0
          %2966 = vmatprep.mubr.bf16.mxu0 %v2852
          %2967 = vmatmul.mubr.bf16.gmra.mxu0 %v2744
          %v2968 = vpop.f32.mrf.mxu0
          %v2969 = vadd.f32 %v2774, %v2968
          %v2970 = vpop.f32.mrf.mxu0
          %v2971 = vpop.f32.mrf.mxu0
          %v2972 = vadd.f32 %v2774, %v2971
          %v2973 = vpop.f32.mrf.mxu0
          %2974 = vmatprep.mubr.bf16.mxu0 %v2855
          %2975 = vmatmul.mubr.bf16.gmra.mxu0 %v2747
          %v2976 = vpop.f32.mrf.mxu0
          %v2977 = vadd.f32 %v2774, %v2976
          %v2978 = vpop.f32.mrf.mxu0
          %v2979 = vpop.f32.mrf.mxu0
          %v2980 = vadd.f32 %v2774, %v2979
          %v2981 = vpop.f32.mrf.mxu0
          %2982 = vmatprep.mubr.bf16.mxu0 %v2858
          %2983 = vmatmul.mubr.bf16.gmra.mxu0 %v2750
          %v2984 = vpop.f32.mrf.mxu0
          %v2985 = vadd.f32 %v2774, %v2984
          %v2986 = vpop.f32.mrf.mxu0
          %v2987 = vpop.f32.mrf.mxu0
          %v2988 = vadd.f32 %v2774, %v2987
          %v2989 = vpop.f32.mrf.mxu0
          %2990 = vmatprep.mubr.bf16.mxu0 %v2861
          %2991 = vmatmul.mubr.bf16.gmra.mxu0 %v2753
          %v2992 = vpop.f32.mrf.mxu0
          %v2993 = vadd.f32 %v2774, %v2992
          %v2994 = vpop.f32.mrf.mxu0
          %v2995 = vpop.f32.mrf.mxu0
          %v2996 = vadd.f32 %v2774, %v2995
          %v2997 = vpop.f32.mrf.mxu0
          %2998 = vmatprep.mubr.bf16.mxu0 %v2864
          %2999 = vmatmul.mubr.bf16.gmra.mxu0 %v2756
          %v3000 = vpop.f32.mrf.mxu0
          %v3001 = vadd.f32 %v2774, %v3000
          %v3002 = vpop.f32.mrf.mxu0
          %v3003 = vpop.f32.mrf.mxu0
          %v3004 = vadd.f32 %v2774, %v3003
          %v3005 = vpop.f32.mrf.mxu0
          %3006 = vmatprep.mubr.bf16.mxu0 %v2867
          %3007 = vmatmul.mubr.bf16.gmra.mxu0 %v2759
          %v3008 = vpop.f32.mrf.mxu0
          %v3009 = vadd.f32 %v2774, %v3008
          %v3010 = vpop.f32.mrf.mxu0
          %v3011 = vpop.f32.mrf.mxu0
          %v3012 = vadd.f32 %v2774, %v3011
          %v3013 = vpop.f32.mrf.mxu0
          %3014 = vmatprep.mubr.bf16.mxu0 %v2870
          %3015 = vmatmul.mubr.bf16.gmra.mxu0 %v2762
          %v3016 = vpop.f32.mrf.mxu0
          %v3017 = vadd.f32 %v2774, %v3016
          %v3018 = vpop.f32.mrf.mxu0
          %v3019 = vpop.f32.mrf.mxu0
          %v3020 = vadd.f32 %v2774, %v3019
          %v3021 = vpop.f32.mrf.mxu0
          %3022 = vmatprep.mubr.bf16.mxu0 %v2873
          %3023 = vmatmul.mubr.bf16.gmra.mxu0 %v2765
          %v3024 = vpop.f32.mrf.mxu0
          %v3025 = vadd.f32 %v2774, %v3024
          %v3026 = vpop.f32.mrf.mxu0
          %v3027 = vpop.f32.mrf.mxu0
          %v3028 = vadd.f32 %v2774, %v3027
          %v3029 = vpop.f32.mrf.mxu0
          %3030 = vmatprep.mubr.bf16.mxu0 %v2876
          %3031 = vmatmul.mubr.bf16.gmra.mxu0 %v2768
          %v3032 = vpop.f32.mrf.mxu0
          %v3033 = vadd.f32 %v2774, %v3032
          %v3034 = vpop.f32.mrf.mxu0
          %v3035 = vpop.f32.mrf.mxu0
          %v3036 = vadd.f32 %v2774, %v3035
          %v3037 = vpop.f32.mrf.mxu0
          %3038 = vdwg.mxu0
          %v3039 = vsel %vm657, %v2913, 0.0
          %v3040 = vsel %vm657, %v2916, 0.0
          %v3041 = vadd.f32 %v3039, %v3040
          %v3042 = vsel %vm657, %v2921, 0.0
          %v3043 = vadd.f32 %v3041, %v3042
          %v3044 = vsel %vm657, %v2924, 0.0
          %v3045 = vadd.f32 %v3043, %v3044
          %v3046 = vsel %vm657, %v2929, 0.0
          %v3047 = vadd.f32 %v3045, %v3046
          %v3048 = vsel %vm657, %v2932, 0.0
          %v3049 = vadd.f32 %v3047, %v3048
          %v3050 = vsel %vm657, %v2937, 0.0
          %v3051 = vadd.f32 %v3049, %v3050
          %v3052 = vsel %vm657, %v2940, 0.0
          %v3053 = vadd.f32 %v3051, %v3052
          %v3054 = vsel %vm657, %v2945, 0.0
          %v3055 = vadd.f32 %v3053, %v3054
          %v3056 = vsel %vm657, %v2948, 0.0
          %v3057 = vadd.f32 %v3055, %v3056
          %v3058 = vsel %vm657, %v2953, 0.0
          %v3059 = vadd.f32 %v3057, %v3058
          %v3060 = vsel %vm657, %v2956, 0.0
          %v3061 = vadd.f32 %v3059, %v3060
          %v3062 = vsel %vm657, %v2961, 0.0
          %v3063 = vadd.f32 %v3061, %v3062
          %v3064 = vsel %vm657, %v2964, 0.0
          %v3065 = vadd.f32 %v3063, %v3064
          %v3066 = vsel %vm657, %v2969, 0.0
          %v3067 = vadd.f32 %v3065, %v3066
          %v3068 = vsel %vm657, %v2972, 0.0
          %v3069 = vadd.f32 %v3067, %v3068
          %v3070 = vsel %vm657, %v2977, 0.0
          %v3071 = vadd.f32 %v3069, %v3070
          %v3072 = vsel %vm657, %v2980, 0.0
          %v3073 = vadd.f32 %v3071, %v3072
          %v3074 = vsel %vm657, %v2985, 0.0
          %v3075 = vadd.f32 %v3073, %v3074
          %v3076 = vsel %vm657, %v2988, 0.0
          %v3077 = vadd.f32 %v3075, %v3076
          %v3078 = vsel %vm657, %v2993, 0.0
          %v3079 = vadd.f32 %v3077, %v3078
          %v3080 = vsel %vm657, %v2996, 0.0
          %v3081 = vadd.f32 %v3079, %v3080
          %v3082 = vsel %vm657, %v3001, 0.0
          %v3083 = vadd.f32 %v3081, %v3082
          %v3084 = vsel %vm657, %v3004, 0.0
          %v3085 = vadd.f32 %v3083, %v3084
          %v3086 = vsel %vm657, %v3009, 0.0
          %v3087 = vadd.f32 %v3085, %v3086
          %v3088 = vsel %vm657, %v3012, 0.0
          %v3089 = vadd.f32 %v3087, %v3088
          %v3090 = vsel %vm657, %v3017, 0.0
          %v3091 = vadd.f32 %v3089, %v3090
          %v3092 = vsel %vm657, %v3020, 0.0
          %v3093 = vadd.f32 %v3091, %v3092
          %v3094 = vsel %vm657, %v3025, 0.0
          %v3095 = vadd.f32 %v3093, %v3094
          %v3096 = vsel %vm657, %v3028, 0.0
          %v3097 = vadd.f32 %v3095, %v3096
          %v3098 = vsel %vm657, %v3033, 0.0
          %v3099 = vadd.f32 %v3097, %v3098
          %v3100 = vsel %vm657, %v3036, 0.0
          %v3101 = vadd.f32 %v3099, %v3100
          %v3102 = vrot.slane %v3101, 4
          %v3103 = vadd.f32 %v3101, %v3102
          %v3104 = vrot.slane %v3103, 2
          %v3105 = vadd.f32 %v3103, %v3104
          %v3106 = vrot.slane %v3105, 1
          %v3107 = vadd.f32 %v3105, %v3106
          %v3108 = vmul.f32 %v3107, 0.00390625
          %v3109 = vld [vmem:[%s465] sm:$0xff]
          %v3110 = vld [vmem:[%s465 + $0x8] sm:$0xff]
          %v3111 = vld [vmem:[%s468] sm:$0x1]
          %v3113 = vsel %vm657, %v3108, 0
          %3115 = vmatprep.subr.mxu0 0.0
          %3116 = vmatpush1.msra.mxu0 0.0
          %3117 = vmatprep.subr.mxu0 0.0
          %3118 = vmatpush1.msra.mxu0 0.0
          %3119 = vmatprep.subr.mxu0 0.0
          %3120 = vmatpush1.msra.mxu0 0.0
          %3121 = vmatprep.subr.mxu0 0.0
          %3122 = vmatpush1.msra.mxu0 0.0
          %3123 = vmatprep.subr.mxu0 0.0
          %3124 = vmatpush1.msra.mxu0 0.0
          %3125 = vmatprep.subr.mxu0 0.0
          %3126 = vmatpush1.msra.mxu0 0.0
          %3127 = vmatprep.subr.mxu0 0.0
          %3128 = vmatpush1.msra.mxu0 0.0
          %3129 = vmatprep.subr.mxu0 0.0
          %3130 = vmatpush1.msra.mxu0 0.0
          %3131 = vmatprep.subr.mxu0 0.0
          %3132 = vmatpush1.msra.mxu0 0.0
          %3133 = vmatprep.subr.mxu0 0.0
          %3134 = vmatpush1.msra.mxu0 0.0
          %3135 = vmatprep.subr.mxu0 0.0
          %3136 = vmatpush1.msra.mxu0 0.0
          %3137 = vmatprep.subr.mxu0 0.0
          %3138 = vmatpush1.msra.mxu0 0.0
          %3139 = vmatprep.subr.mxu0 0.0
          %3140 = vmatpush1.msra.mxu0 0.0
          %3141 = vmatprep.subr.mxu0 0.0
          %3142 = vmatpush1.msra.mxu0 0.0
          %3143 = vmatprep.subr.mxu0 0.0
          %3144 = vmatpush1.msra.mxu0 %v3110
          %3145 = vmatprep.subr.mxu0 0.0
          %3146 = vmatpush1.msra.mxu0 %v3109
          %3147 = vmatprep.subr.mxu0 0.0
          %3148 = vmatpush2.msra.mxu0 0.0
          %3149 = vmatprep.subr.mxu0 0.0
          %3150 = vmatpush2.msra.mxu0 0.0
          %3151 = vmatprep.subr.mxu0 0.0
          %3152 = vmatpush2.msra.mxu0 0.0
          %3153 = vmatprep.subr.mxu0 0.0
          %3154 = vmatpush2.msra.mxu0 0.0
          %3155 = vmatprep.subr.mxu0 0.0
          %3156 = vmatpush2.msra.mxu0 0.0
          %3157 = vmatprep.subr.mxu0 0.0
          %3158 = vmatpush2.msra.mxu0 0.0
          %3159 = vmatprep.subr.mxu0 0.0
          %3160 = vmatpush2.msra.mxu0 0.0
          %3161 = vmatprep.subr.mxu0 0.0
          %3162 = vmatpush2.msra.mxu0 0.0
          %3163 = vmatprep.subr.mxu0 0.0
          %3164 = vmatpush2.msra.mxu0 0.0
          %3165 = vmatprep.subr.mxu0 0.0
          %3166 = vmatpush2.msra.mxu0 0.0
          %3167 = vmatprep.subr.mxu0 0.0
          %3168 = vmatpush2.msra.mxu0 0.0
          %3169 = vmatprep.subr.mxu0 0.0
          %3170 = vmatpush2.msra.mxu0 0.0
          %3171 = vmatprep.subr.mxu0 0.0
          %3172 = vmatpush2.msra.mxu0 0.0
          %3173 = vmatprep.subr.mxu0 0.0
          %3174 = vmatpush2.msra.mxu0 0.0
          %3175 = vmatprep.subr.mxu0 0.0
          %3176 = vmatpush2.msra.mxu0 0.0
          %3177 = vmatprep.subr.mxu0 0.0
          %3178 = vmatpush2.msra.mxu0 0.0
          %3179 = vmatprep.mubr.f32.mxu0 0.0
          %3180 = vmatmul.mubr.f32.gmra.mxu0 %v3113
          %v3181 = vpop.f32.mrf.mxu0
          %v3182 = vadd.f32 %v3111, %v3181
          %v3183 = vpop.f32.mrf.mxu0
          %3184 = vdwg.mxu0
          %v3185 = vmax.f32 %v3182, 0.0
          %v3186 = vld [vmem:[%s472] sm:$0xf]
          %v3187 = vld [vmem:[%s475] sm:$0x1]
          %vm3188 = vcmask 31744
          %v3190 = vsel %vm3188, %v3185, 0
          %vm3192 = vcmask 1043456
          %v3194 = vsel %vm3192, %v3186, 0
          %3196 = vmatprep.subr.mxu0 0.0
          %3197 = vmatpush1.msra.mxu0 0.0
          %3198 = vmatprep.subr.mxu0 0.0
          %3199 = vmatpush1.msra.mxu0 0.0
          %3200 = vmatprep.subr.mxu0 0.0
          %3201 = vmatpush1.msra.mxu0 0.0
          %3202 = vmatprep.subr.mxu0 0.0
          %3203 = vmatpush1.msra.mxu0 0.0
          %3204 = vmatprep.subr.mxu0 0.0
          %3205 = vmatpush1.msra.mxu0 0.0
          %3206 = vmatprep.subr.mxu0 0.0
          %3207 = vmatpush1.msra.mxu0 0.0
          %3208 = vmatprep.subr.mxu0 0.0
          %3209 = vmatpush1.msra.mxu0 0.0
          %3210 = vmatprep.subr.mxu0 0.0
          %3211 = vmatpush1.msra.mxu0 0.0
          %3212 = vmatprep.subr.mxu0 0.0
          %3213 = vmatpush1.msra.mxu0 0.0
          %3214 = vmatprep.subr.mxu0 0.0
          %3215 = vmatpush1.msra.mxu0 0.0
          %3216 = vmatprep.subr.mxu0 0.0
          %3217 = vmatpush1.msra.mxu0 0.0
          %3218 = vmatprep.subr.mxu0 0.0
          %3219 = vmatpush1.msra.mxu0 0.0
          %3220 = vmatprep.subr.mxu0 0.0
          %3221 = vmatpush1.msra.mxu0 0.0
          %3222 = vmatprep.subr.mxu0 0.0
          %3223 = vmatpush1.msra.mxu0 0.0
          %3224 = vmatprep.subr.mxu0 0.0
          %3225 = vmatpush1.msra.mxu0 0.0
          %3226 = vmatprep.subr.mxu0 0.0
          %3227 = vmatpush1.msra.mxu0 %v3194
          %3228 = vmatprep.subr.mxu0 0.0
          %3229 = vmatpush2.msra.mxu0 0.0
          %3230 = vmatprep.subr.mxu0 0.0
          %3231 = vmatpush2.msra.mxu0 0.0
          %3232 = vmatprep.subr.mxu0 0.0
          %3233 = vmatpush2.msra.mxu0 0.0
          %3234 = vmatprep.subr.mxu0 0.0
          %3235 = vmatpush2.msra.mxu0 0.0
          %3236 = vmatprep.subr.mxu0 0.0
          %3237 = vmatpush2.msra.mxu0 0.0
          %3238 = vmatprep.subr.mxu0 0.0
          %3239 = vmatpush2.msra.mxu0 0.0
          %3240 = vmatprep.subr.mxu0 0.0
          %3241 = vmatpush2.msra.mxu0 0.0
          %3242 = vmatprep.subr.mxu0 0.0
          %3243 = vmatpush2.msra.mxu0 0.0
          %3244 = vmatprep.subr.mxu0 0.0
          %3245 = vmatpush2.msra.mxu0 0.0
          %3246 = vmatprep.subr.mxu0 0.0
          %3247 = vmatpush2.msra.mxu0 0.0
          %3248 = vmatprep.subr.mxu0 0.0
          %3249 = vmatpush2.msra.mxu0 0.0
          %3250 = vmatprep.subr.mxu0 0.0
          %3251 = vmatpush2.msra.mxu0 0.0
          %3252 = vmatprep.subr.mxu0 0.0
          %3253 = vmatpush2.msra.mxu0 0.0
          %3254 = vmatprep.subr.mxu0 0.0
          %3255 = vmatpush2.msra.mxu0 0.0
          %3256 = vmatprep.subr.mxu0 0.0
          %3257 = vmatpush2.msra.mxu0 0.0
          %3258 = vmatprep.subr.mxu0 0.0
          %3259 = vmatpush2.msra.mxu0 0.0
          %3260 = vmatprep.mubr.f32.mxu0 0.0
          %3261 = vmatmul.mubr.f32.gmra.mxu0 %v3190
          %v3262 = vpop.f32.mrf.mxu0
          %v3263 = vadd.f32 %v3187, %v3262
          %v3264 = vpop.f32.mrf.mxu0
          %3265 = vdwg.mxu0
          %v3266 = vxor.u32 %v3263, 2147483648
          %v3267 = vmul.f32 %v3266, 1.442695
          %v3268 = vpow.pop %v3267
          %v3269 = vadd.f32 %v3268, 1.0
          %v3270 = vrcp.pop %v3269
          %v3271 = vmul.f32 1.0, %v3270
          %v3272 = vlaneseq
          %v3273 = vshrl.u32 %v3272, 7
          %v3274 = vsub.s32 0, %v3273
          %v3275 = vrot.slane %v3271, %v3274
          %v3276 = vmul.f32 %v2913, %v3275
          %v3277 = vmul.f32 %v2916, %v3275
          %v3278 = vmul.f32 %v2921, %v3275
          %v3279 = vmul.f32 %v2924, %v3275
          %v3280 = vmul.f32 %v2929, %v3275
          %v3281 = vmul.f32 %v2932, %v3275
          %v3282 = vmul.f32 %v2937, %v3275
          %v3283 = vmul.f32 %v2940, %v3275
          %v3284 = vmul.f32 %v2945, %v3275
          %v3285 = vmul.f32 %v2948, %v3275
          %v3286 = vmul.f32 %v2953, %v3275
          %v3287 = vmul.f32 %v2956, %v3275
          %v3288 = vmul.f32 %v2961, %v3275
          %v3289 = vmul.f32 %v2964, %v3275
          %v3290 = vmul.f32 %v2969, %v3275
          %v3291 = vmul.f32 %v2972, %v3275
          %v3292 = vmul.f32 %v2977, %v3275
          %v3293 = vmul.f32 %v2980, %v3275
          %v3294 = vmul.f32 %v2985, %v3275
          %v3295 = vmul.f32 %v2988, %v3275
          %v3296 = vmul.f32 %v2993, %v3275
          %v3297 = vmul.f32 %v2996, %v3275
          %v3298 = vmul.f32 %v3001, %v3275
          %v3299 = vmul.f32 %v3004, %v3275
          %v3300 = vmul.f32 %v3009, %v3275
          %v3301 = vmul.f32 %v3012, %v3275
          %v3302 = vmul.f32 %v3017, %v3275
          %v3303 = vmul.f32 %v3020, %v3275
          %v3304 = vmul.f32 %v3025, %v3275
          %v3305 = vmul.f32 %v3028, %v3275
          %v3306 = vmul.f32 %v3033, %v3275
          %v3307 = vmul.f32 %v3036, %v3275
          %v3308 = vadd.f32 %v3276, %v605
          %v3309 = vadd.f32 %v3277, %v606
          %v3310 = vadd.f32 %v3278, %v607
          %v3311 = vadd.f32 %v3279, %v608
          %v3312 = vadd.f32 %v3280, %v609
          %v3313 = vadd.f32 %v3281, %v610
          %v3314 = vadd.f32 %v3282, %v611
          %v3315 = vadd.f32 %v3283, %v612
          %v3316 = vadd.f32 %v3284, %v613
          %v3317 = vadd.f32 %v3285, %v614
          %v3318 = vadd.f32 %v3286, %v615
          %v3319 = vadd.f32 %v3287, %v616
          %v3320 = vadd.f32 %v3288, %v617
          %v3321 = vadd.f32 %v3289, %v618
          %v3322 = vadd.f32 %v3290, %v619
          %v3323 = vadd.f32 %v3291, %v620
          %v3324 = vadd.f32 %v3292, %v621
          %v3325 = vadd.f32 %v3293, %v622
          %v3326 = vadd.f32 %v3294, %v623
          %v3327 = vadd.f32 %v3295, %v624
          %v3328 = vadd.f32 %v3296, %v625
          %v3329 = vadd.f32 %v3297, %v626
          %v3330 = vadd.f32 %v3298, %v627
          %v3331 = vadd.f32 %v3299, %v628
          %v3332 = vadd.f32 %v3300, %v629
          %v3333 = vadd.f32 %v3301, %v630
          %v3334 = vadd.f32 %v3302, %v631
          %v3335 = vadd.f32 %v3303, %v632
          %v3336 = vadd.f32 %v3304, %v633
          %v3337 = vadd.f32 %v3305, %v634
          %v3338 = vadd.f32 %v3306, %v635
          %v3339 = vadd.f32 %v3307, %v636
          %3340 = vst.msk [vmem:[#allocation3] sm:$0xff] %vm657, %v3308
          %3341 = vst.msk [vmem:[#allocation3 + $0x8] sm:$0xff] %vm657, %v3309
          %3342 = vst.msk [vmem:[#allocation3 + $0x10] sm:$0xff] %vm657, %v3310
          %3343 = vst.msk [vmem:[#allocation3 + $0x18] sm:$0xff] %vm657, %v3311
          %3344 = vst.msk [vmem:[#allocation3 + $0x20] sm:$0xff] %vm657, %v3312
          %3345 = vst.msk [vmem:[#allocation3 + $0x28] sm:$0xff] %vm657, %v3313
          %3346 = vst.msk [vmem:[#allocation3 + $0x30] sm:$0xff] %vm657, %v3314
          %3347 = vst.msk [vmem:[#allocation3 + $0x38] sm:$0xff] %vm657, %v3315
          %3348 = vst.msk [vmem:[#allocation3 + $0x40] sm:$0xff] %vm657, %v3316
          %3349 = vst.msk [vmem:[#allocation3 + $0x48] sm:$0xff] %vm657, %v3317
          %3350 = vst.msk [vmem:[#allocation3 + $0x50] sm:$0xff] %vm657, %v3318
          %3351 = vst.msk [vmem:[#allocation3 + $0x58] sm:$0xff] %vm657, %v3319
          %3352 = vst.msk [vmem:[#allocation3 + $0x60] sm:$0xff] %vm657, %v3320
          %3353 = vst.msk [vmem:[#allocation3 + $0x68] sm:$0xff] %vm657, %v3321
          %3354 = vst.msk [vmem:[#allocation3 + $0x70] sm:$0xff] %vm657, %v3322
          %3355 = vst.msk [vmem:[#allocation3 + $0x78] sm:$0xff] %vm657, %v3323
          %3356 = vst.msk [vmem:[#allocation3 + $0x80] sm:$0xff] %vm657, %v3324
          %3357 = vst.msk [vmem:[#allocation3 + $0x88] sm:$0xff] %vm657, %v3325
          %3358 = vst.msk [vmem:[#allocation3 + $0x90] sm:$0xff] %vm657, %v3326
          %3359 = vst.msk [vmem:[#allocation3 + $0x98] sm:$0xff] %vm657, %v3327
          %3360 = vst.msk [vmem:[#allocation3 + $0xa0] sm:$0xff] %vm657, %v3328
          %3361 = vst.msk [vmem:[#allocation3 + $0xa8] sm:$0xff] %vm657, %v3329
          %3362 = vst.msk [vmem:[#allocation3 + $0xb0] sm:$0xff] %vm657, %v3330
          %3363 = vst.msk [vmem:[#allocation3 + $0xb8] sm:$0xff] %vm657, %v3331
          %3364 = vst.msk [vmem:[#allocation3 + $0xc0] sm:$0xff] %vm657, %v3332
          %3365 = vst.msk [vmem:[#allocation3 + $0xc8] sm:$0xff] %vm657, %v3333
          %3366 = vst.msk [vmem:[#allocation3 + $0xd0] sm:$0xff] %vm657, %v3334
          %3367 = vst.msk [vmem:[#allocation3 + $0xd8] sm:$0xff] %vm657, %v3335
          %3368 = vst.msk [vmem:[#allocation3 + $0xe0] sm:$0xff] %vm657, %v3336
          %3369 = vst.msk [vmem:[#allocation3 + $0xe8] sm:$0xff] %vm657, %v3337
          %3370 = vst.msk [vmem:[#allocation3 + $0xf0] sm:$0xff] %vm657, %v3338
          %3371 = vst.msk [vmem:[#allocation3 + $0xf8] sm:$0xff] %vm657, %v3339
        $region64: #{tpu_custom_call.1} parent=55 // pred_fallthru
          _
        %p3372 = scmp.eq.s32.totalorder %s28, 2
        // Predicated region
        $region65: #{tpu_custom_call.1} parent=55 // pred_check
          %p3373 = pneg %p3372
        $region66: #{tpu_custom_call.1} parent=55 // pred_check_branch
          %3375 = sbr.rel (%p3373) target = $region68
        $region67: #{tpu_custom_call.1} parent=55 // pred_region
          %v3376 = vld [vmem:[%s444] sm:$0xff]
          %v3377 = vld [vmem:[%s444 + $0x8] sm:$0xff]
          %v3378 = vld [vmem:[%s444 + $0x10] sm:$0xff]
          %v3379 = vld [vmem:[%s444 + $0x18] sm:$0xff]
          %v3380 = vld [vmem:[%s444 + $0x20] sm:$0xff]
          %v3381 = vld [vmem:[%s444 + $0x28] sm:$0xff]
          %v3382 = vld [vmem:[%s444 + $0x30] sm:$0xff]
          %v3383 = vld [vmem:[%s444 + $0x38] sm:$0xff]
          %v3384 = vld [vmem:[%s444 + $0x40] sm:$0xff]
          %v3385 = vld [vmem:[%s444 + $0x48] sm:$0xff]
          %v3386 = vld [vmem:[%s444 + $0x50] sm:$0xff]
          %v3387 = vld [vmem:[%s444 + $0x58] sm:$0xff]
          %v3388 = vld [vmem:[%s444 + $0x60] sm:$0xff]
          %v3389 = vld [vmem:[%s444 + $0x68] sm:$0xff]
          %v3390 = vld [vmem:[%s444 + $0x70] sm:$0xff]
          %v3391 = vld [vmem:[%s444 + $0x78] sm:$0xff]
          %v3392 = vld [vmem:[%s444 + $0x80] sm:$0xff]
          %v3393 = vld [vmem:[%s444 + $0x88] sm:$0xff]
          %v3394 = vld [vmem:[%s444 + $0x90] sm:$0xff]
          %v3395 = vld [vmem:[%s444 + $0x98] sm:$0xff]
          %v3396 = vld [vmem:[%s444 + $0xa0] sm:$0xff]
          %v3397 = vld [vmem:[%s444 + $0xa8] sm:$0xff]
          %v3398 = vld [vmem:[%s444 + $0xb0] sm:$0xff]
          %v3399 = vld [vmem:[%s444 + $0xb8] sm:$0xff]
          %v3400 = vld [vmem:[%s444 + $0xc0] sm:$0xff]
          %v3401 = vld [vmem:[%s444 + $0xc8] sm:$0xff]
          %v3402 = vld [vmem:[%s444 + $0xd0] sm:$0xff]
          %v3403 = vld [vmem:[%s444 + $0xd8] sm:$0xff]
          %v3404 = vld [vmem:[%s444 + $0xe0] sm:$0xff]
          %v3405 = vld [vmem:[%s444 + $0xe8] sm:$0xff]
          %v3406 = vld [vmem:[%s444 + $0xf0] sm:$0xff]
          %v3407 = vld [vmem:[%s444 + $0xf8] sm:$0xff]
          %v3408 = vld [vmem:[#allocation3] sm:$0xff]
          %v3409 = vld [vmem:[#allocation3 + $0x8] sm:$0xff]
          %v3410 = vld [vmem:[#allocation3 + $0x10] sm:$0xff]
          %v3411 = vld [vmem:[#allocation3 + $0x18] sm:$0xff]
          %v3412 = vld [vmem:[#allocation3 + $0x20] sm:$0xff]
          %v3413 = vld [vmem:[#allocation3 + $0x28] sm:$0xff]
          %v3414 = vld [vmem:[#allocation3 + $0x30] sm:$0xff]
          %v3415 = vld [vmem:[#allocation3 + $0x38] sm:$0xff]
          %v3416 = vld [vmem:[#allocation3 + $0x40] sm:$0xff]
          %v3417 = vld [vmem:[#allocation3 + $0x48] sm:$0xff]
          %v3418 = vld [vmem:[#allocation3 + $0x50] sm:$0xff]
          %v3419 = vld [vmem:[#allocation3 + $0x58] sm:$0xff]
          %v3420 = vld [vmem:[#allocation3 + $0x60] sm:$0xff]
          %v3421 = vld [vmem:[#allocation3 + $0x68] sm:$0xff]
          %v3422 = vld [vmem:[#allocation3 + $0x70] sm:$0xff]
          %v3423 = vld [vmem:[#allocation3 + $0x78] sm:$0xff]
          %v3424 = vld [vmem:[#allocation3 + $0x80] sm:$0xff]
          %v3425 = vld [vmem:[#allocation3 + $0x88] sm:$0xff]
          %v3426 = vld [vmem:[#allocation3 + $0x90] sm:$0xff]
          %v3427 = vld [vmem:[#allocation3 + $0x98] sm:$0xff]
          %v3428 = vld [vmem:[#allocation3 + $0xa0] sm:$0xff]
          %v3429 = vld [vmem:[#allocation3 + $0xa8] sm:$0xff]
          %v3430 = vld [vmem:[#allocation3 + $0xb0] sm:$0xff]
          %v3431 = vld [vmem:[#allocation3 + $0xb8] sm:$0xff]
          %v3432 = vld [vmem:[#allocation3 + $0xc0] sm:$0xff]
          %v3433 = vld [vmem:[#allocation3 + $0xc8] sm:$0xff]
          %v3434 = vld [vmem:[#allocation3 + $0xd0] sm:$0xff]
          %v3435 = vld [vmem:[#allocation3 + $0xd8] sm:$0xff]
          %v3436 = vld [vmem:[#allocation3 + $0xe0] sm:$0xff]
          %v3437 = vld [vmem:[#allocation3 + $0xe8] sm:$0xff]
          %v3438 = vld [vmem:[#allocation3 + $0xf0] sm:$0xff]
          %v3439 = vld [vmem:[#allocation3 + $0xf8] sm:$0xff]
          %v3440 = vld [vmem:[%s449] sm:$0xf]
          %v3441 = vld [vmem:[%s449 + $0x4] sm:$0xf]
          %v3442 = vld [vmem:[%s449 + $0x8] sm:$0xf]
          %v3443 = vld [vmem:[%s449 + $0xc] sm:$0xf]
          %v3444 = vld [vmem:[%s449 + $0x10] sm:$0xf]
          %v3445 = vld [vmem:[%s449 + $0x14] sm:$0xf]
          %v3446 = vld [vmem:[%s449 + $0x18] sm:$0xf]
          %v3447 = vld [vmem:[%s449 + $0x1c] sm:$0xf]
          %v3448 = vld [vmem:[%s449 + $0x20] sm:$0xf]
          %v3449 = vld [vmem:[%s449 + $0x24] sm:$0xf]
          %v3450 = vld [vmem:[%s449 + $0x28] sm:$0xf]
          %v3451 = vld [vmem:[%s449 + $0x2c] sm:$0xf]
          %v3452 = vld [vmem:[%s449 + $0x30] sm:$0xf]
          %v3453 = vld [vmem:[%s449 + $0x34] sm:$0xf]
          %v3454 = vld [vmem:[%s449 + $0x38] sm:$0xf]
          %v3455 = vld [vmem:[%s449 + $0x3c] sm:$0xf]
          %v3456 = vld [vmem:[%s449 + $0x40] sm:$0xf]
          %v3457 = vld [vmem:[%s449 + $0x44] sm:$0xf]
          %v3458 = vld [vmem:[%s452] sm:$0x1]
          %s3459 = scalar_lea.vmem [#allocation2], 24
          %vm3460 = vcmask 130048
          %3461 = vst.msk [vmem:[%s3459 + $0x1] sm:$0xff] %vm3460, %v3408
          %3462 = vst.msk [vmem:[%s3459 + $0x9] sm:$0xff] %vm3460, %v3409
          %3463 = vst.msk [vmem:[%s3459 + $0x19] sm:$0xff] %vm3460, %v3410
          %3464 = vst.msk [vmem:[%s3459 + $0x21] sm:$0xff] %vm3460, %v3411
          %3465 = vst.msk [vmem:[%s3459 + $0x31] sm:$0xff] %vm3460, %v3412
          %3466 = vst.msk [vmem:[%s3459 + $0x39] sm:$0xff] %vm3460, %v3413
          %3467 = vst.msk [vmem:[%s3459 + $0x49] sm:$0xff] %vm3460, %v3414
          %3468 = vst.msk [vmem:[%s3459 + $0x51] sm:$0xff] %vm3460, %v3415
          %3469 = vst.msk [vmem:[%s3459 + $0x61] sm:$0xff] %vm3460, %v3416
          %3470 = vst.msk [vmem:[%s3459 + $0x69] sm:$0xff] %vm3460, %v3417
          %3471 = vst.msk [vmem:[%s3459 + $0x79] sm:$0xff] %vm3460, %v3418
          %3472 = vst.msk [vmem:[%s3459 + $0x81] sm:$0xff] %vm3460, %v3419
          %3473 = vst.msk [vmem:[%s3459 + $0x91] sm:$0xff] %vm3460, %v3420
          %3474 = vst.msk [vmem:[%s3459 + $0x99] sm:$0xff] %vm3460, %v3421
          %3475 = vst.msk [vmem:[%s3459 + $0xa9] sm:$0xff] %vm3460, %v3422
          %3476 = vst.msk [vmem:[%s3459 + $0xb1] sm:$0xff] %vm3460, %v3423
          %3477 = vst.msk [vmem:[%s3459 + $0xc1] sm:$0xff] %vm3460, %v3424
          %3478 = vst.msk [vmem:[%s3459 + $0xc9] sm:$0xff] %vm3460, %v3425
          %3479 = vst.msk [vmem:[%s3459 + $0xd9] sm:$0xff] %vm3460, %v3426
          %3480 = vst.msk [vmem:[%s3459 + $0xe1] sm:$0xff] %vm3460, %v3427
          %3481 = vst.msk [vmem:[%s3459 + $0xf1] sm:$0xff] %vm3460, %v3428
          %3482 = vst.msk [vmem:[%s3459 + $0xf9] sm:$0xff] %vm3460, %v3429
          %3483 = vst.msk [vmem:[%s3459 + $0x109] sm:$0xff] %vm3460, %v3430
          %3484 = vst.msk [vmem:[%s3459 + $0x111] sm:$0xff] %vm3460, %v3431
          %3485 = vst.msk [vmem:[%s3459 + $0x121] sm:$0xff] %vm3460, %v3432
          %3486 = vst.msk [vmem:[%s3459 + $0x129] sm:$0xff] %vm3460, %v3433
          %3487 = vst.msk [vmem:[%s3459 + $0x139] sm:$0xff] %vm3460, %v3434
          %3488 = vst.msk [vmem:[%s3459 + $0x141] sm:$0xff] %vm3460, %v3435
          %3489 = vst.msk [vmem:[%s3459 + $0x151] sm:$0xff] %vm3460, %v3436
          %3490 = vst.msk [vmem:[%s3459 + $0x159] sm:$0xff] %vm3460, %v3437
          %3491 = vst.msk [vmem:[%s3459 + $0x169] sm:$0xff] %vm3460, %v3438
          %3492 = vst.msk [vmem:[%s3459 + $0x171] sm:$0xff] %vm3460, %v3439
          %v3493 = vld [vmem:[#allocation2] sm:$0xff]
          %v3494 = vld [vmem:[#allocation2 + $0x8] sm:$0xff]
          %v3495 = vld [vmem:[#allocation2 + $0x10] sm:$0x3]
          %v3496 = vld [vmem:[#allocation2 + $0x18] sm:$0xff]
          %v3497 = vld [vmem:[#allocation2 + $0x20] sm:$0xff]
          %v3498 = vld [vmem:[#allocation2 + $0x28] sm:$0x3]
          %v3499 = vld [vmem:[#allocation2 + $0x30] sm:$0xff]
          %v3500 = vld [vmem:[#allocation2 + $0x38] sm:$0xff]
          %v3501 = vld [vmem:[#allocation2 + $0x40] sm:$0x3]
          %v3502 = vld [vmem:[#allocation2 + $0x48] sm:$0xff]
          %v3503 = vld [vmem:[#allocation2 + $0x50] sm:$0xff]
          %v3504 = vld [vmem:[#allocation2 + $0x58] sm:$0x3]
          %v3505 = vld [vmem:[#allocation2 + $0x60] sm:$0xff]
          %v3506 = vld [vmem:[#allocation2 + $0x68] sm:$0xff]
          %v3507 = vld [vmem:[#allocation2 + $0x70] sm:$0x3]
          %v3508 = vld [vmem:[#allocation2 + $0x78] sm:$0xff]
          %v3509 = vld [vmem:[#allocation2 + $0x80] sm:$0xff]
          %v3510 = vld [vmem:[#allocation2 + $0x88] sm:$0x3]
          %v3511 = vld [vmem:[#allocation2 + $0x90] sm:$0xff]
          %v3512 = vld [vmem:[#allocation2 + $0x98] sm:$0xff]
          %v3513 = vld [vmem:[#allocation2 + $0xa0] sm:$0x3]
          %v3514 = vld [vmem:[#allocation2 + $0xa8] sm:$0xff]
          %v3515 = vld [vmem:[#allocation2 + $0xb0] sm:$0xff]
          %v3516 = vld [vmem:[#allocation2 + $0xb8] sm:$0x3]
          %v3517 = vld [vmem:[#allocation2 + $0xc0] sm:$0xff]
          %v3518 = vld [vmem:[#allocation2 + $0xc8] sm:$0xff]
          %v3519 = vld [vmem:[#allocation2 + $0xd0] sm:$0x3]
          %v3520 = vld [vmem:[#allocation2 + $0xd8] sm:$0xff]
          %v3521 = vld [vmem:[#allocation2 + $0xe0] sm:$0xff]
          %v3522 = vld [vmem:[#allocation2 + $0xe8] sm:$0x3]
          %v3523 = vld [vmem:[#allocation2 + $0xf0] sm:$0xff]
          %v3524 = vld [vmem:[#allocation2 + $0xf8] sm:$0xff]
          %v3525 = vld [vmem:[#allocation2 + $0x100] sm:$0x3]
          %v3526 = vld [vmem:[#allocation2 + $0x108] sm:$0xff]
          %v3527 = vld [vmem:[#allocation2 + $0x110] sm:$0xff]
          %v3528 = vld [vmem:[#allocation2 + $0x118] sm:$0x3]
          %v3529 = vld [vmem:[#allocation2 + $0x120] sm:$0xff]
          %v3530 = vld [vmem:[#allocation2 + $0x128] sm:$0xff]
          %v3531 = vld [vmem:[#allocation2 + $0x130] sm:$0x3]
          %v3532 = vld [vmem:[#allocation2 + $0x138] sm:$0xff]
          %v3533 = vld [vmem:[#allocation2 + $0x140] sm:$0xff]
          %v3534 = vld [vmem:[#allocation2 + $0x148] sm:$0x3]
          %v3535 = vld [vmem:[#allocation2 + $0x150] sm:$0xff]
          %v3536 = vld [vmem:[#allocation2 + $0x158] sm:$0xff]
          %v3537 = vld [vmem:[#allocation2 + $0x160] sm:$0x3]
          %v3538 = vld [vmem:[#allocation2 + $0x168] sm:$0xff]
          %v3539 = vld [vmem:[#allocation2 + $0x170] sm:$0xff]
          %v3540 = vld [vmem:[#allocation2 + $0x178] sm:$0x3]
          %v3541 = vld [vmem:[#allocation2 + $0x180] sm:$0xff]
          %v3542 = vld [vmem:[#allocation2 + $0x188] sm:$0xff]
          %v3543 = vld [vmem:[#allocation2 + $0x190] sm:$0x3]
          %v3544 = vld [vmem:[#allocation2 + $0x198] sm:$0xff]
          %v3545 = vld [vmem:[#allocation2 + $0x1a0] sm:$0xff]
          %v3546 = vld [vmem:[#allocation2 + $0x1a8] sm:$0x3]
          %v3547 = vpack.c.bf16 %v3494, %v3493
          %v3548 = vpack.c.bf16 %v3495, %v3495
          %v3549 = vpack.c.bf16 %v3497, %v3496
          %v3550 = vpack.c.bf16 %v3498, %v3498
          %v3551 = vpack.c.bf16 %v3500, %v3499
          %v3552 = vpack.c.bf16 %v3501, %v3501
          %v3553 = vpack.c.bf16 %v3503, %v3502
          %v3554 = vpack.c.bf16 %v3504, %v3504
          %v3555 = vpack.c.bf16 %v3506, %v3505
          %v3556 = vpack.c.bf16 %v3507, %v3507
          %v3557 = vpack.c.bf16 %v3509, %v3508
          %v3558 = vpack.c.bf16 %v3510, %v3510
          %v3559 = vpack.c.bf16 %v3512, %v3511
          %v3560 = vpack.c.bf16 %v3513, %v3513
          %v3561 = vpack.c.bf16 %v3515, %v3514
          %v3562 = vpack.c.bf16 %v3516, %v3516
          %v3563 = vpack.c.bf16 %v3518, %v3517
          %v3564 = vpack.c.bf16 %v3519, %v3519
          %v3565 = vpack.c.bf16 %v3521, %v3520
          %v3566 = vpack.c.bf16 %v3522, %v3522
          %v3567 = vpack.c.bf16 %v3524, %v3523
          %v3568 = vpack.c.bf16 %v3525, %v3525
          %v3569 = vpack.c.bf16 %v3527, %v3526
          %v3570 = vpack.c.bf16 %v3528, %v3528
          %v3571 = vpack.c.bf16 %v3530, %v3529
          %v3572 = vpack.c.bf16 %v3531, %v3531
          %v3573 = vpack.c.bf16 %v3533, %v3532
          %v3574 = vpack.c.bf16 %v3534, %v3534
          %v3575 = vpack.c.bf16 %v3536, %v3535
          %v3576 = vpack.c.bf16 %v3537, %v3537
          %v3577 = vpack.c.bf16 %v3539, %v3538
          %v3578 = vpack.c.bf16 %v3540, %v3540
          %v3579 = vpack.c.bf16 %v3542, %v3541
          %v3580 = vpack.c.bf16 %v3543, %v3543
          %v3581 = vpack.c.bf16 %v3545, %v3544
          %v3582 = vpack.c.bf16 %v3546, %v3546
          %vm3583 = vsmask.f32 7424
          %v3585 = vshrl.u32 %v3547, 16
          %v3587 = vshll.u32 %v3547, 16
          %v3589 = vrot.slane %v3587, 1
          %v3590 = vor.u32 %v3585, %v3589
          %v3592 = vshll.u32 %v3548, 16
          %v3594 = vrot.slane %v3592, 1
          %v3595 = vsel %vm3583, %v3590, %v3594
          %v3597 = vshrl.u32 %v3549, 16
          %v3599 = vshll.u32 %v3549, 16
          %v3601 = vrot.slane %v3599, 1
          %v3602 = vor.u32 %v3597, %v3601
          %v3604 = vshll.u32 %v3550, 16
          %v3606 = vrot.slane %v3604, 1
          %v3607 = vsel %vm3583, %v3602, %v3606
          %v3609 = vshrl.u32 %v3551, 16
          %v3611 = vshll.u32 %v3551, 16
          %v3613 = vrot.slane %v3611, 1
          %v3614 = vor.u32 %v3609, %v3613
          %v3616 = vshll.u32 %v3552, 16
          %v3618 = vrot.slane %v3616, 1
          %v3619 = vsel %vm3583, %v3614, %v3618
          %v3621 = vshrl.u32 %v3553, 16
          %v3623 = vshll.u32 %v3553, 16
          %v3625 = vrot.slane %v3623, 1
          %v3626 = vor.u32 %v3621, %v3625
          %v3628 = vshll.u32 %v3554, 16
          %v3630 = vrot.slane %v3628, 1
          %v3631 = vsel %vm3583, %v3626, %v3630
          %v3633 = vshrl.u32 %v3555, 16
          %v3635 = vshll.u32 %v3555, 16
          %v3637 = vrot.slane %v3635, 1
          %v3638 = vor.u32 %v3633, %v3637
          %v3640 = vshll.u32 %v3556, 16
          %v3642 = vrot.slane %v3640, 1
          %v3643 = vsel %vm3583, %v3638, %v3642
          %v3645 = vshrl.u32 %v3557, 16
          %v3647 = vshll.u32 %v3557, 16
          %v3649 = vrot.slane %v3647, 1
          %v3650 = vor.u32 %v3645, %v3649
          %v3652 = vshll.u32 %v3558, 16
          %v3654 = vrot.slane %v3652, 1
          %v3655 = vsel %vm3583, %v3650, %v3654
          %v3657 = vshrl.u32 %v3559, 16
          %v3659 = vshll.u32 %v3559, 16
          %v3661 = vrot.slane %v3659, 1
          %v3662 = vor.u32 %v3657, %v3661
          %v3664 = vshll.u32 %v3560, 16
          %v3666 = vrot.slane %v3664, 1
          %v3667 = vsel %vm3583, %v3662, %v3666
          %v3669 = vshrl.u32 %v3561, 16
          %v3671 = vshll.u32 %v3561, 16
          %v3673 = vrot.slane %v3671, 1
          %v3674 = vor.u32 %v3669, %v3673
          %v3676 = vshll.u32 %v3562, 16
          %v3678 = vrot.slane %v3676, 1
          %v3679 = vsel %vm3583, %v3674, %v3678
          %v3681 = vshrl.u32 %v3563, 16
          %v3683 = vshll.u32 %v3563, 16
          %v3685 = vrot.slane %v3683, 1
          %v3686 = vor.u32 %v3681, %v3685
          %v3688 = vshll.u32 %v3564, 16
          %v3690 = vrot.slane %v3688, 1
          %v3691 = vsel %vm3583, %v3686, %v3690
          %v3693 = vshrl.u32 %v3565, 16
          %v3695 = vshll.u32 %v3565, 16
          %v3697 = vrot.slane %v3695, 1
          %v3698 = vor.u32 %v3693, %v3697
          %v3700 = vshll.u32 %v3566, 16
          %v3702 = vrot.slane %v3700, 1
          %v3703 = vsel %vm3583, %v3698, %v3702
          %v3705 = vshrl.u32 %v3567, 16
          %v3707 = vshll.u32 %v3567, 16
          %v3709 = vrot.slane %v3707, 1
          %v3710 = vor.u32 %v3705, %v3709
          %v3712 = vshll.u32 %v3568, 16
          %v3714 = vrot.slane %v3712, 1
          %v3715 = vsel %vm3583, %v3710, %v3714
          %v3717 = vshrl.u32 %v3569, 16
          %v3719 = vshll.u32 %v3569, 16
          %v3721 = vrot.slane %v3719, 1
          %v3722 = vor.u32 %v3717, %v3721
          %v3724 = vshll.u32 %v3570, 16
          %v3726 = vrot.slane %v3724, 1
          %v3727 = vsel %vm3583, %v3722, %v3726
          %v3729 = vshrl.u32 %v3571, 16
          %v3731 = vshll.u32 %v3571, 16
          %v3733 = vrot.slane %v3731, 1
          %v3734 = vor.u32 %v3729, %v3733
          %v3736 = vshll.u32 %v3572, 16
          %v3738 = vrot.slane %v3736, 1
          %v3739 = vsel %vm3583, %v3734, %v3738
          %v3741 = vshrl.u32 %v3573, 16
          %v3743 = vshll.u32 %v3573, 16
          %v3745 = vrot.slane %v3743, 1
          %v3746 = vor.u32 %v3741, %v3745
          %v3748 = vshll.u32 %v3574, 16
          %v3750 = vrot.slane %v3748, 1
          %v3751 = vsel %vm3583, %v3746, %v3750
          %v3753 = vshrl.u32 %v3575, 16
          %v3755 = vshll.u32 %v3575, 16
          %v3757 = vrot.slane %v3755, 1
          %v3758 = vor.u32 %v3753, %v3757
          %v3760 = vshll.u32 %v3576, 16
          %v3762 = vrot.slane %v3760, 1
          %v3763 = vsel %vm3583, %v3758, %v3762
          %v3765 = vshrl.u32 %v3577, 16
          %v3767 = vshll.u32 %v3577, 16
          %v3769 = vrot.slane %v3767, 1
          %v3770 = vor.u32 %v3765, %v3769
          %v3772 = vshll.u32 %v3578, 16
          %v3774 = vrot.slane %v3772, 1
          %v3775 = vsel %vm3583, %v3770, %v3774
          %vm3808 = vcmask 1046528
          %v3809 = vrot.slane %v3547, 1
          %v3810 = vrot.slane %v3548, 1
          %v3811 = vsel %vm3808, %v3809, %v3810
          %v3812 = vrot.slane %v3549, 1
          %v3813 = vrot.slane %v3550, 1
          %v3814 = vsel %vm3808, %v3812, %v3813
          %v3815 = vrot.slane %v3551, 1
          %v3816 = vrot.slane %v3552, 1
          %v3817 = vsel %vm3808, %v3815, %v3816
          %v3818 = vrot.slane %v3553, 1
          %v3819 = vrot.slane %v3554, 1
          %v3820 = vsel %vm3808, %v3818, %v3819
          %v3821 = vrot.slane %v3555, 1
          %v3822 = vrot.slane %v3556, 1
          %v3823 = vsel %vm3808, %v3821, %v3822
          %v3824 = vrot.slane %v3557, 1
          %v3825 = vrot.slane %v3558, 1
          %v3826 = vsel %vm3808, %v3824, %v3825
          %v3827 = vrot.slane %v3559, 1
          %v3828 = vrot.slane %v3560, 1
          %v3829 = vsel %vm3808, %v3827, %v3828
          %v3830 = vrot.slane %v3561, 1
          %v3831 = vrot.slane %v3562, 1
          %v3832 = vsel %vm3808, %v3830, %v3831
          %v3833 = vrot.slane %v3563, 1
          %v3834 = vrot.slane %v3564, 1
          %v3835 = vsel %vm3808, %v3833, %v3834
          %v3836 = vrot.slane %v3565, 1
          %v3837 = vrot.slane %v3566, 1
          %v3838 = vsel %vm3808, %v3836, %v3837
          %v3839 = vrot.slane %v3567, 1
          %v3840 = vrot.slane %v3568, 1
          %v3841 = vsel %vm3808, %v3839, %v3840
          %v3842 = vrot.slane %v3569, 1
          %v3843 = vrot.slane %v3570, 1
          %v3844 = vsel %vm3808, %v3842, %v3843
          %v3845 = vrot.slane %v3571, 1
          %v3846 = vrot.slane %v3572, 1
          %v3847 = vsel %vm3808, %v3845, %v3846
          %v3848 = vrot.slane %v3573, 1
          %v3849 = vrot.slane %v3574, 1
          %v3850 = vsel %vm3808, %v3848, %v3849
          %v3851 = vrot.slane %v3575, 1
          %v3852 = vrot.slane %v3576, 1
          %v3853 = vsel %vm3808, %v3851, %v3852
          %v3854 = vrot.slane %v3577, 1
          %v3855 = vrot.slane %v3578, 1
          %v3856 = vsel %vm3808, %v3854, %v3855
          %v3858 = vshrl.u32 %v3579, 16
          %v3860 = vshll.u32 %v3579, 16
          %v3862 = vrot.slane %v3860, 1
          %v3863 = vor.u32 %v3858, %v3862
          %v3865 = vshll.u32 %v3580, 16
          %v3867 = vrot.slane %v3865, 1
          %v3868 = vsel %vm3583, %v3863, %v3867
          %v3871 = vrot.slane %v3579, 1
          %v3872 = vrot.slane %v3580, 1
          %v3873 = vsel %vm3808, %v3871, %v3872
          %v3875 = vshrl.u32 %v3581, 16
          %v3877 = vshll.u32 %v3581, 16
          %v3879 = vrot.slane %v3877, 1
          %v3880 = vor.u32 %v3875, %v3879
          %v3882 = vshll.u32 %v3582, 16
          %v3884 = vrot.slane %v3882, 1
          %v3885 = vsel %vm3583, %v3880, %v3884
          %v3888 = vrot.slane %v3581, 1
          %v3889 = vrot.slane %v3582, 1
          %v3890 = vsel %vm3808, %v3888, %v3889
          %3891 = vrot.lane.b32.xlu0 %v3595, 16
          %v3892 = vpop.permute.xlu0 %3891
          %3893 = vrot.lane.b32.xlu0 %v3607, 16
          %v3894 = vpop.permute.xlu0 %3893
          %3895 = vrot.lane.b32.xlu0 %v3619, 16
          %v3896 = vpop.permute.xlu0 %3895
          %3897 = vrot.lane.b32.xlu0 %v3631, 16
          %v3898 = vpop.permute.xlu0 %3897
          %3899 = vrot.lane.b32.xlu0 %v3643, 16
          %v3900 = vpop.permute.xlu0 %3899
          %3901 = vrot.lane.b32.xlu0 %v3655, 16
          %v3902 = vpop.permute.xlu0 %3901
          %3903 = vrot.lane.b32.xlu0 %v3667, 16
          %v3904 = vpop.permute.xlu0 %3903
          %3905 = vrot.lane.b32.xlu0 %v3679, 16
          %v3906 = vpop.permute.xlu0 %3905
          %3907 = vrot.lane.b32.xlu0 %v3691, 16
          %v3908 = vpop.permute.xlu0 %3907
          %3909 = vrot.lane.b32.xlu0 %v3703, 16
          %v3910 = vpop.permute.xlu0 %3909
          %3911 = vrot.lane.b32.xlu0 %v3715, 16
          %v3912 = vpop.permute.xlu0 %3911
          %3913 = vrot.lane.b32.xlu0 %v3727, 16
          %v3914 = vpop.permute.xlu0 %3913
          %3915 = vrot.lane.b32.xlu0 %v3739, 16
          %v3916 = vpop.permute.xlu0 %3915
          %3917 = vrot.lane.b32.xlu0 %v3751, 16
          %v3918 = vpop.permute.xlu0 %3917
          %3919 = vrot.lane.b32.xlu0 %v3763, 16
          %v3920 = vpop.permute.xlu0 %3919
          %3921 = vrot.lane.b32.xlu0 %v3775, 16
          %v3922 = vpop.permute.xlu0 %3921
          %3923 = vrot.lane.b32.xlu0 %v3811, 32
          %v3924 = vpop.permute.xlu0 %3923
          %3925 = vrot.lane.b32.xlu0 %v3814, 32
          %v3926 = vpop.permute.xlu0 %3925
          %3927 = vrot.lane.b32.xlu0 %v3817, 32
          %v3928 = vpop.permute.xlu0 %3927
          %3929 = vrot.lane.b32.xlu0 %v3820, 32
          %v3930 = vpop.permute.xlu0 %3929
          %3931 = vrot.lane.b32.xlu0 %v3823, 32
          %v3932 = vpop.permute.xlu0 %3931
          %3933 = vrot.lane.b32.xlu0 %v3826, 32
          %v3934 = vpop.permute.xlu0 %3933
          %3935 = vrot.lane.b32.xlu0 %v3829, 32
          %v3936 = vpop.permute.xlu0 %3935
          %3937 = vrot.lane.b32.xlu0 %v3832, 32
          %v3938 = vpop.permute.xlu0 %3937
          %3939 = vrot.lane.b32.xlu0 %v3835, 32
          %v3940 = vpop.permute.xlu0 %3939
          %3941 = vrot.lane.b32.xlu0 %v3838, 32
          %v3942 = vpop.permute.xlu0 %3941
          %3943 = vrot.lane.b32.xlu0 %v3841, 32
          %v3944 = vpop.permute.xlu0 %3943
          %3945 = vrot.lane.b32.xlu0 %v3844, 32
          %v3946 = vpop.permute.xlu0 %3945
          %3947 = vrot.lane.b32.xlu0 %v3847, 32
          %v3948 = vpop.permute.xlu0 %3947
          %3949 = vrot.lane.b32.xlu0 %v3850, 32
          %v3950 = vpop.permute.xlu0 %3949
          %3951 = vrot.lane.b32.xlu0 %v3853, 32
          %v3952 = vpop.permute.xlu0 %3951
          %3953 = vrot.lane.b32.xlu0 %v3856, 32
          %v3954 = vpop.permute.xlu0 %3953
          %3955 = vrot.lane.b32.xlu0 %v3549, 48
          %v3956 = vpop.permute.xlu0 %3955
          %3957 = vrot.lane.b32.xlu0 %v3551, 48
          %v3958 = vpop.permute.xlu0 %3957
          %3959 = vrot.lane.b32.xlu0 %v3553, 48
          %v3960 = vpop.permute.xlu0 %3959
          %3961 = vrot.lane.b32.xlu0 %v3555, 48
          %v3962 = vpop.permute.xlu0 %3961
          %3963 = vrot.lane.b32.xlu0 %v3557, 48
          %v3964 = vpop.permute.xlu0 %3963
          %3965 = vrot.lane.b32.xlu0 %v3559, 48
          %v3966 = vpop.permute.xlu0 %3965
          %3967 = vrot.lane.b32.xlu0 %v3561, 48
          %v3968 = vpop.permute.xlu0 %3967
          %3969 = vrot.lane.b32.xlu0 %v3563, 48
          %v3970 = vpop.permute.xlu0 %3969
          %3971 = vrot.lane.b32.xlu0 %v3565, 48
          %v3972 = vpop.permute.xlu0 %3971
          %3973 = vrot.lane.b32.xlu0 %v3567, 48
          %v3974 = vpop.permute.xlu0 %3973
          %3975 = vrot.lane.b32.xlu0 %v3569, 48
          %v3976 = vpop.permute.xlu0 %3975
          %3977 = vrot.lane.b32.xlu0 %v3571, 48
          %v3978 = vpop.permute.xlu0 %3977
          %3979 = vrot.lane.b32.xlu0 %v3573, 48
          %v3980 = vpop.permute.xlu0 %3979
          %3981 = vrot.lane.b32.xlu0 %v3575, 48
          %v3982 = vpop.permute.xlu0 %3981
          %3983 = vrot.lane.b32.xlu0 %v3577, 48
          %v3984 = vpop.permute.xlu0 %3983
          %3985 = vrot.lane.b32.xlu0 %v3579, 48
          %v3986 = vpop.permute.xlu0 %3985
          %3987 = vrot.lane.b32.xlu0 %v3607, 64
          %v3988 = vpop.permute.xlu0 %3987
          %3989 = vrot.lane.b32.xlu0 %v3619, 64
          %v3990 = vpop.permute.xlu0 %3989
          %3991 = vrot.lane.b32.xlu0 %v3631, 64
          %v3992 = vpop.permute.xlu0 %3991
          %3993 = vrot.lane.b32.xlu0 %v3643, 64
          %v3994 = vpop.permute.xlu0 %3993
          %3995 = vrot.lane.b32.xlu0 %v3655, 64
          %v3996 = vpop.permute.xlu0 %3995
          %3997 = vrot.lane.b32.xlu0 %v3667, 64
          %v3998 = vpop.permute.xlu0 %3997
          %3999 = vrot.lane.b32.xlu0 %v3679, 64
          %v4000 = vpop.permute.xlu0 %3999
          %4001 = vrot.lane.b32.xlu0 %v3691, 64
          %v4002 = vpop.permute.xlu0 %4001
          %4003 = vrot.lane.b32.xlu0 %v3703, 64
          %v4004 = vpop.permute.xlu0 %4003
          %4005 = vrot.lane.b32.xlu0 %v3715, 64
          %v4006 = vpop.permute.xlu0 %4005
          %4007 = vrot.lane.b32.xlu0 %v3727, 64
          %v4008 = vpop.permute.xlu0 %4007
          %4009 = vrot.lane.b32.xlu0 %v3739, 64
          %v4010 = vpop.permute.xlu0 %4009
          %4011 = vrot.lane.b32.xlu0 %v3751, 64
          %v4012 = vpop.permute.xlu0 %4011
          %4013 = vrot.lane.b32.xlu0 %v3763, 64
          %v4014 = vpop.permute.xlu0 %4013
          %4015 = vrot.lane.b32.xlu0 %v3775, 64
          %v4016 = vpop.permute.xlu0 %4015
          %4017 = vrot.lane.b32.xlu0 %v3868, 64
          %v4018 = vpop.permute.xlu0 %4017
          %4019 = vrot.lane.b32.xlu0 %v3814, 80
          %v4020 = vpop.permute.xlu0 %4019
          %4021 = vrot.lane.b32.xlu0 %v3817, 80
          %v4022 = vpop.permute.xlu0 %4021
          %4023 = vrot.lane.b32.xlu0 %v3820, 80
          %v4024 = vpop.permute.xlu0 %4023
          %4025 = vrot.lane.b32.xlu0 %v3823, 80
          %v4026 = vpop.permute.xlu0 %4025
          %4027 = vrot.lane.b32.xlu0 %v3826, 80
          %v4028 = vpop.permute.xlu0 %4027
          %4029 = vrot.lane.b32.xlu0 %v3829, 80
          %v4030 = vpop.permute.xlu0 %4029
          %4031 = vrot.lane.b32.xlu0 %v3832, 80
          %v4032 = vpop.permute.xlu0 %4031
          %4033 = vrot.lane.b32.xlu0 %v3835, 80
          %v4034 = vpop.permute.xlu0 %4033
          %4035 = vrot.lane.b32.xlu0 %v3838, 80
          %v4036 = vpop.permute.xlu0 %4035
          %4037 = vrot.lane.b32.xlu0 %v3841, 80
          %v4038 = vpop.permute.xlu0 %4037
          %4039 = vrot.lane.b32.xlu0 %v3844, 80
          %v4040 = vpop.permute.xlu0 %4039
          %4041 = vrot.lane.b32.xlu0 %v3847, 80
          %v4042 = vpop.permute.xlu0 %4041
          %4043 = vrot.lane.b32.xlu0 %v3850, 80
          %v4044 = vpop.permute.xlu0 %4043
          %4045 = vrot.lane.b32.xlu0 %v3853, 80
          %v4046 = vpop.permute.xlu0 %4045
          %4047 = vrot.lane.b32.xlu0 %v3856, 80
          %v4048 = vpop.permute.xlu0 %4047
          %4049 = vrot.lane.b32.xlu0 %v3873, 80
          %v4050 = vpop.permute.xlu0 %4049
          %4051 = vrot.lane.b32.xlu0 %v3551, 96
          %v4052 = vpop.permute.xlu0 %4051
          %4053 = vrot.lane.b32.xlu0 %v3553, 96
          %v4054 = vpop.permute.xlu0 %4053
          %4055 = vrot.lane.b32.xlu0 %v3555, 96
          %v4056 = vpop.permute.xlu0 %4055
          %4057 = vrot.lane.b32.xlu0 %v3557, 96
          %v4058 = vpop.permute.xlu0 %4057
          %4059 = vrot.lane.b32.xlu0 %v3559, 96
          %v4060 = vpop.permute.xlu0 %4059
          %4061 = vrot.lane.b32.xlu0 %v3561, 96
          %v4062 = vpop.permute.xlu0 %4061
          %4063 = vrot.lane.b32.xlu0 %v3563, 96
          %v4064 = vpop.permute.xlu0 %4063
          %4065 = vrot.lane.b32.xlu0 %v3565, 96
          %v4066 = vpop.permute.xlu0 %4065
          %4067 = vrot.lane.b32.xlu0 %v3567, 96
          %v4068 = vpop.permute.xlu0 %4067
          %4069 = vrot.lane.b32.xlu0 %v3569, 96
          %v4070 = vpop.permute.xlu0 %4069
          %4071 = vrot.lane.b32.xlu0 %v3571, 96
          %v4072 = vpop.permute.xlu0 %4071
          %4073 = vrot.lane.b32.xlu0 %v3573, 96
          %v4074 = vpop.permute.xlu0 %4073
          %4075 = vrot.lane.b32.xlu0 %v3575, 96
          %v4076 = vpop.permute.xlu0 %4075
          %4077 = vrot.lane.b32.xlu0 %v3577, 96
          %v4078 = vpop.permute.xlu0 %4077
          %4079 = vrot.lane.b32.xlu0 %v3579, 96
          %v4080 = vpop.permute.xlu0 %4079
          %4081 = vrot.lane.b32.xlu0 %v3581, 96
          %v4082 = vpop.permute.xlu0 %4081
          %4083 = vrot.lane.b32.xlu0 %v3619, 112
          %v4084 = vpop.permute.xlu0 %4083
          %4085 = vrot.lane.b32.xlu0 %v3631, 112
          %v4086 = vpop.permute.xlu0 %4085
          %4087 = vrot.lane.b32.xlu0 %v3643, 112
          %v4088 = vpop.permute.xlu0 %4087
          %4089 = vrot.lane.b32.xlu0 %v3655, 112
          %v4090 = vpop.permute.xlu0 %4089
          %4091 = vrot.lane.b32.xlu0 %v3667, 112
          %v4092 = vpop.permute.xlu0 %4091
          %4093 = vrot.lane.b32.xlu0 %v3679, 112
          %v4094 = vpop.permute.xlu0 %4093
          %4095 = vrot.lane.b32.xlu0 %v3691, 112
          %v4096 = vpop.permute.xlu0 %4095
          %4097 = vrot.lane.b32.xlu0 %v3703, 112
          %v4098 = vpop.permute.xlu0 %4097
          %4099 = vrot.lane.b32.xlu0 %v3715, 112
          %v4100 = vpop.permute.xlu0 %4099
          %4101 = vrot.lane.b32.xlu0 %v3727, 112
          %v4102 = vpop.permute.xlu0 %4101
          %4103 = vrot.lane.b32.xlu0 %v3739, 112
          %v4104 = vpop.permute.xlu0 %4103
          %4105 = vrot.lane.b32.xlu0 %v3751, 112
          %v4106 = vpop.permute.xlu0 %4105
          %4107 = vrot.lane.b32.xlu0 %v3763, 112
          %v4108 = vpop.permute.xlu0 %4107
          %4109 = vrot.lane.b32.xlu0 %v3775, 112
          %v4110 = vpop.permute.xlu0 %4109
          %4111 = vrot.lane.b32.xlu0 %v3868, 112
          %v4112 = vpop.permute.xlu0 %4111
          %4113 = vrot.lane.b32.xlu0 %v3885, 112
          %v4114 = vpop.permute.xlu0 %4113
          %v4116 = vsel %vm3460, %v3547, %v3892
          %v4118 = vsel %vm3460, %v3549, %v3894
          %v4120 = vsel %vm3460, %v3551, %v3896
          %v4122 = vsel %vm3460, %v3553, %v3898
          %v4124 = vsel %vm3460, %v3555, %v3900
          %v4126 = vsel %vm3460, %v3557, %v3902
          %v4128 = vsel %vm3460, %v3559, %v3904
          %v4130 = vsel %vm3460, %v3561, %v3906
          %v4132 = vsel %vm3460, %v3563, %v3908
          %v4134 = vsel %vm3460, %v3565, %v3910
          %v4136 = vsel %vm3460, %v3567, %v3912
          %v4138 = vsel %vm3460, %v3569, %v3914
          %v4140 = vsel %vm3460, %v3571, %v3916
          %v4142 = vsel %vm3460, %v3573, %v3918
          %v4144 = vsel %vm3460, %v3575, %v3920
          %v4146 = vsel %vm3460, %v3577, %v3922
          %vm4147 = vcmask 261120
          %v4149 = vsel %vm4147, %v4116, %v3924
          %v4151 = vsel %vm4147, %v4118, %v3926
          %v4153 = vsel %vm4147, %v4120, %v3928
          %v4155 = vsel %vm4147, %v4122, %v3930
          %v4157 = vsel %vm4147, %v4124, %v3932
          %v4159 = vsel %vm4147, %v4126, %v3934
          %v4161 = vsel %vm4147, %v4128, %v3936
          %v4163 = vsel %vm4147, %v4130, %v3938
          %v4165 = vsel %vm4147, %v4132, %v3940
          %v4167 = vsel %vm4147, %v4134, %v3942
          %v4169 = vsel %vm4147, %v4136, %v3944
          %v4171 = vsel %vm4147, %v4138, %v3946
          %v4173 = vsel %vm4147, %v4140, %v3948
          %v4175 = vsel %vm4147, %v4142, %v3950
          %v4177 = vsel %vm4147, %v4144, %v3952
          %v4179 = vsel %vm4147, %v4146, %v3954
          %vm4180 = vcmask 392192
          %v4182 = vsel %vm4180, %v4149, %v3956
          %v4184 = vsel %vm4180, %v4151, %v3958
          %v4186 = vsel %vm4180, %v4153, %v3960
          %v4188 = vsel %vm4180, %v4155, %v3962
          %v4190 = vsel %vm4180, %v4157, %v3964
          %v4192 = vsel %vm4180, %v4159, %v3966
          %v4194 = vsel %vm4180, %v4161, %v3968
          %v4196 = vsel %vm4180, %v4163, %v3970
          %v4198 = vsel %vm4180, %v4165, %v3972
          %v4200 = vsel %vm4180, %v4167, %v3974
          %v4202 = vsel %vm4180, %v4169, %v3976
          %v4204 = vsel %vm4180, %v4171, %v3978
          %v4206 = vsel %vm4180, %v4173, %v3980
          %v4208 = vsel %vm4180, %v4175, %v3982
          %v4210 = vsel %vm4180, %v4177, %v3984
          %v4212 = vsel %vm4180, %v4179, %v3986
          %vm4213 = vcmask 523264
          %v4215 = vsel %vm4213, %v4182, %v3988
          %v4217 = vsel %vm4213, %v4184, %v3990
          %v4219 = vsel %vm4213, %v4186, %v3992
          %v4221 = vsel %vm4213, %v4188, %v3994
          %v4223 = vsel %vm4213, %v4190, %v3996
          %v4225 = vsel %vm4213, %v4192, %v3998
          %v4227 = vsel %vm4213, %v4194, %v4000
          %v4229 = vsel %vm4213, %v4196, %v4002
          %v4231 = vsel %vm4213, %v4198, %v4004
          %v4233 = vsel %vm4213, %v4200, %v4006
          %v4235 = vsel %vm4213, %v4202, %v4008
          %v4237 = vsel %vm4213, %v4204, %v4010
          %v4239 = vsel %vm4213, %v4206, %v4012
          %v4241 = vsel %vm4213, %v4208, %v4014
          %v4243 = vsel %vm4213, %v4210, %v4016
          %v4245 = vsel %vm4213, %v4212, %v4018
          %vm4246 = vcmask 654336
          %v4248 = vsel %vm4246, %v4215, %v4020
          %v4250 = vsel %vm4246, %v4217, %v4022
          %v4252 = vsel %vm4246, %v4219, %v4024
          %v4254 = vsel %vm4246, %v4221, %v4026
          %v4256 = vsel %vm4246, %v4223, %v4028
          %v4258 = vsel %vm4246, %v4225, %v4030
          %v4260 = vsel %vm4246, %v4227, %v4032
          %v4262 = vsel %vm4246, %v4229, %v4034
          %v4264 = vsel %vm4246, %v4231, %v4036
          %v4266 = vsel %vm4246, %v4233, %v4038
          %v4268 = vsel %vm4246, %v4235, %v4040
          %v4270 = vsel %vm4246, %v4237, %v4042
          %v4272 = vsel %vm4246, %v4239, %v4044
          %v4274 = vsel %vm4246, %v4241, %v4046
          %v4276 = vsel %vm4246, %v4243, %v4048
          %v4278 = vsel %vm4246, %v4245, %v4050
          %vm4279 = vcmask 785408
          %v4281 = vsel %vm4279, %v4248, %v4052
          %v4283 = vsel %vm4279, %v4250, %v4054
          %v4285 = vsel %vm4279, %v4252, %v4056
          %v4287 = vsel %vm4279, %v4254, %v4058
          %v4289 = vsel %vm4279, %v4256, %v4060
          %v4291 = vsel %vm4279, %v4258, %v4062
          %v4293 = vsel %vm4279, %v4260, %v4064
          %v4295 = vsel %vm4279, %v4262, %v4066
          %v4297 = vsel %vm4279, %v4264, %v4068
          %v4299 = vsel %vm4279, %v4266, %v4070
          %v4301 = vsel %vm4279, %v4268, %v4072
          %v4303 = vsel %vm4279, %v4270, %v4074
          %v4305 = vsel %vm4279, %v4272, %v4076
          %v4307 = vsel %vm4279, %v4274, %v4078
          %v4309 = vsel %vm4279, %v4276, %v4080
          %v4311 = vsel %vm4279, %v4278, %v4082
          %vm4312 = vcmask 916480
          %v4314 = vsel %vm4312, %v4281, %v4084
          %v4317 = vsel %vm4312, %v4283, %v4086
          %v4320 = vsel %vm4312, %v4285, %v4088
          %v4323 = vsel %vm4312, %v4287, %v4090
          %v4326 = vsel %vm4312, %v4289, %v4092
          %v4329 = vsel %vm4312, %v4291, %v4094
          %v4332 = vsel %vm4312, %v4293, %v4096
          %v4335 = vsel %vm4312, %v4295, %v4098
          %v4338 = vsel %vm4312, %v4297, %v4100
          %v4341 = vsel %vm4312, %v4299, %v4102
          %v4344 = vsel %vm4312, %v4301, %v4104
          %v4347 = vsel %vm4312, %v4303, %v4106
          %v4350 = vsel %vm4312, %v4305, %v4108
          %v4353 = vsel %vm4312, %v4307, %v4110
          %v4356 = vsel %vm4312, %v4309, %v4112
          %v4359 = vsel %vm4312, %v4311, %v4114
          %v4362 = vlaneseq
          %v4363 = vshrl.u32 %v4362, 7
          %v4364 = vsub.s32 0, %v4363
          %v4365 = vrot.slane %v3458, %v4364
          %v4385 = vunpack.c.l.b16 %v3440
          %v4386 = vunpack.c.l.b16 %v3441
          %v4387 = vunpack.c.l.b16 %v3442
          %v4388 = vunpack.c.l.b16 %v3443
          %v4389 = vunpack.c.l.b16 %v3444
          %v4390 = vunpack.c.l.b16 %v3445
          %v4391 = vunpack.c.l.b16 %v3446
          %v4392 = vunpack.c.l.b16 %v3447
          %v4393 = vunpack.c.l.b16 %v3448
          %v4394 = vunpack.c.l.b16 %v3449
          %v4395 = vunpack.c.l.b16 %v3450
          %v4396 = vunpack.c.l.b16 %v3451
          %v4397 = vunpack.c.l.b16 %v3452
          %v4398 = vunpack.c.l.b16 %v3453
          %v4399 = vunpack.c.l.b16 %v3454
          %v4400 = vunpack.c.l.b16 %v3455
          %v4401 = vunpack.c.l.b16 %v3456
          %v4402 = vunpack.c.l.b16 %v3457
          %v4403 = vpack.c.b16 %v4386, %v4385
          %v4404 = vpack.c.b16 %v4388, %v4387
          %v4405 = vpack.c.b16 %v4390, %v4389
          %v4406 = vpack.c.b16 %v4392, %v4391
          %v4407 = vpack.c.b16 %v4394, %v4393
          %v4408 = vpack.c.b16 %v4396, %v4395
          %v4409 = vpack.c.b16 %v4398, %v4397
          %v4410 = vpack.c.b16 %v4400, %v4399
          %v4411 = vpack.c.b16 %v4402, %v4401
          %v4422 = vsel %vm3460, %v3817, 0
          %v4425 = vsel %vm3460, %v3820, 0
          %v4428 = vsel %vm3460, %v3823, 0
          %v4431 = vsel %vm3460, %v3826, 0
          %v4434 = vsel %vm3460, %v3829, 0
          %v4437 = vsel %vm3460, %v3832, 0
          %v4440 = vsel %vm3460, %v3835, 0
          %v4443 = vsel %vm3460, %v3838, 0
          %v4446 = vsel %vm3460, %v3841, 0
          %v4449 = vsel %vm3460, %v3844, 0
          %v4452 = vsel %vm3460, %v3847, 0
          %v4455 = vsel %vm3460, %v3850, 0
          %v4458 = vsel %vm3460, %v3853, 0
          %v4461 = vsel %vm3460, %v3856, 0
          %v4464 = vsel %vm3460, %v3873, 0
          %v4467 = vsel %vm3460, %v3890, 0
          %4469 = vmatprep.subr.bf16.mxu0 0
          %4470 = vmatpush1.bf16.msra.mxu0 %v4410
          %4471 = vmatprep.subr.bf16.mxu0 0
          %4472 = vmatpush1.bf16.msra.mxu0 %v4409
          %4473 = vmatprep.subr.bf16.mxu0 0
          %4474 = vmatpush1.bf16.msra.mxu0 %v4408
          %4475 = vmatprep.subr.bf16.mxu0 0
          %4476 = vmatpush1.bf16.msra.mxu0 %v4407
          %4477 = vmatprep.subr.bf16.mxu0 0
          %4478 = vmatpush1.bf16.msra.mxu0 %v4406
          %4479 = vmatprep.subr.bf16.mxu0 0
          %4480 = vmatpush1.bf16.msra.mxu0 %v4405
          %4481 = vmatprep.subr.bf16.mxu0 0
          %4482 = vmatpush1.bf16.msra.mxu0 %v4404
          %4483 = vmatprep.subr.bf16.mxu0 0
          %4484 = vmatpush1.bf16.msra.mxu0 %v4403
          %4485 = vmatprep.subr.bf16.mxu0 0
          %4486 = vmatpush2.bf16.msra.mxu0 0
          %4487 = vmatprep.subr.bf16.mxu0 0
          %4488 = vmatpush2.bf16.msra.mxu0 0
          %4489 = vmatprep.subr.bf16.mxu0 0
          %4490 = vmatpush2.bf16.msra.mxu0 0
          %4491 = vmatprep.subr.bf16.mxu0 0
          %4492 = vmatpush2.bf16.msra.mxu0 0
          %4493 = vmatprep.subr.bf16.mxu0 0
          %4494 = vmatpush2.bf16.msra.mxu0 0
          %4495 = vmatprep.subr.bf16.mxu0 0
          %4496 = vmatpush2.bf16.msra.mxu0 0
          %4497 = vmatprep.subr.bf16.mxu0 0
          %4498 = vmatpush2.bf16.msra.mxu0 0
          %4499 = vmatprep.subr.bf16.mxu0 0
          %4500 = vmatpush2.bf16.msra.mxu0 %v4411
          %4501 = vmatprep.mubr.bf16.mxu0 %v4422
          %4502 = vmatmul.mubr.bf16.gmra.mxu0 %v4314
          %v4503 = vpop.f32.mrf.mxu0
          %v4504 = vadd.f32 %v4365, %v4503
          %v4505 = vpop.f32.mrf.mxu0
          %v4506 = vpop.f32.mrf.mxu0
          %v4507 = vadd.f32 %v4365, %v4506
          %v4508 = vpop.f32.mrf.mxu0
          %4509 = vmatprep.mubr.bf16.mxu0 %v4425
          %4510 = vmatmul.mubr.bf16.gmra.mxu0 %v4317
          %v4511 = vpop.f32.mrf.mxu0
          %v4512 = vadd.f32 %v4365, %v4511
          %v4513 = vpop.f32.mrf.mxu0
          %v4514 = vpop.f32.mrf.mxu0
          %v4515 = vadd.f32 %v4365, %v4514
          %v4516 = vpop.f32.mrf.mxu0
          %4517 = vmatprep.mubr.bf16.mxu0 %v4428
          %4518 = vmatmul.mubr.bf16.gmra.mxu0 %v4320
          %v4519 = vpop.f32.mrf.mxu0
          %v4520 = vadd.f32 %v4365, %v4519
          %v4521 = vpop.f32.mrf.mxu0
          %v4522 = vpop.f32.mrf.mxu0
          %v4523 = vadd.f32 %v4365, %v4522
          %v4524 = vpop.f32.mrf.mxu0
          %4525 = vmatprep.mubr.bf16.mxu0 %v4431
          %4526 = vmatmul.mubr.bf16.gmra.mxu0 %v4323
          %v4527 = vpop.f32.mrf.mxu0
          %v4528 = vadd.f32 %v4365, %v4527
          %v4529 = vpop.f32.mrf.mxu0
          %v4530 = vpop.f32.mrf.mxu0
          %v4531 = vadd.f32 %v4365, %v4530
          %v4532 = vpop.f32.mrf.mxu0
          %4533 = vmatprep.mubr.bf16.mxu0 %v4434
          %4534 = vmatmul.mubr.bf16.gmra.mxu0 %v4326
          %v4535 = vpop.f32.mrf.mxu0
          %v4536 = vadd.f32 %v4365, %v4535
          %v4537 = vpop.f32.mrf.mxu0
          %v4538 = vpop.f32.mrf.mxu0
          %v4539 = vadd.f32 %v4365, %v4538
          %v4540 = vpop.f32.mrf.mxu0
          %4541 = vmatprep.mubr.bf16.mxu0 %v4437
          %4542 = vmatmul.mubr.bf16.gmra.mxu0 %v4329
          %v4543 = vpop.f32.mrf.mxu0
          %v4544 = vadd.f32 %v4365, %v4543
          %v4545 = vpop.f32.mrf.mxu0
          %v4546 = vpop.f32.mrf.mxu0
          %v4547 = vadd.f32 %v4365, %v4546
          %v4548 = vpop.f32.mrf.mxu0
          %4549 = vmatprep.mubr.bf16.mxu0 %v4440
          %4550 = vmatmul.mubr.bf16.gmra.mxu0 %v4332
          %v4551 = vpop.f32.mrf.mxu0
          %v4552 = vadd.f32 %v4365, %v4551
          %v4553 = vpop.f32.mrf.mxu0
          %v4554 = vpop.f32.mrf.mxu0
          %v4555 = vadd.f32 %v4365, %v4554
          %v4556 = vpop.f32.mrf.mxu0
          %4557 = vmatprep.mubr.bf16.mxu0 %v4443
          %4558 = vmatmul.mubr.bf16.gmra.mxu0 %v4335
          %v4559 = vpop.f32.mrf.mxu0
          %v4560 = vadd.f32 %v4365, %v4559
          %v4561 = vpop.f32.mrf.mxu0
          %v4562 = vpop.f32.mrf.mxu0
          %v4563 = vadd.f32 %v4365, %v4562
          %v4564 = vpop.f32.mrf.mxu0
          %4565 = vmatprep.mubr.bf16.mxu0 %v4446
          %4566 = vmatmul.mubr.bf16.gmra.mxu0 %v4338
          %v4567 = vpop.f32.mrf.mxu0
          %v4568 = vadd.f32 %v4365, %v4567
          %v4569 = vpop.f32.mrf.mxu0
          %v4570 = vpop.f32.mrf.mxu0
          %v4571 = vadd.f32 %v4365, %v4570
          %v4572 = vpop.f32.mrf.mxu0
          %4573 = vmatprep.mubr.bf16.mxu0 %v4449
          %4574 = vmatmul.mubr.bf16.gmra.mxu0 %v4341
          %v4575 = vpop.f32.mrf.mxu0
          %v4576 = vadd.f32 %v4365, %v4575
          %v4577 = vpop.f32.mrf.mxu0
          %v4578 = vpop.f32.mrf.mxu0
          %v4579 = vadd.f32 %v4365, %v4578
          %v4580 = vpop.f32.mrf.mxu0
          %4581 = vmatprep.mubr.bf16.mxu0 %v4452
          %4582 = vmatmul.mubr.bf16.gmra.mxu0 %v4344
          %v4583 = vpop.f32.mrf.mxu0
          %v4584 = vadd.f32 %v4365, %v4583
          %v4585 = vpop.f32.mrf.mxu0
          %v4586 = vpop.f32.mrf.mxu0
          %v4587 = vadd.f32 %v4365, %v4586
          %v4588 = vpop.f32.mrf.mxu0
          %4589 = vmatprep.mubr.bf16.mxu0 %v4455
          %4590 = vmatmul.mubr.bf16.gmra.mxu0 %v4347
          %v4591 = vpop.f32.mrf.mxu0
          %v4592 = vadd.f32 %v4365, %v4591
          %v4593 = vpop.f32.mrf.mxu0
          %v4594 = vpop.f32.mrf.mxu0
          %v4595 = vadd.f32 %v4365, %v4594
          %v4596 = vpop.f32.mrf.mxu0
          %4597 = vmatprep.mubr.bf16.mxu0 %v4458
          %4598 = vmatmul.mubr.bf16.gmra.mxu0 %v4350
          %v4599 = vpop.f32.mrf.mxu0
          %v4600 = vadd.f32 %v4365, %v4599
          %v4601 = vpop.f32.mrf.mxu0
          %v4602 = vpop.f32.mrf.mxu0
          %v4603 = vadd.f32 %v4365, %v4602
          %v4604 = vpop.f32.mrf.mxu0
          %4605 = vmatprep.mubr.bf16.mxu0 %v4461
          %4606 = vmatmul.mubr.bf16.gmra.mxu0 %v4353
          %v4607 = vpop.f32.mrf.mxu0
          %v4608 = vadd.f32 %v4365, %v4607
          %v4609 = vpop.f32.mrf.mxu0
          %v4610 = vpop.f32.mrf.mxu0
          %v4611 = vadd.f32 %v4365, %v4610
          %v4612 = vpop.f32.mrf.mxu0
          %4613 = vmatprep.mubr.bf16.mxu0 %v4464
          %4614 = vmatmul.mubr.bf16.gmra.mxu0 %v4356
          %v4615 = vpop.f32.mrf.mxu0
          %v4616 = vadd.f32 %v4365, %v4615
          %v4617 = vpop.f32.mrf.mxu0
          %v4618 = vpop.f32.mrf.mxu0
          %v4619 = vadd.f32 %v4365, %v4618
          %v4620 = vpop.f32.mrf.mxu0
          %4621 = vmatprep.mubr.bf16.mxu0 %v4467
          %4622 = vmatmul.mubr.bf16.gmra.mxu0 %v4359
          %v4623 = vpop.f32.mrf.mxu0
          %v4624 = vadd.f32 %v4365, %v4623
          %v4625 = vpop.f32.mrf.mxu0
          %v4626 = vpop.f32.mrf.mxu0
          %v4627 = vadd.f32 %v4365, %v4626
          %v4628 = vpop.f32.mrf.mxu0
          %4629 = vdwg.mxu0
          %v4630 = vadd.f32 %v4504, %v3376
          %v4631 = vadd.f32 %v4507, %v3377
          %v4632 = vadd.f32 %v4512, %v3378
          %v4633 = vadd.f32 %v4515, %v3379
          %v4634 = vadd.f32 %v4520, %v3380
          %v4635 = vadd.f32 %v4523, %v3381
          %v4636 = vadd.f32 %v4528, %v3382
          %v4637 = vadd.f32 %v4531, %v3383
          %v4638 = vadd.f32 %v4536, %v3384
          %v4639 = vadd.f32 %v4539, %v3385
          %v4640 = vadd.f32 %v4544, %v3386
          %v4641 = vadd.f32 %v4547, %v3387
          %v4642 = vadd.f32 %v4552, %v3388
          %v4643 = vadd.f32 %v4555, %v3389
          %v4644 = vadd.f32 %v4560, %v3390
          %v4645 = vadd.f32 %v4563, %v3391
          %v4646 = vadd.f32 %v4568, %v3392
          %v4647 = vadd.f32 %v4571, %v3393
          %v4648 = vadd.f32 %v4576, %v3394
          %v4649 = vadd.f32 %v4579, %v3395
          %v4650 = vadd.f32 %v4584, %v3396
          %v4651 = vadd.f32 %v4587, %v3397
          %v4652 = vadd.f32 %v4592, %v3398
          %v4653 = vadd.f32 %v4595, %v3399
          %v4654 = vadd.f32 %v4600, %v3400
          %v4655 = vadd.f32 %v4603, %v3401
          %v4656 = vadd.f32 %v4608, %v3402
          %v4657 = vadd.f32 %v4611, %v3403
          %v4658 = vadd.f32 %v4616, %v3404
          %v4659 = vadd.f32 %v4619, %v3405
          %v4660 = vadd.f32 %v4624, %v3406
          %v4661 = vadd.f32 %v4627, %v3407
          %4662 = vst.msk [vmem:[%s439] sm:$0xff] %vm3460, %v4630
          %4663 = vst.msk [vmem:[%s439 + $0x8] sm:$0xff] %vm3460, %v4631
          %4664 = vst.msk [vmem:[%s439 + $0x10] sm:$0xff] %vm3460, %v4632
          %4665 = vst.msk [vmem:[%s439 + $0x18] sm:$0xff] %vm3460, %v4633
          %4666 = vst.msk [vmem:[%s439 + $0x20] sm:$0xff] %vm3460, %v4634
          %4667 = vst.msk [vmem:[%s439 + $0x28] sm:$0xff] %vm3460, %v4635
          %4668 = vst.msk [vmem:[%s439 + $0x30] sm:$0xff] %vm3460, %v4636
          %4669 = vst.msk [vmem:[%s439 + $0x38] sm:$0xff] %vm3460, %v4637
          %4670 = vst.msk [vmem:[%s439 + $0x40] sm:$0xff] %vm3460, %v4638
          %4671 = vst.msk [vmem:[%s439 + $0x48] sm:$0xff] %vm3460, %v4639
          %4672 = vst.msk [vmem:[%s439 + $0x50] sm:$0xff] %vm3460, %v4640
          %4673 = vst.msk [vmem:[%s439 + $0x58] sm:$0xff] %vm3460, %v4641
          %4674 = vst.msk [vmem:[%s439 + $0x60] sm:$0xff] %vm3460, %v4642
          %4675 = vst.msk [vmem:[%s439 + $0x68] sm:$0xff] %vm3460, %v4643
          %4676 = vst.msk [vmem:[%s439 + $0x70] sm:$0xff] %vm3460, %v4644
          %4677 = vst.msk [vmem:[%s439 + $0x78] sm:$0xff] %vm3460, %v4645
          %4678 = vst.msk [vmem:[%s439 + $0x80] sm:$0xff] %vm3460, %v4646
          %4679 = vst.msk [vmem:[%s439 + $0x88] sm:$0xff] %vm3460, %v4647
          %4680 = vst.msk [vmem:[%s439 + $0x90] sm:$0xff] %vm3460, %v4648
          %4681 = vst.msk [vmem:[%s439 + $0x98] sm:$0xff] %vm3460, %v4649
          %4682 = vst.msk [vmem:[%s439 + $0xa0] sm:$0xff] %vm3460, %v4650
          %4683 = vst.msk [vmem:[%s439 + $0xa8] sm:$0xff] %vm3460, %v4651
          %4684 = vst.msk [vmem:[%s439 + $0xb0] sm:$0xff] %vm3460, %v4652
          %4685 = vst.msk [vmem:[%s439 + $0xb8] sm:$0xff] %vm3460, %v4653
          %4686 = vst.msk [vmem:[%s439 + $0xc0] sm:$0xff] %vm3460, %v4654
          %4687 = vst.msk [vmem:[%s439 + $0xc8] sm:$0xff] %vm3460, %v4655
          %4688 = vst.msk [vmem:[%s439 + $0xd0] sm:$0xff] %vm3460, %v4656
          %4689 = vst.msk [vmem:[%s439 + $0xd8] sm:$0xff] %vm3460, %v4657
          %4690 = vst.msk [vmem:[%s439 + $0xe0] sm:$0xff] %vm3460, %v4658
          %4691 = vst.msk [vmem:[%s439 + $0xe8] sm:$0xff] %vm3460, %v4659
          %4692 = vst.msk [vmem:[%s439 + $0xf0] sm:$0xff] %vm3460, %v4660
          %4693 = vst.msk [vmem:[%s439 + $0xf8] sm:$0xff] %vm3460, %v4661
        $region68: #{tpu_custom_call.1} parent=55 // pred_fallthru
          _
        %s4694 = sand.u32 %s277, 1
        %s4695 = scalar_lea.sflag [#allocation5], %s4694
        %s4696 = sand.u32 %s277, 1
        %s4697 = smul.addr %s4696, 256
        %s4698 = scalar_lea.vmem [#allocation4], %s4697
        // Predicated region
        $region69: #{tpu_custom_call.1} parent=55 // pred_check
          %p4699 = pneg %p287
        $region70: #{tpu_custom_call.1} parent=55 // pred_check_branch
          %4701 = sbr.rel (%p4699) target = $region72
        $region71: #{tpu_custom_call.1} parent=55 // pred_region
          %s4703 = ssub.s32 4096, 4096
          %4704 = vsyncadd %s4695, %s4703
          %s4705 = smul.addr %s27, 32
          %s4706 = smul.addr %s4705, 128
          %s4707 = scalar_lea.hbm %s9, %s4706
          %s4708 = sshll.u32 %s4698, 4
          %s4709 = int_to_ptr.vmem [resolvable:$true] %s4708
          %4714 = dma.vmem_to_hbm [thread:$0]  %s4709, 4096, %s4707, %s4695, 128, 128, 8
        $region72: #{tpu_custom_call.1} parent=55 // pred_fallthru
          _
      $region56: #{tpu_custom_call.1} parent=5 // pred_fallthru
        _
      %p4715 = scmp.le.s32.totalorder 2, %s18
      // Predicated region
      $region73: #{tpu_custom_call.1} parent=5 // pred_check
        %p4716 = pneg %p4715
      $region74: #{tpu_custom_call.1} parent=5 // pred_check_branch
        %4718 = sbr.rel (%p4716) target = $region76
      $region75: #{tpu_custom_call.1} parent=5 // pred_region
        %s4719 = ssub.s32 %s18, 2
        // Predicated region
        $region77: #{tpu_custom_call.1} parent=75 // pred_check
          %p4720 = pneg %p293
        $region78: #{tpu_custom_call.1} parent=75 // pred_check_branch
          %4722 = sbr.rel (%p4720) target = $region80
        $region79: #{tpu_custom_call.1} parent=75 // pred_region
          %s4723 = sand.u32 %s278, 1
          %s4724 = scalar_lea.sflag [#allocation5], %s4723
          %s4725 = sand.u32 %s278, 1
          %s4726 = smul.addr %s4725, 256
          %s4727 = scalar_lea.vmem [#allocation4], %s4726
          %4728 = dma.done %s4724, 4096
        $region80: #{tpu_custom_call.1} parent=75 // pred_fallthru
          _
      $region76: #{tpu_custom_call.1} parent=5 // pred_fallthru
        _
    $region6: #{tpu_custom_call.1} parent=1 // loop_footer
      %s22 = sadd.s32 1, %s18
    $region7: #{tpu_custom_call.1} parent=1 // loop_footer_branch
      %17 = sbr.rel target = $region3
    $region8: #{tpu_custom_call.1} parent=1 // loop_exit
      _
    %4729 = vsyncpa [#allocation5], 1
    %s4730 = scalar_lea.sflag [#allocation5], 1
    %4731 = vsyncpa %s4730, 1

</llo_original>
